<compile_context>
chip_gen: v5e
topology: v5e:2x2
jax: 0.10.0
libtpu: 0.0.40
codegen_flags: <defaults>
</compile_context>

<pallas_src>
import math
import functools

import jax
import jax.numpy as jnp
from jax.experimental import pallas as pl
from jax.experimental.pallas import tpu as pltpu


# ----------------------------- config ---------------------------------------
class Cfg:
    vocab_size = 128
    hidden_size = 64
    intermediate_size = 128
    num_hidden_layers = 2          # layer 0 -> sparse MoE, layer 1 -> dense MLP
    num_attention_heads = 4
    num_key_value_heads = 2
    num_experts = 4
    num_experts_per_token = 2
    expert_hidden_size = 128
    rms_norm_eps = 1e-5
    rope_theta = 10000.0
    sliding_window = 4096          # seq << window -> no sliding-window masking


# ----------------------------- in-kernel helpers ------------------------------
def _rmsnorm(x, w, eps):
    """x: (N, H), w: (1, H) -> (N, H). Pure value math (traced inside kernels)."""
    ms = jnp.mean(x * x, axis=-1, keepdims=True)
    return w * x * jax.lax.rsqrt(ms + eps)


# ----------------------------- fused decoder-layer kernel --------------------
def _layer_kernel_factory(cfg, is_moe, is_last):
    H = cfg.hidden_size
    NH = cfg.num_attention_heads
    NKV = cfg.num_key_value_heads
    D = H // NH
    G = NH // NKV
    QD, KD = NH * D, NKV * D
    eps = cfg.rms_norm_eps
    scale = 1.0 / math.sqrt(D)
    E = cfg.num_experts
    K = cfg.num_experts_per_token
    I_moe = cfg.expert_hidden_size
    I_mlp = cfg.intermediate_size
    bf16 = jnp.bfloat16
    f32 = jnp.float32

    def kernel(*args):
        it = iter(args)
        x_ref = next(it)
        ln1_ref = next(it)
        ln2_ref = next(it)
        wqkv_ref = next(it)
        wo_ref = next(it)
        rot_ref = next(it)
        cos_ref = next(it)
        sin_ref = next(it)
        if is_moe:
            router_ref = next(it)
        wgu_ref = next(it)
        wd_ref = next(it)
        if is_last:
            fnw_ref = next(it)
        o_ref = next(it)
        ctx_ref = next(it)                       # VMEM scratch (S, NH*D) f32

        # ---------------- attention block (one batch's S rows) ----------------
        x = x_ref[...]                                          # (S, H) f32
        n1 = _rmsnorm(x, ln1_ref[...], eps)

        # one lane-dense fused q|k|v matmul, bf16 inputs -> f32 accumulation
        qkv = jnp.dot(n1.astype(bf16), wqkv_ref[...],
                      preferred_element_type=f32)               # (S, QD+2*KD)
        q = qkv[:, :QD]
        k = qkv[:, QD:QD + KD]
        v = qkv[:, QD + KD:]

        cos = cos_ref[...]                                      # (S, D)
        sin = sin_ref[...]                                      # (S, D)
        rot = rot_ref[...]                                      # (D, D) sign-perm

        for n in range(NKV):                                    # GQA kv heads
            kh = k[:, n * D:(n + 1) * D]                        # (S, D)
            vh = v[:, n * D:(n + 1) * D]
            # RoPE: rotate_half(x) == x @ rot (exact permutation w/ signs, MXU)
            kh = kh * cos + jnp.dot(kh, rot, preferred_element_type=f32) * sin
            kh_b = kh.astype(bf16)
            vh_b = vh.astype(bf16)
            for g in range(G):                                  # query heads
                hq = n * G + g
                qh = q[:, hq * D:(hq + 1) * D]
                qh = qh * cos + jnp.dot(qh, rot,
                                        preferred_element_type=f32) * sin
                s = jax.lax.dot_general(
                    qh.astype(bf16), kh_b, (((1,), (1,)), ((), ())),
                    preferred_element_type=f32) * scale         # (S, S)
                # no causal / sliding-window mask: matches the reference path
                # (attention_mask=None, S <= sliding_window)
                s = s - jnp.max(s, axis=-1, keepdims=True)
                p = jnp.exp(s)
                p = p / jnp.sum(p, axis=-1, keepdims=True)      # exact softmax
                ctx_ref[:, hq * D:(hq + 1) * D] = jnp.dot(
                    p.astype(bf16), vh_b, preferred_element_type=f32)

        ctx = ctx_ref[...]                                      # (S, NH*D)
        h2 = x + jnp.dot(ctx.astype(bf16), wo_ref[...],
                         preferred_element_type=f32)            # residual
        n2 = _rmsnorm(h2, ln2_ref[...], eps)                    # post-attn norm
        n2b = n2.astype(bf16)

        # ---------------- MLP / MoE block --------------------------------------
        if is_moe:
            logits = jnp.dot(n2b, router_ref[...],
                             preferred_element_type=f32)        # (S, E)
            # fused top-k(K=2) + softmax over selected -> dense expert weights
            v1 = jnp.max(logits, axis=-1, keepdims=True)
            expl = jnp.exp(logits - v1)
            gt = jnp.zeros_like(logits)
            for j in range(E):
                gt = gt + (logits[:, j:j + 1] > logits).astype(f32)
            sel = gt < float(K)                                  # top-K mask
            w_un = jnp.where(sel, expl, 0.0)
            w_dense = w_un / jnp.sum(w_un, axis=-1, keepdims=True)

            acc = h2                                             # f32 registers
            for e in range(E):                                   # static unroll
                gu = jnp.dot(n2b, wgu_ref[e],
                             preferred_element_type=f32)         # (S, 2I)
                g_ = gu[:, :I_moe]
                u_ = gu[:, I_moe:]
                hm = g_ * jax.nn.sigmoid(g_) * u_                # SiLU * up (f32)
                d = jnp.dot(hm.astype(bf16), wd_ref[e],
                            preferred_element_type=f32)          # (S, H)
                acc = acc + w_dense[:, e:e + 1] * d
            y = acc
        else:
            gu = jnp.dot(n2b, wgu_ref[...],
                         preferred_element_type=f32)             # (S, 2I)
            g_ = gu[:, :I_mlp]
            u_ = gu[:, I_mlp:]
            hm = g_ * jax.nn.sigmoid(g_) * u_
            y = h2 + jnp.dot(hm.astype(bf16), wd_ref[...],
                             preferred_element_type=f32)

        if is_last:
            y = _rmsnorm(y, fnw_ref[...], eps)                   # final model norm

        o_ref[...] = y

    return kernel


def decoder_layer(h2d, lp, cos, sin, rot, cfg, B, S, is_moe, final_norm_w=None):
    """One fused pallas_call per decoder layer, gridded over the batch axis."""
    N, H = h2d.shape
    NH = cfg.num_attention_heads
    D = H // NH
    is_last = final_norm_w is not None
    kernel = _layer_kernel_factory(cfg, is_moe, is_last)

    def rows(b):
        return (b, 0)

    def full2(shape):
        return pl.BlockSpec(shape, lambda b: (0, 0))

    def full3(shape):
        return pl.BlockSpec(shape, lambda b: (0, 0, 0))

    in_specs = [
        pl.BlockSpec((S, H), rows),          # h (aliased with output)
        full2((1, H)), full2((1, H)),        # ln1, ln2
        full2(lp["wqkv"].shape),             # fused q|k|v weight (bf16)
        full2(lp["wo"].shape),
        full2(rot.shape),                    # rotate_half permutation matrix
        full2(cos.shape), full2(sin.shape),  # (S, D) RoPE tables
    ]
    inputs = [h2d, lp["ln1"].reshape(1, H), lp["ln2"].reshape(1, H),
              lp["wqkv"], lp["wo"], rot, cos, sin]
    if is_moe:
        in_specs += [full2(lp["router"].shape),
                     full3(lp["wgu"].shape), full3(lp["wd"].shape)]
        inputs += [lp["router"], lp["wgu"], lp["wd"]]
    else:
        in_specs += [full2(lp["wgu"].shape), full2(lp["wd"].shape)]
        inputs += [lp["wgu"], lp["wd"]]
    if is_last:
        in_specs += [full2((1, H))]
        inputs += [final_norm_w.reshape(1, H)]

    return pl.pallas_call(
        kernel,
        out_shape=jax.ShapeDtypeStruct((N, H), h2d.dtype),
        grid=(B,),
        in_specs=in_specs,
        out_specs=pl.BlockSpec((S, H), rows),
        scratch_shapes=[pltpu.VMEM((S, NH * D), jnp.float32)],
        input_output_aliases={0: 0},          # residual slab updated in place
        compiler_params=pltpu.CompilerParams(
            dimension_semantics=("parallel",)),
    )(*inputs)


# ----------------------------- RoPE / misc glue -------------------------------
def precompute_rope(D, S, theta):
    inv_freq = 1.0 / (theta ** (jnp.arange(0, D, 2, dtype=jnp.float32) / D))
    t = jnp.arange(S, dtype=jnp.float32)
    freqs = jnp.einsum("i,j->ij", t, inv_freq)
    emb = jnp.concatenate([freqs, freqs], axis=-1)        # (S, D)
    return jnp.cos(emb), jnp.sin(emb)


def make_rotate_half_matrix(D):
    """(D, D) matrix R such that x @ R == rotate_half(x) (exact)."""
    half = D // 2
    i = jnp.arange(half)
    r = jnp.zeros((D, D), jnp.float32)
    r = r.at[i + half, i].set(-1.0)    # out[:half] = -x[half:]
    r = r.at[i, i + half].set(1.0)     # out[half:] =  x[:half]
    return r


# ----------------------------- params ----------------------------------------
def init_params(key, cfg):
    H = cfg.hidden_size
    NH, NKV = cfg.num_attention_heads, cfg.num_key_value_heads
    D = H // NH
    std = 0.02
    wdt = jnp.bfloat16                      # matmul weights stored bf16
    params = {}
    key, sub = jax.random.split(key)
    params["embed"] = jax.random.normal(sub, (cfg.vocab_size, H), jnp.float32) * std
    layers = []
    for li in range(cfg.num_hidden_layers):
        lp = {}
        key, *ks = jax.random.split(key, 8)
        lp["wqkv"] = (jax.random.normal(
            ks[0], (H, NH * D + 2 * NKV * D), jnp.float32) * std).astype(wdt)
        lp["wo"] = (jax.random.normal(ks[1], (NH * D, H), jnp.float32) * std).astype(wdt)
        lp["ln1"] = jnp.ones((H,), jnp.float32)
        lp["ln2"] = jnp.ones((H,), jnp.float32)
        if li % 2 == 0:  # sparse MoE
            E, I = cfg.num_experts, cfg.expert_hidden_size
            lp["router"] = (jax.random.normal(ks[2], (H, E), jnp.float32) * std).astype(wdt)
            lp["wgu"] = (jax.random.normal(ks[3], (E, H, 2 * I), jnp.float32) * std).astype(wdt)
            lp["wd"] = (jax.random.normal(ks[4], (E, I, H), jnp.float32) * std).astype(wdt)
        else:            # dense MLP
            I = cfg.intermediate_size
            lp["wgu"] = (jax.random.normal(ks[3], (H, 2 * I), jnp.float32) * std).astype(wdt)
            lp["wd"] = (jax.random.normal(ks[4], (I, H), jnp.float32) * std).astype(wdt)
        layers.append(lp)
    params["layers"] = layers
    params["final_norm"] = jnp.ones((H,), jnp.float32)
    return params


# ----------------------------- model forward ----------------------------------
@functools.partial(jax.jit, static_argnums=(2,))
def mistral_moe_forward(input_ids, params, cfg):
    B, S = input_ids.shape
    H = cfg.hidden_size
    NH = cfg.num_attention_heads
    D = H // NH

    embeds = jnp.take(params["embed"], input_ids, axis=0)    # (B, S, H)
    h2d = embeds.reshape(B * S, H)

    cos, sin = precompute_rope(D, S, cfg.rope_theta)          # (S, D) each
    rot = make_rotate_half_matrix(D)                          # (D, D)

    n_layers = len(params["layers"])
    for i, lp in enumerate(params["layers"]):
        is_last = i == n_layers - 1
        h2d = decoder_layer(
            h2d, lp, cos, sin, rot, cfg, B, S,
            is_moe=(i % 2 == 0),
            final_norm_w=params["final_norm"] if is_last else None)
    return h2d.reshape(B, S, H)


# ----------------------------- main ------------------------------------------
if __name__ == "__main__":
    cfg = Cfg()
    key = jax.random.PRNGKey(0)
    key, pkey, ikey = jax.random.split(key, 3)
    params = init_params(pkey, cfg)

    batch, seq = 2, 8
    input_ids = jax.random.randint(ikey, (batch, seq), 0, cfg.vocab_size,
                                   dtype=jnp.int32)

    out = mistral_moe_forward(input_ids, params, cfg)
    jax.block_until_ready(out)
    assert out.shape == (batch, seq, cfg.hidden_size)
    assert bool(jnp.all(jnp.isfinite(out)))
    print("KERNEL_OK")
</pallas_src>

<mosaic_0001>
module attributes {stable_mosaic.version = 11 : i64} {
  func.func @kernel(%arg0: i32, %arg1: memref<8x64xf32, #tpu.memory_space<vmem>>, %arg2: memref<1x64xf32, #tpu.memory_space<vmem>>, %arg3: memref<1x64xf32, #tpu.memory_space<vmem>>, %arg4: memref<64x128xbf16, #tpu.memory_space<vmem>>, %arg5: memref<64x64xbf16, #tpu.memory_space<vmem>>, %arg6: memref<16x16xf32, #tpu.memory_space<vmem>>, %arg7: memref<8x16xf32, #tpu.memory_space<vmem>>, %arg8: memref<8x16xf32, #tpu.memory_space<vmem>>, %arg9: memref<64x256xbf16, #tpu.memory_space<vmem>>, %arg10: memref<128x64xbf16, #tpu.memory_space<vmem>>, %arg11: memref<1x64xf32, #tpu.memory_space<vmem>>, %arg12: memref<8x64xf32, #tpu.memory_space<vmem>>, %arg13: memref<8x64xf32, #tpu.memory_space<vmem>>) attributes {dimension_semantics = [#tpu.dimension_semantics<parallel>], iteration_bounds = array<i64: 2>, scalar_prefetch = 0 : i64, scratch_operands = 1 : i64, tpu.core_type = #tpu.core_type<tc>, window_params = [{transform_indices = @transform_0, window_bounds = array<i64: 8, 64>}, {pipeline_mode = #tpu.pipeline_mode<synchronous>, transform_indices = @transform_1, window_bounds = array<i64: 1, 64>}, {pipeline_mode = #tpu.pipeline_mode<synchronous>, transform_indices = @transform_2, window_bounds = array<i64: 1, 64>}, {pipeline_mode = #tpu.pipeline_mode<synchronous>, transform_indices = @transform_3, window_bounds = array<i64: 64, 128>}, {pipeline_mode = #tpu.pipeline_mode<synchronous>, transform_indices = @transform_4, window_bounds = array<i64: 64, 64>}, {pipeline_mode = #tpu.pipeline_mode<synchronous>, transform_indices = @transform_5, window_bounds = array<i64: 16, 16>}, {pipeline_mode = #tpu.pipeline_mode<synchronous>, transform_indices = @transform_6, window_bounds = array<i64: 8, 16>}, {pipeline_mode = #tpu.pipeline_mode<synchronous>, transform_indices = @transform_7, window_bounds = array<i64: 8, 16>}, {pipeline_mode = #tpu.pipeline_mode<synchronous>, transform_indices = @transform_8, window_bounds = array<i64: 64, 256>}, {pipeline_mode = #tpu.pipeline_mode<synchronous>, transform_indices = @transform_9, window_bounds = array<i64: 128, 64>}, {pipeline_mode = #tpu.pipeline_mode<synchronous>, transform_indices = @transform_10, window_bounds = array<i64: 1, 64>}, {transform_indices = @transform_11, window_bounds = array<i64: 8, 64>}]} {
    %c0 = arith.constant 0 : index
    %c0_0 = arith.constant 0 : index
    %0 = vector.load %arg1[%c0, %c0_0] : memref<8x64xf32, #tpu.memory_space<vmem>>, vector<8x64xf32>
    %c0_1 = arith.constant 0 : index
    %c0_2 = arith.constant 0 : index
    %1 = vector.load %arg2[%c0_1, %c0_2] : memref<1x64xf32, #tpu.memory_space<vmem>>, vector<1x64xf32>
    %2 = arith.mulf %0, %0 : vector<8x64xf32>
    %cst = arith.constant dense<0.000000e+00> : vector<8xf32>
    %3 = vector.multi_reduction <add>, %2, %cst [1] : vector<8x64xf32> to vector<8xf32>
    %4 = vector.shape_cast %3 : vector<8xf32> to vector<8x1xf32>
    %cst_3 = arith.constant 6.400000e+01 : f32
    %5 = vector.broadcast %cst_3 : f32 to vector<8x1xf32>
    %6 = arith.divf %4, %5 : vector<8x1xf32>
    %7 = vector.broadcast %1 : vector<1x64xf32> to vector<8x64xf32>
    %8 = arith.mulf %7, %0 : vector<8x64xf32>
    %cst_4 = arith.constant 9.99999974E-6 : f32
    %9 = vector.broadcast %cst_4 : f32 to vector<8x1xf32>
    %10 = arith.addf %6, %9 : vector<8x1xf32>
    %11 = math.rsqrt %10 : vector<8x1xf32>
    %12 = vector.broadcast %11 : vector<8x1xf32> to vector<8x64xf32>
    %13 = arith.mulf %8, %12 : vector<8x64xf32>
    %14 = arith.truncf %13 : vector<8x64xf32> to vector<8x64xbf16>
    %c0_5 = arith.constant 0 : index
    %c0_6 = arith.constant 0 : index
    %15 = vector.load %arg4[%c0_5, %c0_6] : memref<64x128xbf16, #tpu.memory_space<vmem>>, vector<64x128xbf16>
    %cst_7 = arith.constant dense<0.000000e+00> : vector<8x128xf32>
    %16 = tpu.matmul %14, %15, %cst_7 {dimension_numbers = #tpu.dot_dimension_numbers<[1], [0], [0], [1], [0, 0, 1, 1], [], []>} : vector<8x64xbf16>, vector<64x128xbf16>, vector<8x128xf32> -> vector<8x128xf32>
    %17 = vector.extract_strided_slice %16 {offsets = [0, 0], sizes = [8, 64], strides = [1, 1]} : vector<8x128xf32> to vector<8x64xf32>
    %18 = vector.extract_strided_slice %16 {offsets = [0, 64], sizes = [8, 32], strides = [1, 1]} : vector<8x128xf32> to vector<8x32xf32>
    %19 = vector.extract_strided_slice %16 {offsets = [0, 96], sizes = [8, 32], strides = [1, 1]} : vector<8x128xf32> to vector<8x32xf32>
    %c0_8 = arith.constant 0 : index
    %c0_9 = arith.constant 0 : index
    %20 = vector.load %arg7[%c0_8, %c0_9] : memref<8x16xf32, #tpu.memory_space<vmem>>, vector<8x16xf32>
    %c0_10 = arith.constant 0 : index
    %c0_11 = arith.constant 0 : index
    %21 = vector.load %arg8[%c0_10, %c0_11] : memref<8x16xf32, #tpu.memory_space<vmem>>, vector<8x16xf32>
    %c0_12 = arith.constant 0 : index
    %c0_13 = arith.constant 0 : index
    %22 = vector.load %arg6[%c0_12, %c0_13] : memref<16x16xf32, #tpu.memory_space<vmem>>, vector<16x16xf32>
    %23 = vector.extract_strided_slice %18 {offsets = [0, 0], sizes = [8, 16], strides = [1, 1]} : vector<8x32xf32> to vector<8x16xf32>
    %24 = vector.extract_strided_slice %19 {offsets = [0, 0], sizes = [8, 16], strides = [1, 1]} : vector<8x32xf32> to vector<8x16xf32>
    %25 = arith.mulf %23, %20 : vector<8x16xf32>
    %cst_14 = arith.constant dense<0.000000e+00> : vector<8x16xf32>
    %26 = tpu.matmul %23, %22, %cst_14 {dimension_numbers = #tpu.dot_dimension_numbers<[1], [0], [0], [1], [0, 0, 1, 1], [], []>} : vector<8x16xf32>, vector<16x16xf32>, vector<8x16xf32> -> vector<8x16xf32>
    %27 = arith.mulf %26, %21 : vector<8x16xf32>
    %28 = arith.addf %25, %27 : vector<8x16xf32>
    %29 = arith.truncf %28 : vector<8x16xf32> to vector<8x16xbf16>
    %30 = arith.truncf %24 : vector<8x16xf32> to vector<8x16xbf16>
    %31 = vector.extract_strided_slice %17 {offsets = [0, 0], sizes = [8, 16], strides = [1, 1]} : vector<8x64xf32> to vector<8x16xf32>
    %32 = arith.mulf %31, %20 : vector<8x16xf32>
    %cst_15 = arith.constant dense<0.000000e+00> : vector<8x16xf32>
    %33 = tpu.matmul %31, %22, %cst_15 {dimension_numbers = #tpu.dot_dimension_numbers<[1], [0], [0], [1], [0, 0, 1, 1], [], []>} : vector<8x16xf32>, vector<16x16xf32>, vector<8x16xf32> -> vector<8x16xf32>
    %34 = arith.mulf %33, %21 : vector<8x16xf32>
    %35 = arith.addf %32, %34 : vector<8x16xf32>
    %36 = arith.truncf %35 : vector<8x16xf32> to vector<8x16xbf16>
    %cst_16 = arith.constant dense<0.000000e+00> : vector<8x8xf32>
    %37 = tpu.matmul %36, %29, %cst_16 {dimension_numbers = #tpu.dot_dimension_numbers<[1], [1], [0], [0], [0, 0, 1, 0], [], []>} : vector<8x16xbf16>, vector<8x16xbf16>, vector<8x8xf32> -> vector<8x8xf32>
    %cst_17 = arith.constant 2.500000e-01 : f32
    %38 = vector.broadcast %cst_17 : f32 to vector<8x8xf32>
    %39 = arith.mulf %37, %38 : vector<8x8xf32>
    %cst_18 = arith.constant dense<0xFF800000> : vector<8xf32>
    %40 = vector.multi_reduction <maximumf>, %39, %cst_18 [1] : vector<8x8xf32> to vector<8xf32>
    %41 = vector.shape_cast %40 : vector<8xf32> to vector<8x1xf32>
    %42 = vector.broadcast %41 : vector<8x1xf32> to vector<8x8xf32>
    %43 = arith.subf %39, %42 : vector<8x8xf32>
    %44 = math.exp %43 : vector<8x8xf32>
    %cst_19 = arith.constant dense<0.000000e+00> : vector<8xf32>
    %45 = vector.multi_reduction <add>, %44, %cst_19 [1] : vector<8x8xf32> to vector<8xf32>
    %46 = vector.shape_cast %45 : vector<8xf32> to vector<8x1xf32>
    %47 = vector.broadcast %46 : vector<8x1xf32> to vector<8x8xf32>
    %48 = arith.divf %44, %47 : vector<8x8xf32>
    %49 = arith.truncf %48 : vector<8x8xf32> to vector<8x8xbf16>
    %cst_20 = arith.constant dense<0.000000e+00> : vector<8x16xf32>
    %50 = tpu.matmul %49, %30, %cst_20 {dimension_numbers = #tpu.dot_dimension_numbers<[1], [0], [0], [1], [0, 0, 1, 1], [], []>} : vector<8x8xbf16>, vector<8x16xbf16>, vector<8x16xf32> -> vector<8x16xf32>
    %c0_21 = arith.constant 0 : index
    %c0_22 = arith.constant 0 : index
    %51 = vector.load %arg13[%c0_21, %c0_22] : memref<8x64xf32, #tpu.memory_space<vmem>>, vector<8x16xf32>
    tpu.vector_store %arg13[%c0_21, %c0_22], %50 {strides = array<i32>} : memref<8x64xf32, #tpu.memory_space<vmem>>, vector<8x16xf32>,
    %52 = vector.extract_strided_slice %17 {offsets = [0, 16], sizes = [8, 16], strides = [1, 1]} : vector<8x64xf32> to vector<8x16xf32>
    %53 = arith.mulf %52, %20 : vector<8x16xf32>
    %cst_23 = arith.constant dense<0.000000e+00> : vector<8x16xf32>
    %54 = tpu.matmul %52, %22, %cst_23 {dimension_numbers = #tpu.dot_dimension_numbers<[1], [0], [0], [1], [0, 0, 1, 1], [], []>} : vector<8x16xf32>, vector<16x16xf32>, vector<8x16xf32> -> vector<8x16xf32>
    %55 = arith.mulf %54, %21 : vector<8x16xf32>
    %56 = arith.addf %53, %55 : vector<8x16xf32>
    %57 = arith.truncf %56 : vector<8x16xf32> to vector<8x16xbf16>
    %cst_24 = arith.constant dense<0.000000e+00> : vector<8x8xf32>
    %58 = tpu.matmul %57, %29, %cst_24 {dimension_numbers = #tpu.dot_dimension_numbers<[1], [1], [0], [0], [0, 0, 1, 0], [], []>} : vector<8x16xbf16>, vector<8x16xbf16>, vector<8x8xf32> -> vector<8x8xf32>
    %cst_25 = arith.constant 2.500000e-01 : f32
    %59 = vector.broadcast %cst_25 : f32 to vector<8x8xf32>
    %60 = arith.mulf %58, %59 : vector<8x8xf32>
    %cst_26 = arith.constant dense<0xFF800000> : vector<8xf32>
    %61 = vector.multi_reduction <maximumf>, %60, %cst_26 [1] : vector<8x8xf32> to vector<8xf32>
    %62 = vector.shape_cast %61 : vector<8xf32> to vector<8x1xf32>
    %63 = vector.broadcast %62 : vector<8x1xf32> to vector<8x8xf32>
    %64 = arith.subf %60, %63 : vector<8x8xf32>
    %65 = math.exp %64 : vector<8x8xf32>
    %cst_27 = arith.constant dense<0.000000e+00> : vector<8xf32>
    %66 = vector.multi_reduction <add>, %65, %cst_27 [1] : vector<8x8xf32> to vector<8xf32>
    %67 = vector.shape_cast %66 : vector<8xf32> to vector<8x1xf32>
    %68 = vector.broadcast %67 : vector<8x1xf32> to vector<8x8xf32>
    %69 = arith.divf %65, %68 : vector<8x8xf32>
    %70 = arith.truncf %69 : vector<8x8xf32> to vector<8x8xbf16>
    %cst_28 = arith.constant dense<0.000000e+00> : vector<8x16xf32>
    %71 = tpu.matmul %70, %30, %cst_28 {dimension_numbers = #tpu.dot_dimension_numbers<[1], [0], [0], [1], [0, 0, 1, 1], [], []>} : vector<8x8xbf16>, vector<8x16xbf16>, vector<8x16xf32> -> vector<8x16xf32>
    %c0_29 = arith.constant 0 : index
    %c16 = arith.constant 16 : index
    %72 = vector.load %arg13[%c0_29, %c16] : memref<8x64xf32, #tpu.memory_space<vmem>>, vector<8x16xf32>
    tpu.vector_store %arg13[%c0_29, %c16], %71 {strides = array<i32>} : memref<8x64xf32, #tpu.memory_space<vmem>>, vector<8x16xf32>,
    %73 = vector.extract_strided_slice %18 {offsets = [0, 16], sizes = [8, 16], strides = [1, 1]} : vector<8x32xf32> to vector<8x16xf32>
    %74 = vector.extract_strided_slice %19 {offsets = [0, 16], sizes = [8, 16], strides = [1, 1]} : vector<8x32xf32> to vector<8x16xf32>
    %75 = arith.mulf %73, %20 : vector<8x16xf32>
    %cst_30 = arith.constant dense<0.000000e+00> : vector<8x16xf32>
    %76 = tpu.matmul %73, %22, %cst_30 {dimension_numbers = #tpu.dot_dimension_numbers<[1], [0], [0], [1], [0, 0, 1, 1], [], []>} : vector<8x16xf32>, vector<16x16xf32>, vector<8x16xf32> -> vector<8x16xf32>
    %77 = arith.mulf %76, %21 : vector<8x16xf32>
    %78 = arith.addf %75, %77 : vector<8x16xf32>
    %79 = arith.truncf %78 : vector<8x16xf32> to vector<8x16xbf16>
    %80 = arith.truncf %74 : vector<8x16xf32> to vector<8x16xbf16>
    %81 = vector.extract_strided_slice %17 {offsets = [0, 32], sizes = [8, 16], strides = [1, 1]} : vector<8x64xf32> to vector<8x16xf32>
    %82 = arith.mulf %81, %20 : vector<8x16xf32>
    %cst_31 = arith.constant dense<0.000000e+00> : vector<8x16xf32>
    %83 = tpu.matmul %81, %22, %cst_31 {dimension_numbers = #tpu.dot_dimension_numbers<[1], [0], [0], [1], [0, 0, 1, 1], [], []>} : vector<8x16xf32>, vector<16x16xf32>, vector<8x16xf32> -> vector<8x16xf32>
    %84 = arith.mulf %83, %21 : vector<8x16xf32>
    %85 = arith.addf %82, %84 : vector<8x16xf32>
    %86 = arith.truncf %85 : vector<8x16xf32> to vector<8x16xbf16>
    %cst_32 = arith.constant dense<0.000000e+00> : vector<8x8xf32>
    %87 = tpu.matmul %86, %79, %cst_32 {dimension_numbers = #tpu.dot_dimension_numbers<[1], [1], [0], [0], [0, 0, 1, 0], [], []>} : vector<8x16xbf16>, vector<8x16xbf16>, vector<8x8xf32> -> vector<8x8xf32>
    %cst_33 = arith.constant 2.500000e-01 : f32
    %88 = vector.broadcast %cst_33 : f32 to vector<8x8xf32>
    %89 = arith.mulf %87, %88 : vector<8x8xf32>
    %cst_34 = arith.constant dense<0xFF800000> : vector<8xf32>
    %90 = vector.multi_reduction <maximumf>, %89, %cst_34 [1] : vector<8x8xf32> to vector<8xf32>
    %91 = vector.shape_cast %90 : vector<8xf32> to vector<8x1xf32>
    %92 = vector.broadcast %91 : vector<8x1xf32> to vector<8x8xf32>
    %93 = arith.subf %89, %92 : vector<8x8xf32>
    %94 = math.exp %93 : vector<8x8xf32>
    %cst_35 = arith.constant dense<0.000000e+00> : vector<8xf32>
    %95 = vector.multi_reduction <add>, %94, %cst_35 [1] : vector<8x8xf32> to vector<8xf32>
    %96 = vector.shape_cast %95 : vector<8xf32> to vector<8x1xf32>
    %97 = vector.broadcast %96 : vector<8x1xf32> to vector<8x8xf32>
    %98 = arith.divf %94, %97 : vector<8x8xf32>
    %99 = arith.truncf %98 : vector<8x8xf32> to vector<8x8xbf16>
    %cst_36 = arith.constant dense<0.000000e+00> : vector<8x16xf32>
    %100 = tpu.matmul %99, %80, %cst_36 {dimension_numbers = #tpu.dot_dimension_numbers<[1], [0], [0], [1], [0, 0, 1, 1], [], []>} : vector<8x8xbf16>, vector<8x16xbf16>, vector<8x16xf32> -> vector<8x16xf32>
    %c0_37 = arith.constant 0 : index
    %c32 = arith.constant 32 : index
    %101 = vector.load %arg13[%c0_37, %c32] : memref<8x64xf32, #tpu.memory_space<vmem>>, vector<8x16xf32>
    tpu.vector_store %arg13[%c0_37, %c32], %100 {strides = array<i32>} : memref<8x64xf32, #tpu.memory_space<vmem>>, vector<8x16xf32>,
    %102 = vector.extract_strided_slice %17 {offsets = [0, 48], sizes = [8, 16], strides = [1, 1]} : vector<8x64xf32> to vector<8x16xf32>
    %103 = arith.mulf %102, %20 : vector<8x16xf32>
    %cst_38 = arith.constant dense<0.000000e+00> : vector<8x16xf32>
    %104 = tpu.matmul %102, %22, %cst_38 {dimension_numbers = #tpu.dot_dimension_numbers<[1], [0], [0], [1], [0, 0, 1, 1], [], []>} : vector<8x16xf32>, vector<16x16xf32>, vector<8x16xf32> -> vector<8x16xf32>
    %105 = arith.mulf %104, %21 : vector<8x16xf32>
    %106 = arith.addf %103, %105 : vector<8x16xf32>
    %107 = arith.truncf %106 : vector<8x16xf32> to vector<8x16xbf16>
    %cst_39 = arith.constant dense<0.000000e+00> : vector<8x8xf32>
    %108 = tpu.matmul %107, %79, %cst_39 {dimension_numbers = #tpu.dot_dimension_numbers<[1], [1], [0], [0], [0, 0, 1, 0], [], []>} : vector<8x16xbf16>, vector<8x16xbf16>, vector<8x8xf32> -> vector<8x8xf32>
    %cst_40 = arith.constant 2.500000e-01 : f32
    %109 = vector.broadcast %cst_40 : f32 to vector<8x8xf32>
    %110 = arith.mulf %108, %109 : vector<8x8xf32>
    %cst_41 = arith.constant dense<0xFF800000> : vector<8xf32>
    %111 = vector.multi_reduction <maximumf>, %110, %cst_41 [1] : vector<8x8xf32> to vector<8xf32>
    %112 = vector.shape_cast %111 : vector<8xf32> to vector<8x1xf32>
    %113 = vector.broadcast %112 : vector<8x1xf32> to vector<8x8xf32>
    %114 = arith.subf %110, %113 : vector<8x8xf32>
    %115 = math.exp %114 : vector<8x8xf32>
    %cst_42 = arith.constant dense<0.000000e+00> : vector<8xf32>
    %116 = vector.multi_reduction <add>, %115, %cst_42 [1] : vector<8x8xf32> to vector<8xf32>
    %117 = vector.shape_cast %116 : vector<8xf32> to vector<8x1xf32>
    %118 = vector.broadcast %117 : vector<8x1xf32> to vector<8x8xf32>
    %119 = arith.divf %115, %118 : vector<8x8xf32>
    %120 = arith.truncf %119 : vector<8x8xf32> to vector<8x8xbf16>
    %cst_43 = arith.constant dense<0.000000e+00> : vector<8x16xf32>
    %121 = tpu.matmul %120, %80, %cst_43 {dimension_numbers = #tpu.dot_dimension_numbers<[1], [0], [0], [1], [0, 0, 1, 1], [], []>} : vector<8x8xbf16>, vector<8x16xbf16>, vector<8x16xf32> -> vector<8x16xf32>
    %c0_44 = arith.constant 0 : index
    %c48 = arith.constant 48 : index
    %122 = vector.load %arg13[%c0_44, %c48] : memref<8x64xf32, #tpu.memory_space<vmem>>, vector<8x16xf32>
    tpu.vector_store %arg13[%c0_44, %c48], %121 {strides = array<i32>} : memref<8x64xf32, #tpu.memory_space<vmem>>, vector<8x16xf32>,
    %c0_45 = arith.constant 0 : index
    %c0_46 = arith.constant 0 : index
    %123 = vector.load %arg13[%c0_45, %c0_46] : memref<8x64xf32, #tpu.memory_space<vmem>>, vector<8x64xf32>
    %124 = arith.truncf %123 : vector<8x64xf32> to vector<8x64xbf16>
    %c0_47 = arith.constant 0 : index
    %c0_48 = arith.constant 0 : index
    %125 = vector.load %arg5[%c0_47, %c0_48] : memref<64x64xbf16, #tpu.memory_space<vmem>>, vector<64x64xbf16>
    %cst_49 = arith.constant dense<0.000000e+00> : vector<8x64xf32>
    %126 = tpu.matmul %124, %125, %cst_49 {dimension_numbers = #tpu.dot_dimension_numbers<[1], [0], [0], [1], [0, 0, 1, 1], [], []>} : vector<8x64xbf16>, vector<64x64xbf16>, vector<8x64xf32> -> vector<8x64xf32>
    %127 = arith.addf %0, %126 : vector<8x64xf32>
    %c0_50 = arith.constant 0 : index
    %c0_51 = arith.constant 0 : index
    %128 = vector.load %arg3[%c0_50, %c0_51] : memref<1x64xf32, #tpu.memory_space<vmem>>, vector<1x64xf32>
    %129 = arith.mulf %127, %127 : vector<8x64xf32>
    %cst_52 = arith.constant dense<0.000000e+00> : vector<8xf32>
    %130 = vector.multi_reduction <add>, %129, %cst_52 [1] : vector<8x64xf32> to vector<8xf32>
    %131 = vector.shape_cast %130 : vector<8xf32> to vector<8x1xf32>
    %cst_53 = arith.constant 6.400000e+01 : f32
    %132 = vector.broadcast %cst_53 : f32 to vector<8x1xf32>
    %133 = arith.divf %131, %132 : vector<8x1xf32>
    %134 = vector.broadcast %128 : vector<1x64xf32> to vector<8x64xf32>
    %135 = arith.mulf %134, %127 : vector<8x64xf32>
    %cst_54 = arith.constant 9.99999974E-6 : f32
    %136 = vector.broadcast %cst_54 : f32 to vector<8x1xf32>
    %137 = arith.addf %133, %136 : vector<8x1xf32>
    %138 = math.rsqrt %137 : vector<8x1xf32>
    %139 = vector.broadcast %138 : vector<8x1xf32> to vector<8x64xf32>
    %140 = arith.mulf %135, %139 : vector<8x64xf32>
    %141 = arith.truncf %140 : vector<8x64xf32> to vector<8x64xbf16>
    %c0_55 = arith.constant 0 : index
    %c0_56 = arith.constant 0 : index
    %142 = vector.load %arg9[%c0_55, %c0_56] : memref<64x256xbf16, #tpu.memory_space<vmem>>, vector<64x256xbf16>
    %cst_57 = arith.constant dense<0.000000e+00> : vector<8x256xf32>
    %143 = tpu.matmul %141, %142, %cst_57 {dimension_numbers = #tpu.dot_dimension_numbers<[1], [0], [0], [1], [0, 0, 1, 1], [], []>} : vector<8x64xbf16>, vector<64x256xbf16>, vector<8x256xf32> -> vector<8x256xf32>
    %144 = vector.extract_strided_slice %143 {offsets = [0, 0], sizes = [8, 128], strides = [1, 1]} : vector<8x256xf32> to vector<8x128xf32>
    %145 = vector.extract_strided_slice %143 {offsets = [0, 128], sizes = [8, 128], strides = [1, 1]} : vector<8x256xf32> to vector<8x128xf32>
    %146 = arith.negf %144 : vector<8x128xf32>
    %147 = math.exp %146 : vector<8x128xf32>
    %cst_58 = arith.constant 1.000000e+00 : f32
    %148 = vector.broadcast %cst_58 : f32 to vector<8x128xf32>
    %149 = arith.addf %148, %147 : vector<8x128xf32>
    %150 = arith.divf %148, %149 : vector<8x128xf32>
    %151 = arith.mulf %144, %150 : vector<8x128xf32>
    %152 = arith.mulf %151, %145 : vector<8x128xf32>
    %153 = arith.truncf %152 : vector<8x128xf32> to vector<8x128xbf16>
    %c0_59 = arith.constant 0 : index
    %c0_60 = arith.constant 0 : index
    %154 = vector.load %arg10[%c0_59, %c0_60] : memref<128x64xbf16, #tpu.memory_space<vmem>>, vector<128x64xbf16>
    %cst_61 = arith.constant dense<0.000000e+00> : vector<8x64xf32>
    %155 = tpu.matmul %153, %154, %cst_61 {dimension_numbers = #tpu.dot_dimension_numbers<[1], [0], [0], [1], [0, 0, 1, 1], [], []>} : vector<8x128xbf16>, vector<128x64xbf16>, vector<8x64xf32> -> vector<8x64xf32>
    %156 = arith.addf %127, %155 : vector<8x64xf32>
    %c0_62 = arith.constant 0 : index
    %c0_63 = arith.constant 0 : index
    %157 = vector.load %arg11[%c0_62, %c0_63] : memref<1x64xf32, #tpu.memory_space<vmem>>, vector<1x64xf32>
    %158 = arith.mulf %156, %156 : vector<8x64xf32>
    %cst_64 = arith.constant dense<0.000000e+00> : vector<8xf32>
    %159 = vector.multi_reduction <add>, %158, %cst_64 [1] : vector<8x64xf32> to vector<8xf32>
    %160 = vector.shape_cast %159 : vector<8xf32> to vector<8x1xf32>
    %cst_65 = arith.constant 6.400000e+01 : f32
    %161 = vector.broadcast %cst_65 : f32 to vector<8x1xf32>
    %162 = arith.divf %160, %161 : vector<8x1xf32>
    %163 = vector.broadcast %157 : vector<1x64xf32> to vector<8x64xf32>
    %164 = arith.mulf %163, %156 : vector<8x64xf32>
    %cst_66 = arith.constant 9.99999974E-6 : f32
    %165 = vector.broadcast %cst_66 : f32 to vector<8x1xf32>
    %166 = arith.addf %162, %165 : vector<8x1xf32>
    %167 = math.rsqrt %166 : vector<8x1xf32>
    %168 = vector.broadcast %167 : vector<8x1xf32> to vector<8x64xf32>
    %169 = arith.mulf %164, %168 : vector<8x64xf32>
    %c0_67 = arith.constant 0 : index
    %c0_68 = arith.constant 0 : index
    %170 = vector.load %arg12[%c0_67, %c0_68] : memref<8x64xf32, #tpu.memory_space<vmem>>, vector<8x64xf32>
    tpu.vector_store %arg12[%c0_67, %c0_68], %169 {strides = array<i32>} : memref<8x64xf32, #tpu.memory_space<vmem>>, vector<8x64xf32>,
    return
  }
  func.func @transform_0(%arg0: i32) -> (i32, i32) {
    %c0_i32 = arith.constant 0 : i32
    %c0_i32_0 = arith.constant 0 : i32
    return %arg0, %c0_i32 : i32, i32
  }
  func.func @transform_1(%arg0: i32) -> (i32, i32) {
    %c0_i32 = arith.constant 0 : i32
    %c0_i32_0 = arith.constant 0 : i32
    %c0_i32_1 = arith.constant 0 : i32
    return %c0_i32, %c0_i32_0 : i32, i32
  }
  func.func @transform_2(%arg0: i32) -> (i32, i32) {
    %c0_i32 = arith.constant 0 : i32
    %c0_i32_0 = arith.constant 0 : i32
    %c0_i32_1 = arith.constant 0 : i32
    return %c0_i32, %c0_i32_0 : i32, i32
  }
  func.func @transform_3(%arg0: i32) -> (i32, i32) {
    %c0_i32 = arith.constant 0 : i32
    %c0_i32_0 = arith.constant 0 : i32
    %c0_i32_1 = arith.constant 0 : i32
    return %c0_i32, %c0_i32_0 : i32, i32
  }
  func.func @transform_4(%arg0: i32) -> (i32, i32) {
    %c0_i32 = arith.constant 0 : i32
    %c0_i32_0 = arith.constant 0 : i32
    %c0_i32_1 = arith.constant 0 : i32
    return %c0_i32, %c0_i32_0 : i32, i32
  }
  func.func @transform_5(%arg0: i32) -> (i32, i32) {
    %c0_i32 = arith.constant 0 : i32
    %c0_i32_0 = arith.constant 0 : i32
    %c0_i32_1 = arith.constant 0 : i32
    return %c0_i32, %c0_i32_0 : i32, i32
  }
  func.func @transform_6(%arg0: i32) -> (i32, i32) {
    %c0_i32 = arith.constant 0 : i32
    %c0_i32_0 = arith.constant 0 : i32
    %c0_i32_1 = arith.constant 0 : i32
    return %c0_i32, %c0_i32_0 : i32, i32
  }
  func.func @transform_7(%arg0: i32) -> (i32, i32) {
    %c0_i32 = arith.constant 0 : i32
    %c0_i32_0 = arith.constant 0 : i32
    %c0_i32_1 = arith.constant 0 : i32
    return %c0_i32, %c0_i32_0 : i32, i32
  }
  func.func @transform_8(%arg0: i32) -> (i32, i32) {
    %c0_i32 = arith.constant 0 : i32
    %c0_i32_0 = arith.constant 0 : i32
    %c0_i32_1 = arith.constant 0 : i32
    return %c0_i32, %c0_i32_0 : i32, i32
  }
  func.func @transform_9(%arg0: i32) -> (i32, i32) {
    %c0_i32 = arith.constant 0 : i32
    %c0_i32_0 = arith.constant 0 : i32
    %c0_i32_1 = arith.constant 0 : i32
    return %c0_i32, %c0_i32_0 : i32, i32
  }
  func.func @transform_10(%arg0: i32) -> (i32, i32) {
    %c0_i32 = arith.constant 0 : i32
    %c0_i32_0 = arith.constant 0 : i32
    %c0_i32_1 = arith.constant 0 : i32
    return %c0_i32, %c0_i32_0 : i32, i32
  }
  func.func @transform_11(%arg0: i32) -> (i32, i32) {
    %c0_i32 = arith.constant 0 : i32
    %c0_i32_0 = arith.constant 0 : i32
    return %arg0, %c0_i32 : i32, i32
  }
}

module attributes {stable_mosaic.version = 11 : i64} {
  func.func @kernel(%arg0: i32, %arg1: memref<8x64xf32, #tpu.memory_space<vmem>>, %arg2: memref<1x64xf32, #tpu.memory_space<vmem>>, %arg3: memref<1x64xf32, #tpu.memory_space<vmem>>, %arg4: memref<64x128xbf16, #tpu.memory_space<vmem>>, %arg5: memref<64x64xbf16, #tpu.memory_space<vmem>>, %arg6: memref<16x16xf32, #tpu.memory_space<vmem>>, %arg7: memref<8x16xf32, #tpu.memory_space<vmem>>, %arg8: memref<8x16xf32, #tpu.memory_space<vmem>>, %arg9: memref<64x4xbf16, #tpu.memory_space<vmem>>, %arg10: memref<4x64x256xbf16, #tpu.memory_space<vmem>>, %arg11: memref<4x128x64xbf16, #tpu.memory_space<vmem>>, %arg12: memref<8x64xf32, #tpu.memory_space<vmem>>, %arg13: memref<8x64xf32, #tpu.memory_space<vmem>>) attributes {dimension_semantics = [#tpu.dimension_semantics<parallel>], iteration_bounds = array<i64: 2>, scalar_prefetch = 0 : i64, scratch_operands = 1 : i64, tpu.core_type = #tpu.core_type<tc>, window_params = [{transform_indices = @transform_0, window_bounds = array<i64: 8, 64>}, {pipeline_mode = #tpu.pipeline_mode<synchronous>, transform_indices = @transform_1, window_bounds = array<i64: 1, 64>}, {pipeline_mode = #tpu.pipeline_mode<synchronous>, transform_indices = @transform_2, window_bounds = array<i64: 1, 64>}, {pipeline_mode = #tpu.pipeline_mode<synchronous>, transform_indices = @transform_3, window_bounds = array<i64: 64, 128>}, {pipeline_mode = #tpu.pipeline_mode<synchronous>, transform_indices = @transform_4, window_bounds = array<i64: 64, 64>}, {pipeline_mode = #tpu.pipeline_mode<synchronous>, transform_indices = @transform_5, window_bounds = array<i64: 16, 16>}, {pipeline_mode = #tpu.pipeline_mode<synchronous>, transform_indices = @transform_6, window_bounds = array<i64: 8, 16>}, {pipeline_mode = #tpu.pipeline_mode<synchronous>, transform_indices = @transform_7, window_bounds = array<i64: 8, 16>}, {pipeline_mode = #tpu.pipeline_mode<synchronous>, transform_indices = @transform_8, window_bounds = array<i64: 64, 4>}, {pipeline_mode = #tpu.pipeline_mode<synchronous>, transform_indices = @transform_9, window_bounds = array<i64: 4, 64, 256>}, {pipeline_mode = #tpu.pipeline_mode<synchronous>, transform_indices = @transform_10, window_bounds = array<i64: 4, 128, 64>}, {transform_indices = @transform_11, window_bounds = array<i64: 8, 64>}]} {
    %c0 = arith.constant 0 : index
    %c0_0 = arith.constant 0 : index
    %0 = vector.load %arg1[%c0, %c0_0] : memref<8x64xf32, #tpu.memory_space<vmem>>, vector<8x64xf32>
    %c0_1 = arith.constant 0 : index
    %c0_2 = arith.constant 0 : index
    %1 = vector.load %arg2[%c0_1, %c0_2] : memref<1x64xf32, #tpu.memory_space<vmem>>, vector<1x64xf32>
    %2 = arith.mulf %0, %0 : vector<8x64xf32>
    %cst = arith.constant dense<0.000000e+00> : vector<8xf32>
    %3 = vector.multi_reduction <add>, %2, %cst [1] : vector<8x64xf32> to vector<8xf32>
    %4 = vector.shape_cast %3 : vector<8xf32> to vector<8x1xf32>
    %cst_3 = arith.constant 6.400000e+01 : f32
    %5 = vector.broadcast %cst_3 : f32 to vector<8x1xf32>
    %6 = arith.divf %4, %5 : vector<8x1xf32>
    %7 = vector.broadcast %1 : vector<1x64xf32> to vector<8x64xf32>
    %8 = arith.mulf %7, %0 : vector<8x64xf32>
    %cst_4 = arith.constant 9.99999974E-6 : f32
    %9 = vector.broadcast %cst_4 : f32 to vector<8x1xf32>
    %10 = arith.addf %6, %9 : vector<8x1xf32>
    %11 = math.rsqrt %10 : vector<8x1xf32>
    %12 = vector.broadcast %11 : vector<8x1xf32> to vector<8x64xf32>
    %13 = arith.mulf %8, %12 : vector<8x64xf32>
    %14 = arith.truncf %13 : vector<8x64xf32> to vector<8x64xbf16>
    %c0_5 = arith.constant 0 : index
    %c0_6 = arith.constant 0 : index
    %15 = vector.load %arg4[%c0_5, %c0_6] : memref<64x128xbf16, #tpu.memory_space<vmem>>, vector<64x128xbf16>
    %cst_7 = arith.constant dense<0.000000e+00> : vector<8x128xf32>
    %16 = tpu.matmul %14, %15, %cst_7 {dimension_numbers = #tpu.dot_dimension_numbers<[1], [0], [0], [1], [0, 0, 1, 1], [], []>} : vector<8x64xbf16>, vector<64x128xbf16>, vector<8x128xf32> -> vector<8x128xf32>
    %17 = vector.extract_strided_slice %16 {offsets = [0, 0], sizes = [8, 64], strides = [1, 1]} : vector<8x128xf32> to vector<8x64xf32>
    %18 = vector.extract_strided_slice %16 {offsets = [0, 64], sizes = [8, 32], strides = [1, 1]} : vector<8x128xf32> to vector<8x32xf32>
    %19 = vector.extract_strided_slice %16 {offsets = [0, 96], sizes = [8, 32], strides = [1, 1]} : vector<8x128xf32> to vector<8x32xf32>
    %c0_8 = arith.constant 0 : index
    %c0_9 = arith.constant 0 : index
    %20 = vector.load %arg7[%c0_8, %c0_9] : memref<8x16xf32, #tpu.memory_space<vmem>>, vector<8x16xf32>
    %c0_10 = arith.constant 0 : index
    %c0_11 = arith.constant 0 : index
    %21 = vector.load %arg8[%c0_10, %c0_11] : memref<8x16xf32, #tpu.memory_space<vmem>>, vector<8x16xf32>
    %c0_12 = arith.constant 0 : index
    %c0_13 = arith.constant 0 : index
    %22 = vector.load %arg6[%c0_12, %c0_13] : memref<16x16xf32, #tpu.memory_space<vmem>>, vector<16x16xf32>
    %23 = vector.extract_strided_slice %18 {offsets = [0, 0], sizes = [8, 16], strides = [1, 1]} : vector<8x32xf32> to vector<8x16xf32>
    %24 = vector.extract_strided_slice %19 {offsets = [0, 0], sizes = [8, 16], strides = [1, 1]} : vector<8x32xf32> to vector<8x16xf32>
    %25 = arith.mulf %23, %20 : vector<8x16xf32>
    %cst_14 = arith.constant dense<0.000000e+00> : vector<8x16xf32>
    %26 = tpu.matmul %23, %22, %cst_14 {dimension_numbers = #tpu.dot_dimension_numbers<[1], [0], [0], [1], [0, 0, 1, 1], [], []>} : vector<8x16xf32>, vector<16x16xf32>, vector<8x16xf32> -> vector<8x16xf32>
    %27 = arith.mulf %26, %21 : vector<8x16xf32>
    %28 = arith.addf %25, %27 : vector<8x16xf32>
    %29 = arith.truncf %28 : vector<8x16xf32> to vector<8x16xbf16>
    %30 = arith.truncf %24 : vector<8x16xf32> to vector<8x16xbf16>
    %31 = vector.extract_strided_slice %17 {offsets = [0, 0], sizes = [8, 16], strides = [1, 1]} : vector<8x64xf32> to vector<8x16xf32>
    %32 = arith.mulf %31, %20 : vector<8x16xf32>
    %cst_15 = arith.constant dense<0.000000e+00> : vector<8x16xf32>
    %33 = tpu.matmul %31, %22, %cst_15 {dimension_numbers = #tpu.dot_dimension_numbers<[1], [0], [0], [1], [0, 0, 1, 1], [], []>} : vector<8x16xf32>, vector<16x16xf32>, vector<8x16xf32> -> vector<8x16xf32>
    %34 = arith.mulf %33, %21 : vector<8x16xf32>
    %35 = arith.addf %32, %34 : vector<8x16xf32>
    %36 = arith.truncf %35 : vector<8x16xf32> to vector<8x16xbf16>
    %cst_16 = arith.constant dense<0.000000e+00> : vector<8x8xf32>
    %37 = tpu.matmul %36, %29, %cst_16 {dimension_numbers = #tpu.dot_dimension_numbers<[1], [1], [0], [0], [0, 0, 1, 0], [], []>} : vector<8x16xbf16>, vector<8x16xbf16>, vector<8x8xf32> -> vector<8x8xf32>
    %cst_17 = arith.constant 2.500000e-01 : f32
    %38 = vector.broadcast %cst_17 : f32 to vector<8x8xf32>
    %39 = arith.mulf %37, %38 : vector<8x8xf32>
    %cst_18 = arith.constant dense<0xFF800000> : vector<8xf32>
    %40 = vector.multi_reduction <maximumf>, %39, %cst_18 [1] : vector<8x8xf32> to vector<8xf32>
    %41 = vector.shape_cast %40 : vector<8xf32> to vector<8x1xf32>
    %42 = vector.broadcast %41 : vector<8x1xf32> to vector<8x8xf32>
    %43 = arith.subf %39, %42 : vector<8x8xf32>
    %44 = math.exp %43 : vector<8x8xf32>
    %cst_19 = arith.constant dense<0.000000e+00> : vector<8xf32>
    %45 = vector.multi_reduction <add>, %44, %cst_19 [1] : vector<8x8xf32> to vector<8xf32>
    %46 = vector.shape_cast %45 : vector<8xf32> to vector<8x1xf32>
    %47 = vector.broadcast %46 : vector<8x1xf32> to vector<8x8xf32>
    %48 = arith.divf %44, %47 : vector<8x8xf32>
    %49 = arith.truncf %48 : vector<8x8xf32> to vector<8x8xbf16>
    %cst_20 = arith.constant dense<0.000000e+00> : vector<8x16xf32>
    %50 = tpu.matmul %49, %30, %cst_20 {dimension_numbers = #tpu.dot_dimension_numbers<[1], [0], [0], [1], [0, 0, 1, 1], [], []>} : vector<8x8xbf16>, vector<8x16xbf16>, vector<8x16xf32> -> vector<8x16xf32>
    %c0_21 = arith.constant 0 : index
    %c0_22 = arith.constant 0 : index
    %51 = vector.load %arg13[%c0_21, %c0_22] : memref<8x64xf32, #tpu.memory_space<vmem>>, vector<8x16xf32>
    tpu.vector_store %arg13[%c0_21, %c0_22], %50 {strides = array<i32>} : memref<8x64xf32, #tpu.memory_space<vmem>>, vector<8x16xf32>,
    %52 = vector.extract_strided_slice %17 {offsets = [0, 16], sizes = [8, 16], strides = [1, 1]} : vector<8x64xf32> to vector<8x16xf32>
    %53 = arith.mulf %52, %20 : vector<8x16xf32>
    %cst_23 = arith.constant dense<0.000000e+00> : vector<8x16xf32>
    %54 = tpu.matmul %52, %22, %cst_23 {dimension_numbers = #tpu.dot_dimension_numbers<[1], [0], [0], [1], [0, 0, 1, 1], [], []>} : vector<8x16xf32>, vector<16x16xf32>, vector<8x16xf32> -> vector<8x16xf32>
    %55 = arith.mulf %54, %21 : vector<8x16xf32>
    %56 = arith.addf %53, %55 : vector<8x16xf32>
    %57 = arith.truncf %56 : vector<8x16xf32> to vector<8x16xbf16>
    %cst_24 = arith.constant dense<0.000000e+00> : vector<8x8xf32>
    %58 = tpu.matmul %57, %29, %cst_24 {dimension_numbers = #tpu.dot_dimension_numbers<[1], [1], [0], [0], [0, 0, 1, 0], [], []>} : vector<8x16xbf16>, vector<8x16xbf16>, vector<8x8xf32> -> vector<8x8xf32>
    %cst_25 = arith.constant 2.500000e-01 : f32
    %59 = vector.broadcast %cst_25 : f32 to vector<8x8xf32>
    %60 = arith.mulf %58, %59 : vector<8x8xf32>
    %cst_26 = arith.constant dense<0xFF800000> : vector<8xf32>
    %61 = vector.multi_reduction <maximumf>, %60, %cst_26 [1] : vector<8x8xf32> to vector<8xf32>
    %62 = vector.shape_cast %61 : vector<8xf32> to vector<8x1xf32>
    %63 = vector.broadcast %62 : vector<8x1xf32> to vector<8x8xf32>
    %64 = arith.subf %60, %63 : vector<8x8xf32>
    %65 = math.exp %64 : vector<8x8xf32>
    %cst_27 = arith.constant dense<0.000000e+00> : vector<8xf32>
    %66 = vector.multi_reduction <add>, %65, %cst_27 [1] : vector<8x8xf32> to vector<8xf32>
    %67 = vector.shape_cast %66 : vector<8xf32> to vector<8x1xf32>
    %68 = vector.broadcast %67 : vector<8x1xf32> to vector<8x8xf32>
    %69 = arith.divf %65, %68 : vector<8x8xf32>
    %70 = arith.truncf %69 : vector<8x8xf32> to vector<8x8xbf16>
    %cst_28 = arith.constant dense<0.000000e+00> : vector<8x16xf32>
    %71 = tpu.matmul %70, %30, %cst_28 {dimension_numbers = #tpu.dot_dimension_numbers<[1], [0], [0], [1], [0, 0, 1, 1], [], []>} : vector<8x8xbf16>, vector<8x16xbf16>, vector<8x16xf32> -> vector<8x16xf32>
    %c0_29 = arith.constant 0 : index
    %c16 = arith.constant 16 : index
    %72 = vector.load %arg13[%c0_29, %c16] : memref<8x64xf32, #tpu.memory_space<vmem>>, vector<8x16xf32>
    tpu.vector_store %arg13[%c0_29, %c16], %71 {strides = array<i32>} : memref<8x64xf32, #tpu.memory_space<vmem>>, vector<8x16xf32>,
    %73 = vector.extract_strided_slice %18 {offsets = [0, 16], sizes = [8, 16], strides = [1, 1]} : vector<8x32xf32> to vector<8x16xf32>
    %74 = vector.extract_strided_slice %19 {offsets = [0, 16], sizes = [8, 16], strides = [1, 1]} : vector<8x32xf32> to vector<8x16xf32>
    %75 = arith.mulf %73, %20 : vector<8x16xf32>
    %cst_30 = arith.constant dense<0.000000e+00> : vector<8x16xf32>
    %76 = tpu.matmul %73, %22, %cst_30 {dimension_numbers = #tpu.dot_dimension_numbers<[1], [0], [0], [1], [0, 0, 1, 1], [], []>} : vector<8x16xf32>, vector<16x16xf32>, vector<8x16xf32> -> vector<8x16xf32>
    %77 = arith.mulf %76, %21 : vector<8x16xf32>
    %78 = arith.addf %75, %77 : vector<8x16xf32>
    %79 = arith.truncf %78 : vector<8x16xf32> to vector<8x16xbf16>
    %80 = arith.truncf %74 : vector<8x16xf32> to vector<8x16xbf16>
    %81 = vector.extract_strided_slice %17 {offsets = [0, 32], sizes = [8, 16], strides = [1, 1]} : vector<8x64xf32> to vector<8x16xf32>
    %82 = arith.mulf %81, %20 : vector<8x16xf32>
    %cst_31 = arith.constant dense<0.000000e+00> : vector<8x16xf32>
    %83 = tpu.matmul %81, %22, %cst_31 {dimension_numbers = #tpu.dot_dimension_numbers<[1], [0], [0], [1], [0, 0, 1, 1], [], []>} : vector<8x16xf32>, vector<16x16xf32>, vector<8x16xf32> -> vector<8x16xf32>
    %84 = arith.mulf %83, %21 : vector<8x16xf32>
    %85 = arith.addf %82, %84 : vector<8x16xf32>
    %86 = arith.truncf %85 : vector<8x16xf32> to vector<8x16xbf16>
    %cst_32 = arith.constant dense<0.000000e+00> : vector<8x8xf32>
    %87 = tpu.matmul %86, %79, %cst_32 {dimension_numbers = #tpu.dot_dimension_numbers<[1], [1], [0], [0], [0, 0, 1, 0], [], []>} : vector<8x16xbf16>, vector<8x16xbf16>, vector<8x8xf32> -> vector<8x8xf32>
    %cst_33 = arith.constant 2.500000e-01 : f32
    %88 = vector.broadcast %cst_33 : f32 to vector<8x8xf32>
    %89 = arith.mulf %87, %88 : vector<8x8xf32>
    %cst_34 = arith.constant dense<0xFF800000> : vector<8xf32>
    %90 = vector.multi_reduction <maximumf>, %89, %cst_34 [1] : vector<8x8xf32> to vector<8xf32>
    %91 = vector.shape_cast %90 : vector<8xf32> to vector<8x1xf32>
    %92 = vector.broadcast %91 : vector<8x1xf32> to vector<8x8xf32>
    %93 = arith.subf %89, %92 : vector<8x8xf32>
    %94 = math.exp %93 : vector<8x8xf32>
    %cst_35 = arith.constant dense<0.000000e+00> : vector<8xf32>
    %95 = vector.multi_reduction <add>, %94, %cst_35 [1] : vector<8x8xf32> to vector<8xf32>
    %96 = vector.shape_cast %95 : vector<8xf32> to vector<8x1xf32>
    %97 = vector.broadcast %96 : vector<8x1xf32> to vector<8x8xf32>
    %98 = arith.divf %94, %97 : vector<8x8xf32>
    %99 = arith.truncf %98 : vector<8x8xf32> to vector<8x8xbf16>
    %cst_36 = arith.constant dense<0.000000e+00> : vector<8x16xf32>
    %100 = tpu.matmul %99, %80, %cst_36 {dimension_numbers = #tpu.dot_dimension_numbers<[1], [0], [0], [1], [0, 0, 1, 1], [], []>} : vector<8x8xbf16>, vector<8x16xbf16>, vector<8x16xf32> -> vector<8x16xf32>
    %c0_37 = arith.constant 0 : index
    %c32 = arith.constant 32 : index
    %101 = vector.load %arg13[%c0_37, %c32] : memref<8x64xf32, #tpu.memory_space<vmem>>, vector<8x16xf32>
    tpu.vector_store %arg13[%c0_37, %c32], %100 {strides = array<i32>} : memref<8x64xf32, #tpu.memory_space<vmem>>, vector<8x16xf32>,
    %102 = vector.extract_strided_slice %17 {offsets = [0, 48], sizes = [8, 16], strides = [1, 1]} : vector<8x64xf32> to vector<8x16xf32>
    %103 = arith.mulf %102, %20 : vector<8x16xf32>
    %cst_38 = arith.constant dense<0.000000e+00> : vector<8x16xf32>
    %104 = tpu.matmul %102, %22, %cst_38 {dimension_numbers = #tpu.dot_dimension_numbers<[1], [0], [0], [1], [0, 0, 1, 1], [], []>} : vector<8x16xf32>, vector<16x16xf32>, vector<8x16xf32> -> vector<8x16xf32>
    %105 = arith.mulf %104, %21 : vector<8x16xf32>
    %106 = arith.addf %103, %105 : vector<8x16xf32>
    %107 = arith.truncf %106 : vector<8x16xf32> to vector<8x16xbf16>
    %cst_39 = arith.constant dense<0.000000e+00> : vector<8x8xf32>
    %108 = tpu.matmul %107, %79, %cst_39 {dimension_numbers = #tpu.dot_dimension_numbers<[1], [1], [0], [0], [0, 0, 1, 0], [], []>} : vector<8x16xbf16>, vector<8x16xbf16>, vector<8x8xf32> -> vector<8x8xf32>
    %cst_40 = arith.constant 2.500000e-01 : f32
    %109 = vector.broadcast %cst_40 : f32 to vector<8x8xf32>
    %110 = arith.mulf %108, %109 : vector<8x8xf32>
    %cst_41 = arith.constant dense<0xFF800000> : vector<8xf32>
    %111 = vector.multi_reduction <maximumf>, %110, %cst_41 [1] : vector<8x8xf32> to vector<8xf32>
    %112 = vector.shape_cast %111 : vector<8xf32> to vector<8x1xf32>
    %113 = vector.broadcast %112 : vector<8x1xf32> to vector<8x8xf32>
    %114 = arith.subf %110, %113 : vector<8x8xf32>
    %115 = math.exp %114 : vector<8x8xf32>
    %cst_42 = arith.constant dense<0.000000e+00> : vector<8xf32>
    %116 = vector.multi_reduction <add>, %115, %cst_42 [1] : vector<8x8xf32> to vector<8xf32>
    %117 = vector.shape_cast %116 : vector<8xf32> to vector<8x1xf32>
    %118 = vector.broadcast %117 : vector<8x1xf32> to vector<8x8xf32>
    %119 = arith.divf %115, %118 : vector<8x8xf32>
    %120 = arith.truncf %119 : vector<8x8xf32> to vector<8x8xbf16>
    %cst_43 = arith.constant dense<0.000000e+00> : vector<8x16xf32>
    %121 = tpu.matmul %120, %80, %cst_43 {dimension_numbers = #tpu.dot_dimension_numbers<[1], [0], [0], [1], [0, 0, 1, 1], [], []>} : vector<8x8xbf16>, vector<8x16xbf16>, vector<8x16xf32> -> vector<8x16xf32>
    %c0_44 = arith.constant 0 : index
    %c48 = arith.constant 48 : index
    %122 = vector.load %arg13[%c0_44, %c48] : memref<8x64xf32, #tpu.memory_space<vmem>>, vector<8x16xf32>
    tpu.vector_store %arg13[%c0_44, %c48], %121 {strides = array<i32>} : memref<8x64xf32, #tpu.memory_space<vmem>>, vector<8x16xf32>,
    %c0_45 = arith.constant 0 : index
    %c0_46 = arith.constant 0 : index
    %123 = vector.load %arg13[%c0_45, %c0_46] : memref<8x64xf32, #tpu.memory_space<vmem>>, vector<8x64xf32>
    %124 = arith.truncf %123 : vector<8x64xf32> to vector<8x64xbf16>
    %c0_47 = arith.constant 0 : index
    %c0_48 = arith.constant 0 : index
    %125 = vector.load %arg5[%c0_47, %c0_48] : memref<64x64xbf16, #tpu.memory_space<vmem>>, vector<64x64xbf16>
    %cst_49 = arith.constant dense<0.000000e+00> : vector<8x64xf32>
    %126 = tpu.matmul %124, %125, %cst_49 {dimension_numbers = #tpu.dot_dimension_numbers<[1], [0], [0], [1], [0, 0, 1, 1], [], []>} : vector<8x64xbf16>, vector<64x64xbf16>, vector<8x64xf32> -> vector<8x64xf32>
    %127 = arith.addf %0, %126 : vector<8x64xf32>
    %c0_50 = arith.constant 0 : index
    %c0_51 = arith.constant 0 : index
    %128 = vector.load %arg3[%c0_50, %c0_51] : memref<1x64xf32, #tpu.memory_space<vmem>>, vector<1x64xf32>
    %129 = arith.mulf %127, %127 : vector<8x64xf32>
    %cst_52 = arith.constant dense<0.000000e+00> : vector<8xf32>
    %130 = vector.multi_reduction <add>, %129, %cst_52 [1] : vector<8x64xf32> to vector<8xf32>
    %131 = vector.shape_cast %130 : vector<8xf32> to vector<8x1xf32>
    %cst_53 = arith.constant 6.400000e+01 : f32
    %132 = vector.broadcast %cst_53 : f32 to vector<8x1xf32>
    %133 = arith.divf %131, %132 : vector<8x1xf32>
    %134 = vector.broadcast %128 : vector<1x64xf32> to vector<8x64xf32>
    %135 = arith.mulf %134, %127 : vector<8x64xf32>
    %cst_54 = arith.constant 9.99999974E-6 : f32
    %136 = vector.broadcast %cst_54 : f32 to vector<8x1xf32>
    %137 = arith.addf %133, %136 : vector<8x1xf32>
    %138 = math.rsqrt %137 : vector<8x1xf32>
    %139 = vector.broadcast %138 : vector<8x1xf32> to vector<8x64xf32>
    %140 = arith.mulf %135, %139 : vector<8x64xf32>
    %141 = arith.truncf %140 : vector<8x64xf32> to vector<8x64xbf16>
    %c0_55 = arith.constant 0 : index
    %c0_56 = arith.constant 0 : index
    %142 = vector.load %arg9[%c0_55, %c0_56] : memref<64x4xbf16, #tpu.memory_space<vmem>>, vector<64x4xbf16>
    %cst_57 = arith.constant dense<0.000000e+00> : vector<8x4xf32>
    %143 = tpu.matmul %141, %142, %cst_57 {dimension_numbers = #tpu.dot_dimension_numbers<[1], [0], [0], [1], [0, 0, 1, 1], [], []>} : vector<8x64xbf16>, vector<64x4xbf16>, vector<8x4xf32> -> vector<8x4xf32>
    %cst_58 = arith.constant dense<0xFF800000> : vector<8xf32>
    %144 = vector.multi_reduction <maximumf>, %143, %cst_58 [1] : vector<8x4xf32> to vector<8xf32>
    %145 = vector.shape_cast %144 : vector<8xf32> to vector<8x1xf32>
    %146 = vector.broadcast %145 : vector<8x1xf32> to vector<8x4xf32>
    %147 = arith.subf %143, %146 : vector<8x4xf32>
    %148 = math.exp %147 : vector<8x4xf32>
    %cst_59 = arith.constant 0.000000e+00 : f32
    %149 = vector.broadcast %cst_59 : f32 to vector<8x4xf32>
    %150 = vector.extract_strided_slice %143 {offsets = [0, 0], sizes = [8, 1], strides = [1, 1]} : vector<8x4xf32> to vector<8x1xf32>
    %151 = vector.broadcast %150 : vector<8x1xf32> to vector<8x4xf32>
    %152 = arith.cmpf ogt, %151, %143 : vector<8x4xf32>
    %153 = arith.extui %152 : vector<8x4xi1> to vector<8x4xi32>
    %154 = arith.sitofp %153 : vector<8x4xi32> to vector<8x4xf32>
    %155 = arith.addf %149, %154 : vector<8x4xf32>
    %156 = vector.extract_strided_slice %143 {offsets = [0, 1], sizes = [8, 1], strides = [1, 1]} : vector<8x4xf32> to vector<8x1xf32>
    %157 = vector.broadcast %156 : vector<8x1xf32> to vector<8x4xf32>
    %158 = arith.cmpf ogt, %157, %143 : vector<8x4xf32>
    %159 = arith.extui %158 : vector<8x4xi1> to vector<8x4xi32>
    %160 = arith.sitofp %159 : vector<8x4xi32> to vector<8x4xf32>
    %161 = arith.addf %155, %160 : vector<8x4xf32>
    %162 = vector.extract_strided_slice %143 {offsets = [0, 2], sizes = [8, 1], strides = [1, 1]} : vector<8x4xf32> to vector<8x1xf32>
    %163 = vector.broadcast %162 : vector<8x1xf32> to vector<8x4xf32>
    %164 = arith.cmpf ogt, %163, %143 : vector<8x4xf32>
    %165 = arith.extui %164 : vector<8x4xi1> to vector<8x4xi32>
    %166 = arith.sitofp %165 : vector<8x4xi32> to vector<8x4xf32>
    %167 = arith.addf %161, %166 : vector<8x4xf32>
    %168 = vector.extract_strided_slice %143 {offsets = [0, 3], sizes = [8, 1], strides = [1, 1]} : vector<8x4xf32> to vector<8x1xf32>
    %169 = vector.broadcast %168 : vector<8x1xf32> to vector<8x4xf32>
    %170 = arith.cmpf ogt, %169, %143 : vector<8x4xf32>
    %171 = arith.extui %170 : vector<8x4xi1> to vector<8x4xi32>
    %172 = arith.sitofp %171 : vector<8x4xi32> to vector<8x4xf32>
    %173 = arith.addf %167, %172 : vector<8x4xf32>
    %cst_60 = arith.constant 2.000000e+00 : f32
    %174 = vector.broadcast %cst_60 : f32 to vector<8x4xf32>
    %175 = arith.cmpf olt, %173, %174 : vector<8x4xf32>
    %cst_61 = arith.constant 0.000000e+00 : f32
    %176 = vector.broadcast %cst_61 : f32 to vector<8x4xf32>
    %177 = arith.select %175, %148, %176 : vector<8x4xi1>, vector<8x4xf32>
    %cst_62 = arith.constant dense<0.000000e+00> : vector<8xf32>
    %178 = vector.multi_reduction <add>, %177, %cst_62 [1] : vector<8x4xf32> to vector<8xf32>
    %179 = vector.shape_cast %178 : vector<8xf32> to vector<8x1xf32>
    %180 = vector.broadcast %179 : vector<8x1xf32> to vector<8x4xf32>
    %181 = arith.divf %177, %180 : vector<8x4xf32>
    %c0_63 = arith.constant 0 : index
    %c0_64 = arith.constant 0 : index
    %c0_65 = arith.constant 0 : index
    %182 = vector.load %arg10[%c0_63, %c0_64, %c0_65] : memref<4x64x256xbf16, #tpu.memory_space<vmem>>, vector<1x64x256xbf16>
    %183 = vector.shape_cast %182 : vector<1x64x256xbf16> to vector<64x256xbf16>
    %cst_66 = arith.constant dense<0.000000e+00> : vector<8x256xf32>
    %184 = tpu.matmul %141, %183, %cst_66 {dimension_numbers = #tpu.dot_dimension_numbers<[1], [0], [0], [1], [0, 0, 1, 1], [], []>} : vector<8x64xbf16>, vector<64x256xbf16>, vector<8x256xf32> -> vector<8x256xf32>
    %185 = vector.extract_strided_slice %184 {offsets = [0, 0], sizes = [8, 128], strides = [1, 1]} : vector<8x256xf32> to vector<8x128xf32>
    %186 = vector.extract_strided_slice %184 {offsets = [0, 128], sizes = [8, 128], strides = [1, 1]} : vector<8x256xf32> to vector<8x128xf32>
    %187 = arith.negf %185 : vector<8x128xf32>
    %188 = math.exp %187 : vector<8x128xf32>
    %cst_67 = arith.constant 1.000000e+00 : f32
    %189 = vector.broadcast %cst_67 : f32 to vector<8x128xf32>
    %190 = arith.addf %189, %188 : vector<8x128xf32>
    %191 = arith.divf %189, %190 : vector<8x128xf32>
    %192 = arith.mulf %185, %191 : vector<8x128xf32>
    %193 = arith.mulf %192, %186 : vector<8x128xf32>
    %194 = arith.truncf %193 : vector<8x128xf32> to vector<8x128xbf16>
    %c0_68 = arith.constant 0 : index
    %c0_69 = arith.constant 0 : index
    %c0_70 = arith.constant 0 : index
    %195 = vector.load %arg11[%c0_68, %c0_69, %c0_70] : memref<4x128x64xbf16, #tpu.memory_space<vmem>>, vector<1x128x64xbf16>
    %196 = vector.shape_cast %195 : vector<1x128x64xbf16> to vector<128x64xbf16>
    %cst_71 = arith.constant dense<0.000000e+00> : vector<8x64xf32>
    %197 = tpu.matmul %194, %196, %cst_71 {dimension_numbers = #tpu.dot_dimension_numbers<[1], [0], [0], [1], [0, 0, 1, 1], [], []>} : vector<8x128xbf16>, vector<128x64xbf16>, vector<8x64xf32> -> vector<8x64xf32>
    %198 = vector.extract_strided_slice %181 {offsets = [0, 0], sizes = [8, 1], strides = [1, 1]} : vector<8x4xf32> to vector<8x1xf32>
    %199 = vector.broadcast %198 : vector<8x1xf32> to vector<8x64xf32>
    %200 = arith.mulf %199, %197 : vector<8x64xf32>
    %201 = arith.addf %127, %200 : vector<8x64xf32>
    %c1 = arith.constant 1 : index
    %c0_72 = arith.constant 0 : index
    %c0_73 = arith.constant 0 : index
    %202 = vector.load %arg10[%c1, %c0_72, %c0_73] : memref<4x64x256xbf16, #tpu.memory_space<vmem>>, vector<1x64x256xbf16>
    %203 = vector.shape_cast %202 : vector<1x64x256xbf16> to vector<64x256xbf16>
    %cst_74 = arith.constant dense<0.000000e+00> : vector<8x256xf32>
    %204 = tpu.matmul %141, %203, %cst_74 {dimension_numbers = #tpu.dot_dimension_numbers<[1], [0], [0], [1], [0, 0, 1, 1], [], []>} : vector<8x64xbf16>, vector<64x256xbf16>, vector<8x256xf32> -> vector<8x256xf32>
    %205 = vector.extract_strided_slice %204 {offsets = [0, 0], sizes = [8, 128], strides = [1, 1]} : vector<8x256xf32> to vector<8x128xf32>
    %206 = vector.extract_strided_slice %204 {offsets = [0, 128], sizes = [8, 128], strides = [1, 1]} : vector<8x256xf32> to vector<8x128xf32>
    %207 = arith.negf %205 : vector<8x128xf32>
    %208 = math.exp %207 : vector<8x128xf32>
    %cst_75 = arith.constant 1.000000e+00 : f32
    %209 = vector.broadcast %cst_75 : f32 to vector<8x128xf32>
    %210 = arith.addf %209, %208 : vector<8x128xf32>
    %211 = arith.divf %209, %210 : vector<8x128xf32>
    %212 = arith.mulf %205, %211 : vector<8x128xf32>
    %213 = arith.mulf %212, %206 : vector<8x128xf32>
    %214 = arith.truncf %213 : vector<8x128xf32> to vector<8x128xbf16>
    %c1_76 = arith.constant 1 : index
    %c0_77 = arith.constant 0 : index
    %c0_78 = arith.constant 0 : index
    %215 = vector.load %arg11[%c1_76, %c0_77, %c0_78] : memref<4x128x64xbf16, #tpu.memory_space<vmem>>, vector<1x128x64xbf16>
    %216 = vector.shape_cast %215 : vector<1x128x64xbf16> to vector<128x64xbf16>
    %cst_79 = arith.constant dense<0.000000e+00> : vector<8x64xf32>
    %217 = tpu.matmul %214, %216, %cst_79 {dimension_numbers = #tpu.dot_dimension_numbers<[1], [0], [0], [1], [0, 0, 1, 1], [], []>} : vector<8x128xbf16>, vector<128x64xbf16>, vector<8x64xf32> -> vector<8x64xf32>
    %218 = vector.extract_strided_slice %181 {offsets = [0, 1], sizes = [8, 1], strides = [1, 1]} : vector<8x4xf32> to vector<8x1xf32>
    %219 = vector.broadcast %218 : vector<8x1xf32> to vector<8x64xf32>
    %220 = arith.mulf %219, %217 : vector<8x64xf32>
    %221 = arith.addf %201, %220 : vector<8x64xf32>
    %c2 = arith.constant 2 : index
    %c0_80 = arith.constant 0 : index
    %c0_81 = arith.constant 0 : index
    %222 = vector.load %arg10[%c2, %c0_80, %c0_81] : memref<4x64x256xbf16, #tpu.memory_space<vmem>>, vector<1x64x256xbf16>
    %223 = vector.shape_cast %222 : vector<1x64x256xbf16> to vector<64x256xbf16>
    %cst_82 = arith.constant dense<0.000000e+00> : vector<8x256xf32>
    %224 = tpu.matmul %141, %223, %cst_82 {dimension_numbers = #tpu.dot_dimension_numbers<[1], [0], [0], [1], [0, 0, 1, 1], [], []>} : vector<8x64xbf16>, vector<64x256xbf16>, vector<8x256xf32> -> vector<8x256xf32>
    %225 = vector.extract_strided_slice %224 {offsets = [0, 0], sizes = [8, 128], strides = [1, 1]} : vector<8x256xf32> to vector<8x128xf32>
    %226 = vector.extract_strided_slice %224 {offsets = [0, 128], sizes = [8, 128], strides = [1, 1]} : vector<8x256xf32> to vector<8x128xf32>
    %227 = arith.negf %225 : vector<8x128xf32>
    %228 = math.exp %227 : vector<8x128xf32>
    %cst_83 = arith.constant 1.000000e+00 : f32
    %229 = vector.broadcast %cst_83 : f32 to vector<8x128xf32>
    %230 = arith.addf %229, %228 : vector<8x128xf32>
    %231 = arith.divf %229, %230 : vector<8x128xf32>
    %232 = arith.mulf %225, %231 : vector<8x128xf32>
    %233 = arith.mulf %232, %226 : vector<8x128xf32>
    %234 = arith.truncf %233 : vector<8x128xf32> to vector<8x128xbf16>
    %c2_84 = arith.constant 2 : index
    %c0_85 = arith.constant 0 : index
    %c0_86 = arith.constant 0 : index
    %235 = vector.load %arg11[%c2_84, %c0_85, %c0_86] : memref<4x128x64xbf16, #tpu.memory_space<vmem>>, vector<1x128x64xbf16>
    %236 = vector.shape_cast %235 : vector<1x128x64xbf16> to vector<128x64xbf16>
    %cst_87 = arith.constant dense<0.000000e+00> : vector<8x64xf32>
    %237 = tpu.matmul %234, %236, %cst_87 {dimension_numbers = #tpu.dot_dimension_numbers<[1], [0], [0], [1], [0, 0, 1, 1], [], []>} : vector<8x128xbf16>, vector<128x64xbf16>, vector<8x64xf32> -> vector<8x64xf32>
    %238 = vector.extract_strided_slice %181 {offsets = [0, 2], sizes = [8, 1], strides = [1, 1]} : vector<8x4xf32> to vector<8x1xf32>
    %239 = vector.broadcast %238 : vector<8x1xf32> to vector<8x64xf32>
    %240 = arith.mulf %239, %237 : vector<8x64xf32>
    %241 = arith.addf %221, %240 : vector<8x64xf32>
    %c3 = arith.constant 3 : index
    %c0_88 = arith.constant 0 : index
    %c0_89 = arith.constant 0 : index
    %242 = vector.load %arg10[%c3, %c0_88, %c0_89] : memref<4x64x256xbf16, #tpu.memory_space<vmem>>, vector<1x64x256xbf16>
    %243 = vector.shape_cast %242 : vector<1x64x256xbf16> to vector<64x256xbf16>
    %cst_90 = arith.constant dense<0.000000e+00> : vector<8x256xf32>
    %244 = tpu.matmul %141, %243, %cst_90 {dimension_numbers = #tpu.dot_dimension_numbers<[1], [0], [0], [1], [0, 0, 1, 1], [], []>} : vector<8x64xbf16>, vector<64x256xbf16>, vector<8x256xf32> -> vector<8x256xf32>
    %245 = vector.extract_strided_slice %244 {offsets = [0, 0], sizes = [8, 128], strides = [1, 1]} : vector<8x256xf32> to vector<8x128xf32>
    %246 = vector.extract_strided_slice %244 {offsets = [0, 128], sizes = [8, 128], strides = [1, 1]} : vector<8x256xf32> to vector<8x128xf32>
    %247 = arith.negf %245 : vector<8x128xf32>
    %248 = math.exp %247 : vector<8x128xf32>
    %cst_91 = arith.constant 1.000000e+00 : f32
    %249 = vector.broadcast %cst_91 : f32 to vector<8x128xf32>
    %250 = arith.addf %249, %248 : vector<8x128xf32>
    %251 = arith.divf %249, %250 : vector<8x128xf32>
    %252 = arith.mulf %245, %251 : vector<8x128xf32>
    %253 = arith.mulf %252, %246 : vector<8x128xf32>
    %254 = arith.truncf %253 : vector<8x128xf32> to vector<8x128xbf16>
    %c3_92 = arith.constant 3 : index
    %c0_93 = arith.constant 0 : index
    %c0_94 = arith.constant 0 : index
    %255 = vector.load %arg11[%c3_92, %c0_93, %c0_94] : memref<4x128x64xbf16, #tpu.memory_space<vmem>>, vector<1x128x64xbf16>
    %256 = vector.shape_cast %255 : vector<1x128x64xbf16> to vector<128x64xbf16>
    %cst_95 = arith.constant dense<0.000000e+00> : vector<8x64xf32>
    %257 = tpu.matmul %254, %256, %cst_95 {dimension_numbers = #tpu.dot_dimension_numbers<[1], [0], [0], [1], [0, 0, 1, 1], [], []>} : vector<8x128xbf16>, vector<128x64xbf16>, vector<8x64xf32> -> vector<8x64xf32>
    %258 = vector.extract_strided_slice %181 {offsets = [0, 3], sizes = [8, 1], strides = [1, 1]} : vector<8x4xf32> to vector<8x1xf32>
    %259 = vector.broadcast %258 : vector<8x1xf32> to vector<8x64xf32>
    %260 = arith.mulf %259, %257 : vector<8x64xf32>
    %261 = arith.addf %241, %260 : vector<8x64xf32>
    %c0_96 = arith.constant 0 : index
    %c0_97 = arith.constant 0 : index
    %262 = vector.load %arg12[%c0_96, %c0_97] : memref<8x64xf32, #tpu.memory_space<vmem>>, vector<8x64xf32>
    tpu.vector_store %arg12[%c0_96, %c0_97], %261 {strides = array<i32>} : memref<8x64xf32, #tpu.memory_space<vmem>>, vector<8x64xf32>,
    return
  }
  func.func @transform_0(%arg0: i32) -> (i32, i32) {
    %c0_i32 = arith.constant 0 : i32
    %c0_i32_0 = arith.constant 0 : i32
    return %arg0, %c0_i32 : i32, i32
  }
  func.func @transform_1(%arg0: i32) -> (i32, i32) {
    %c0_i32 = arith.constant 0 : i32
    %c0_i32_0 = arith.constant 0 : i32
    %c0_i32_1 = arith.constant 0 : i32
    return %c0_i32, %c0_i32_0 : i32, i32
  }
  func.func @transform_2(%arg0: i32) -> (i32, i32) {
    %c0_i32 = arith.constant 0 : i32
    %c0_i32_0 = arith.constant 0 : i32
    %c0_i32_1 = arith.constant 0 : i32
    return %c0_i32, %c0_i32_0 : i32, i32
  }
  func.func @transform_3(%arg0: i32) -> (i32, i32) {
    %c0_i32 = arith.constant 0 : i32
    %c0_i32_0 = arith.constant 0 : i32
    %c0_i32_1 = arith.constant 0 : i32
    return %c0_i32, %c0_i32_0 : i32, i32
  }
  func.func @transform_4(%arg0: i32) -> (i32, i32) {
    %c0_i32 = arith.constant 0 : i32
    %c0_i32_0 = arith.constant 0 : i32
    %c0_i32_1 = arith.constant 0 : i32
    return %c0_i32, %c0_i32_0 : i32, i32
  }
  func.func @transform_5(%arg0: i32) -> (i32, i32) {
    %c0_i32 = arith.constant 0 : i32
    %c0_i32_0 = arith.constant 0 : i32
    %c0_i32_1 = arith.constant 0 : i32
    return %c0_i32, %c0_i32_0 : i32, i32
  }
  func.func @transform_6(%arg0: i32) -> (i32, i32) {
    %c0_i32 = arith.constant 0 : i32
    %c0_i32_0 = arith.constant 0 : i32
    %c0_i32_1 = arith.constant 0 : i32
    return %c0_i32, %c0_i32_0 : i32, i32
  }
  func.func @transform_7(%arg0: i32) -> (i32, i32) {
    %c0_i32 = arith.constant 0 : i32
    %c0_i32_0 = arith.constant 0 : i32
    %c0_i32_1 = arith.constant 0 : i32
    return %c0_i32, %c0_i32_0 : i32, i32
  }
  func.func @transform_8(%arg0: i32) -> (i32, i32) {
    %c0_i32 = arith.constant 0 : i32
    %c0_i32_0 = arith.constant 0 : i32
    %c0_i32_1 = arith.constant 0 : i32
    return %c0_i32, %c0_i32_0 : i32, i32
  }
  func.func @transform_9(%arg0: i32) -> (i32, i32, i32) {
    %c0_i32 = arith.constant 0 : i32
    %c0_i32_0 = arith.constant 0 : i32
    %c0_i32_1 = arith.constant 0 : i32
    %c0_i32_2 = arith.constant 0 : i32
    return %c0_i32, %c0_i32_0, %c0_i32_1 : i32, i32, i32
  }
  func.func @transform_10(%arg0: i32) -> (i32, i32, i32) {
    %c0_i32 = arith.constant 0 : i32
    %c0_i32_0 = arith.constant 0 : i32
    %c0_i32_1 = arith.constant 0 : i32
    %c0_i32_2 = arith.constant 0 : i32
    return %c0_i32, %c0_i32_0, %c0_i32_1 : i32, i32, i32
  }
  func.func @transform_11(%arg0: i32) -> (i32, i32) {
    %c0_i32 = arith.constant 0 : i32
    %c0_i32_0 = arith.constant 0 : i32
    return %arg0, %c0_i32 : i32, i32
  }
}

</mosaic_0001>

<llo_original>
// kernel: mistral_moe_forward.3
$region0: #{mistral_moe_forward.3}
  #allocation0 [shape = 'u32[]', space=smem, size = 0x4, offset = 0x4, fixed_abs, tag = 'smem constant byte address 0x4 - core index']
  #allocation1 [shape = 'u32[72,128]{1,0:T(1,128)}', space=vmem, size = 0x9000, scoped, tag = 'internal scratch']
  #allocation2 [shape = 'f32[8,64]{1,0:T(8,128)}', space=vmem, size = 0x1000, scoped, tag = 'scratch operand']
  %s0 = inlined_call_operand.vmem [shape: f32[16,64], index: 0, kind: input, shape index: {}, may-alias: {0,11}]
  %s1 = inlined_call_operand.vmem [shape: f32[1,64], index: 1, kind: input, shape index: {}]
  %s2 = inlined_call_operand.vmem [shape: f32[1,64], index: 2, kind: input, shape index: {}]
  %s3 = inlined_call_operand.vmem [shape: bf16[64,128], index: 3, kind: input, shape index: {}]
  %s4 = inlined_call_operand.vmem [shape: bf16[64,64], index: 4, kind: input, shape index: {}]
  %s5 = inlined_call_operand.vmem [shape: f32[16,16], index: 5, kind: input, shape index: {}]
  %s6 = inlined_call_operand.vmem [shape: f32[8,16], index: 6, kind: input, shape index: {}]
  %s7 = inlined_call_operand.vmem [shape: f32[8,16], index: 7, kind: input, shape index: {}]
  %s8 = inlined_call_operand.vmem [shape: bf16[64,256], index: 8, kind: input, shape index: {}]
  %s9 = inlined_call_operand.vmem [shape: bf16[128,64], index: 9, kind: input, shape index: {}]
  %s10 = inlined_call_operand.vmem [shape: f32[1,64], index: 10, kind: input, shape index: {}]
  %s11 = inlined_call_operand.vmem [shape: f32[16,64], index: 11, kind: output, shape index: {}, may-alias: {0,11}]
  %s12 = sld [smem:[#allocation0]]
  $region77: #{mistral_moe_forward.3} parent=0
    _
  %s14 = ssub.s32 1, %s12
  %s15 = scalar_select 0, %s14, %s12
  loop: start=0, step=1, limit=4
  $region2: #{mistral_moe_forward.3} parent=0 // loop_pre_header
    _
  $region3: #{mistral_moe_forward.3} parent=0 // loop_header
    %s17 = sphi 0, %s21
    %p18 = scmp.ge.s32.totalorder %s17, 4
    %s27 = sphi 0, %s29
    %s30 = sphi 0, %s27
    %s31 = sphi 0, %s30
    %s47 = sphi 0, %s31
    %s51 = sphi 0, %s51
    %s53 = sphi 0, %s51
    %s54 = sphi 0, %s53
    %s68 = sphi 0, %s54
    %s72 = sphi 0, %s72
    %s74 = sphi 0, %s72
    %s75 = sphi 0, %s74
    %s89 = sphi 0, %s75
    %s93 = sphi 0, %s93
    %s95 = sphi 0, %s93
    %s96 = sphi 0, %s95
    %s110 = sphi 0, %s96
    %s114 = sphi 0, %s114
    %s116 = sphi 0, %s114
    %s117 = sphi 0, %s116
    %s131 = sphi 0, %s117
    %s135 = sphi 0, %s135
    %s137 = sphi 0, %s135
    %s138 = sphi 0, %s137
    %s152 = sphi 0, %s138
    %s156 = sphi 0, %s156
    %s158 = sphi 0, %s156
    %s159 = sphi 0, %s158
    %s173 = sphi 0, %s159
    %s177 = sphi 0, %s177
    %s179 = sphi 0, %s177
    %s180 = sphi 0, %s179
    %s194 = sphi 0, %s180
    %s198 = sphi 0, %s198
    %s200 = sphi 0, %s198
    %s201 = sphi 0, %s200
    %s215 = sphi 0, %s201
    %s219 = sphi 0, %s219
    %s221 = sphi 0, %s219
    %s222 = sphi 0, %s221
    %s236 = sphi 0, %s222
    %s240 = sphi 0, %s240
    %s242 = sphi 0, %s240
    %s243 = sphi 0, %s242
    %s257 = sphi 0, %s243
    %s263 = sphi 0, %s265
    %s266 = sphi 0, %s263
    %s267 = sphi 0, %s266
    %s283 = sphi 0, %s267
  $region4: #{mistral_moe_forward.3} parent=0 // loop_header_branch
    %20 = sbr.rel (%p18) target = $region8
  $region5: #{mistral_moe_forward.3} parent=0 // loop_body
    %s22 = ssub.s32 %s17, 1
    %s23 = ssub.s32 %s17, 2
    %s24 = sadd.s32 %s17, 1
    %s25 = ssub.s32 %s17, %s24
    %p26 = scmp.eq.s32.totalorder %s25, 0
    %s28 = sadd.s32 %s27, 1
    %s29 = scalar_select %p26, %s27, %s28
    %p32 = pneg %p26
    %p33 = scmp.eq.s32.totalorder %s17, 1
    %p34 = por %p32, %p33
    %p35 = scmp.ne.s32.totalorder %s27, %s30
    %p36 = scmp.eq.s32.totalorder %s17, 0
    %p37 = por %p35, %p36
    %p38 = scmp.ne.s32.totalorder %s27, %s30
    %p39 = scmp.eq.s32.totalorder %s22, 1
    %p40 = por %p38, %p39
    %p41 = scmp.ne.s32.totalorder %s30, %s31
    %p42 = scmp.eq.s32.totalorder %s22, 0
    %p43 = por %p41, %p42
    %p44 = scmp.ne.s32.totalorder %s30, %s31
    %p45 = scmp.eq.s32.totalorder %s23, 1
    %p46 = por %p44, %p45
    %p48 = scmp.ne.s32.totalorder %s31, %s47
    %p49 = scmp.eq.s32.totalorder %s23, 0
    %p50 = por %p48, %p49
    %s52 = sadd.s32 %s51, 1
    %p55 = scmp.eq.s32.totalorder %s17, 1
    %p56 = scmp.ne.s32.totalorder %s51, %s53
    %p57 = scmp.eq.s32.totalorder %s17, 0
    %p58 = por %p56, %p57
    %p59 = scmp.ne.s32.totalorder %s51, %s53
    %p60 = scmp.eq.s32.totalorder %s22, 1
    %p61 = por %p59, %p60
    %p62 = scmp.ne.s32.totalorder %s53, %s54
    %p63 = scmp.eq.s32.totalorder %s22, 0
    %p64 = por %p62, %p63
    %p65 = scmp.ne.s32.totalorder %s53, %s54
    %p66 = scmp.eq.s32.totalorder %s23, 1
    %p67 = por %p65, %p66
    %p69 = scmp.ne.s32.totalorder %s54, %s68
    %p70 = scmp.eq.s32.totalorder %s23, 0
    %p71 = por %p69, %p70
    %s73 = sadd.s32 %s72, 1
    %p76 = scmp.eq.s32.totalorder %s17, 1
    %p77 = scmp.ne.s32.totalorder %s72, %s74
    %p78 = scmp.eq.s32.totalorder %s17, 0
    %p79 = por %p77, %p78
    %p80 = scmp.ne.s32.totalorder %s72, %s74
    %p81 = scmp.eq.s32.totalorder %s22, 1
    %p82 = por %p80, %p81
    %p83 = scmp.ne.s32.totalorder %s74, %s75
    %p84 = scmp.eq.s32.totalorder %s22, 0
    %p85 = por %p83, %p84
    %p86 = scmp.ne.s32.totalorder %s74, %s75
    %p87 = scmp.eq.s32.totalorder %s23, 1
    %p88 = por %p86, %p87
    %p90 = scmp.ne.s32.totalorder %s75, %s89
    %p91 = scmp.eq.s32.totalorder %s23, 0
    %p92 = por %p90, %p91
    %s94 = sadd.s32 %s93, 1
    %p97 = scmp.eq.s32.totalorder %s17, 1
    %p98 = scmp.ne.s32.totalorder %s93, %s95
    %p99 = scmp.eq.s32.totalorder %s17, 0
    %p100 = por %p98, %p99
    %p101 = scmp.ne.s32.totalorder %s93, %s95
    %p102 = scmp.eq.s32.totalorder %s22, 1
    %p103 = por %p101, %p102
    %p104 = scmp.ne.s32.totalorder %s95, %s96
    %p105 = scmp.eq.s32.totalorder %s22, 0
    %p106 = por %p104, %p105
    %p107 = scmp.ne.s32.totalorder %s95, %s96
    %p108 = scmp.eq.s32.totalorder %s23, 1
    %p109 = por %p107, %p108
    %p111 = scmp.ne.s32.totalorder %s96, %s110
    %p112 = scmp.eq.s32.totalorder %s23, 0
    %p113 = por %p111, %p112
    %s115 = sadd.s32 %s114, 1
    %p118 = scmp.eq.s32.totalorder %s17, 1
    %p119 = scmp.ne.s32.totalorder %s114, %s116
    %p120 = scmp.eq.s32.totalorder %s17, 0
    %p121 = por %p119, %p120
    %p122 = scmp.ne.s32.totalorder %s114, %s116
    %p123 = scmp.eq.s32.totalorder %s22, 1
    %p124 = por %p122, %p123
    %p125 = scmp.ne.s32.totalorder %s116, %s117
    %p126 = scmp.eq.s32.totalorder %s22, 0
    %p127 = por %p125, %p126
    %p128 = scmp.ne.s32.totalorder %s116, %s117
    %p129 = scmp.eq.s32.totalorder %s23, 1
    %p130 = por %p128, %p129
    %p132 = scmp.ne.s32.totalorder %s117, %s131
    %p133 = scmp.eq.s32.totalorder %s23, 0
    %p134 = por %p132, %p133
    %s136 = sadd.s32 %s135, 1
    %p139 = scmp.eq.s32.totalorder %s17, 1
    %p140 = scmp.ne.s32.totalorder %s135, %s137
    %p141 = scmp.eq.s32.totalorder %s17, 0
    %p142 = por %p140, %p141
    %p143 = scmp.ne.s32.totalorder %s135, %s137
    %p144 = scmp.eq.s32.totalorder %s22, 1
    %p145 = por %p143, %p144
    %p146 = scmp.ne.s32.totalorder %s137, %s138
    %p147 = scmp.eq.s32.totalorder %s22, 0
    %p148 = por %p146, %p147
    %p149 = scmp.ne.s32.totalorder %s137, %s138
    %p150 = scmp.eq.s32.totalorder %s23, 1
    %p151 = por %p149, %p150
    %p153 = scmp.ne.s32.totalorder %s138, %s152
    %p154 = scmp.eq.s32.totalorder %s23, 0
    %p155 = por %p153, %p154
    %s157 = sadd.s32 %s156, 1
    %p160 = scmp.eq.s32.totalorder %s17, 1
    %p161 = scmp.ne.s32.totalorder %s156, %s158
    %p162 = scmp.eq.s32.totalorder %s17, 0
    %p163 = por %p161, %p162
    %p164 = scmp.ne.s32.totalorder %s156, %s158
    %p165 = scmp.eq.s32.totalorder %s22, 1
    %p166 = por %p164, %p165
    %p167 = scmp.ne.s32.totalorder %s158, %s159
    %p168 = scmp.eq.s32.totalorder %s22, 0
    %p169 = por %p167, %p168
    %p170 = scmp.ne.s32.totalorder %s158, %s159
    %p171 = scmp.eq.s32.totalorder %s23, 1
    %p172 = por %p170, %p171
    %p174 = scmp.ne.s32.totalorder %s159, %s173
    %p175 = scmp.eq.s32.totalorder %s23, 0
    %p176 = por %p174, %p175
    %s178 = sadd.s32 %s177, 1
    %p181 = scmp.eq.s32.totalorder %s17, 1
    %p182 = scmp.ne.s32.totalorder %s177, %s179
    %p183 = scmp.eq.s32.totalorder %s17, 0
    %p184 = por %p182, %p183
    %p185 = scmp.ne.s32.totalorder %s177, %s179
    %p186 = scmp.eq.s32.totalorder %s22, 1
    %p187 = por %p185, %p186
    %p188 = scmp.ne.s32.totalorder %s179, %s180
    %p189 = scmp.eq.s32.totalorder %s22, 0
    %p190 = por %p188, %p189
    %p191 = scmp.ne.s32.totalorder %s179, %s180
    %p192 = scmp.eq.s32.totalorder %s23, 1
    %p193 = por %p191, %p192
    %p195 = scmp.ne.s32.totalorder %s180, %s194
    %p196 = scmp.eq.s32.totalorder %s23, 0
    %p197 = por %p195, %p196
    %s199 = sadd.s32 %s198, 1
    %p202 = scmp.eq.s32.totalorder %s17, 1
    %p203 = scmp.ne.s32.totalorder %s198, %s200
    %p204 = scmp.eq.s32.totalorder %s17, 0
    %p205 = por %p203, %p204
    %p206 = scmp.ne.s32.totalorder %s198, %s200
    %p207 = scmp.eq.s32.totalorder %s22, 1
    %p208 = por %p206, %p207
    %p209 = scmp.ne.s32.totalorder %s200, %s201
    %p210 = scmp.eq.s32.totalorder %s22, 0
    %p211 = por %p209, %p210
    %p212 = scmp.ne.s32.totalorder %s200, %s201
    %p213 = scmp.eq.s32.totalorder %s23, 1
    %p214 = por %p212, %p213
    %p216 = scmp.ne.s32.totalorder %s201, %s215
    %p217 = scmp.eq.s32.totalorder %s23, 0
    %p218 = por %p216, %p217
    %s220 = sadd.s32 %s219, 1
    %p223 = scmp.eq.s32.totalorder %s17, 1
    %p224 = scmp.ne.s32.totalorder %s219, %s221
    %p225 = scmp.eq.s32.totalorder %s17, 0
    %p226 = por %p224, %p225
    %p227 = scmp.ne.s32.totalorder %s219, %s221
    %p228 = scmp.eq.s32.totalorder %s22, 1
    %p229 = por %p227, %p228
    %p230 = scmp.ne.s32.totalorder %s221, %s222
    %p231 = scmp.eq.s32.totalorder %s22, 0
    %p232 = por %p230, %p231
    %p233 = scmp.ne.s32.totalorder %s221, %s222
    %p234 = scmp.eq.s32.totalorder %s23, 1
    %p235 = por %p233, %p234
    %p237 = scmp.ne.s32.totalorder %s222, %s236
    %p238 = scmp.eq.s32.totalorder %s23, 0
    %p239 = por %p237, %p238
    %s241 = sadd.s32 %s240, 1
    %p244 = scmp.eq.s32.totalorder %s17, 1
    %p245 = scmp.ne.s32.totalorder %s240, %s242
    %p246 = scmp.eq.s32.totalorder %s17, 0
    %p247 = por %p245, %p246
    %p248 = scmp.ne.s32.totalorder %s240, %s242
    %p249 = scmp.eq.s32.totalorder %s22, 1
    %p250 = por %p248, %p249
    %p251 = scmp.ne.s32.totalorder %s242, %s243
    %p252 = scmp.eq.s32.totalorder %s22, 0
    %p253 = por %p251, %p252
    %p254 = scmp.ne.s32.totalorder %s242, %s243
    %p255 = scmp.eq.s32.totalorder %s23, 1
    %p256 = por %p254, %p255
    %p258 = scmp.ne.s32.totalorder %s243, %s257
    %p259 = scmp.eq.s32.totalorder %s23, 0
    %p260 = por %p258, %p259
    %s261 = ssub.s32 %s17, %s24
    %p262 = scmp.eq.s32.totalorder %s261, 0
    %s264 = sadd.s32 %s263, 1
    %s265 = scalar_select %p262, %s263, %s264
    %p268 = pneg %p262
    %p269 = scmp.eq.s32.totalorder %s17, 1
    %p270 = por %p268, %p269
    %p271 = scmp.ne.s32.totalorder %s263, %s266
    %p272 = scmp.eq.s32.totalorder %s17, 0
    %p273 = por %p271, %p272
    %p274 = scmp.ne.s32.totalorder %s263, %s266
    %p275 = scmp.eq.s32.totalorder %s22, 1
    %p276 = por %p274, %p275
    %p277 = scmp.ne.s32.totalorder %s266, %s267
    %p278 = scmp.eq.s32.totalorder %s22, 0
    %p279 = por %p277, %p278
    %p280 = scmp.ne.s32.totalorder %s266, %s267
    %p281 = scmp.eq.s32.totalorder %s23, 1
    %p282 = por %p280, %p281
    %p284 = scmp.ne.s32.totalorder %s267, %s283
    %p285 = scmp.eq.s32.totalorder %s23, 0
    %p286 = por %p284, %p285
    %p287 = scmp.le.s32.totalorder 1, %s17
    %p288 = scmp.lt.s32.totalorder %s17, 3
    %p289 = pnand %p287, %p288
    %p290 = pneg %p289
    // Predicated region
    $region9: #{mistral_moe_forward.3} parent=5 // pred_check
      _
    $region10: #{mistral_moe_forward.3} parent=5 // pred_check_branch
      %292 = sbr.rel (%p289) target = $region12
    $region11: #{mistral_moe_forward.3} parent=5 // pred_region
      %s293 = ssub.s32 %s17, 1
      // Predicated region
      $region13: #{mistral_moe_forward.3} parent=11 // pred_check
        %p294 = pneg %p64
      $region14: #{mistral_moe_forward.3} parent=11 // pred_check_branch
        %296 = sbr.rel (%p294) target = $region16
      $region15: #{mistral_moe_forward.3} parent=11 // pred_region
        _
      $region16: #{mistral_moe_forward.3} parent=11 // pred_fallthru
        _
      // Predicated region
      $region17: #{mistral_moe_forward.3} parent=11 // pred_check
        %p297 = pneg %p85
      $region18: #{mistral_moe_forward.3} parent=11 // pred_check_branch
        %299 = sbr.rel (%p297) target = $region20
      $region19: #{mistral_moe_forward.3} parent=11 // pred_region
        _
      $region20: #{mistral_moe_forward.3} parent=11 // pred_fallthru
        _
      // Predicated region
      $region21: #{mistral_moe_forward.3} parent=11 // pred_check
        %p300 = pneg %p106
      $region22: #{mistral_moe_forward.3} parent=11 // pred_check_branch
        %302 = sbr.rel (%p300) target = $region24
      $region23: #{mistral_moe_forward.3} parent=11 // pred_region
        _
      $region24: #{mistral_moe_forward.3} parent=11 // pred_fallthru
        _
      // Predicated region
      $region25: #{mistral_moe_forward.3} parent=11 // pred_check
        %p303 = pneg %p127
      $region26: #{mistral_moe_forward.3} parent=11 // pred_check_branch
        %305 = sbr.rel (%p303) target = $region28
      $region27: #{mistral_moe_forward.3} parent=11 // pred_region
        _
      $region28: #{mistral_moe_forward.3} parent=11 // pred_fallthru
        _
      // Predicated region
      $region29: #{mistral_moe_forward.3} parent=11 // pred_check
        %p306 = pneg %p148
      $region30: #{mistral_moe_forward.3} parent=11 // pred_check_branch
        %308 = sbr.rel (%p306) target = $region32
      $region31: #{mistral_moe_forward.3} parent=11 // pred_region
        _
      $region32: #{mistral_moe_forward.3} parent=11 // pred_fallthru
        _
      // Predicated region
      $region33: #{mistral_moe_forward.3} parent=11 // pred_check
        %p309 = pneg %p169
      $region34: #{mistral_moe_forward.3} parent=11 // pred_check_branch
        %311 = sbr.rel (%p309) target = $region36
      $region35: #{mistral_moe_forward.3} parent=11 // pred_region
        _
      $region36: #{mistral_moe_forward.3} parent=11 // pred_fallthru
        _
      // Predicated region
      $region37: #{mistral_moe_forward.3} parent=11 // pred_check
        %p312 = pneg %p190
      $region38: #{mistral_moe_forward.3} parent=11 // pred_check_branch
        %314 = sbr.rel (%p312) target = $region40
      $region39: #{mistral_moe_forward.3} parent=11 // pred_region
        _
      $region40: #{mistral_moe_forward.3} parent=11 // pred_fallthru
        _
      // Predicated region
      $region41: #{mistral_moe_forward.3} parent=11 // pred_check
        %p315 = pneg %p211
      $region42: #{mistral_moe_forward.3} parent=11 // pred_check_branch
        %317 = sbr.rel (%p315) target = $region44
      $region43: #{mistral_moe_forward.3} parent=11 // pred_region
        _
      $region44: #{mistral_moe_forward.3} parent=11 // pred_fallthru
        _
      // Predicated region
      $region45: #{mistral_moe_forward.3} parent=11 // pred_check
        %p318 = pneg %p232
      $region46: #{mistral_moe_forward.3} parent=11 // pred_check_branch
        %320 = sbr.rel (%p318) target = $region48
      $region47: #{mistral_moe_forward.3} parent=11 // pred_region
        _
      $region48: #{mistral_moe_forward.3} parent=11 // pred_fallthru
        _
      // Predicated region
      $region49: #{mistral_moe_forward.3} parent=11 // pred_check
        %p321 = pneg %p253
      $region50: #{mistral_moe_forward.3} parent=11 // pred_check_branch
        %323 = sbr.rel (%p321) target = $region52
      $region51: #{mistral_moe_forward.3} parent=11 // pred_region
        _
      $region52: #{mistral_moe_forward.3} parent=11 // pred_fallthru
        _
    $region12: #{mistral_moe_forward.3} parent=5 // pred_fallthru
      _
    %p324 = scmp.lt.s32.totalorder %s17, 2
    // Predicated region
    $region53: #{mistral_moe_forward.3} parent=5 // pred_check
      %p325 = pneg %p324
    $region54: #{mistral_moe_forward.3} parent=5 // pred_check_branch
      %327 = sbr.rel (%p325) target = $region56
    $region55: #{mistral_moe_forward.3} parent=5 // pred_region
      // Predicated region
      $region57: #{mistral_moe_forward.3} parent=55 // pred_check
        %p328 = pneg %p37
      $region58: #{mistral_moe_forward.3} parent=55 // pred_check_branch
        %330 = sbr.rel (%p328) target = $region60
      $region59: #{mistral_moe_forward.3} parent=55 // pred_region
        %p331 = scmp.lt.s32.totalorder %s17, 1
        %s332 = scalar_select %p331, %s17, 1
        %s333 = smul.addr %s332, 8
        %s334 = scalar_lea.vmem %s0, %s333
      $region60: #{mistral_moe_forward.3} parent=55 // pred_fallthru
        _
    $region56: #{mistral_moe_forward.3} parent=5 // pred_fallthru
      _
    %p335 = scmp.le.s32.totalorder 1, %s17
    %p336 = scmp.lt.s32.totalorder %s17, 3
    %p337 = pnand %p335, %p336
    %p338 = pneg %p337
    // Predicated region
    $region61: #{mistral_moe_forward.3} parent=5 // pred_check
      _
    $region62: #{mistral_moe_forward.3} parent=5 // pred_check_branch
      %340 = sbr.rel (%p337) target = $region64
    $region63: #{mistral_moe_forward.3} parent=5 // pred_region
      %s341 = ssub.s32 %s17, 1
      %p342 = scmp.lt.s32.totalorder %s22, 1
      %s343 = scalar_select %p342, %s22, 1
      %s344 = smul.addr %s343, 8
      %s345 = scalar_lea.vmem %s0, %s344
      %p346 = pneg %p43
      %p347 = pneg %p40
      %p348 = pneg %p64
      %p349 = pneg %p61
      %p350 = pneg %p85
      %p351 = pneg %p82
      %p352 = pneg %p106
      %p353 = pneg %p103
      %p354 = pneg %p127
      %p355 = pneg %p124
      %p356 = pneg %p148
      %p357 = pneg %p145
      %p358 = pneg %p169
      %p359 = pneg %p166
      %p360 = pneg %p190
      %p361 = pneg %p187
      %p362 = pneg %p211
      %p363 = pneg %p208
      %p364 = pneg %p232
      %p365 = pneg %p229
      %p366 = pneg %p253
      %p367 = pneg %p250
      %p368 = pneg %p279
      %p369 = pneg %p276
      %p370 = scmp.lt.s32.totalorder %s22, 1
      %s371 = scalar_select %p370, %s22, 1
      %s372 = smul.addr %s371, 8
      %s373 = scalar_lea.vmem %s11, %s372
      %p374 = scmp.lt.s32.totalorder %s22, 1
      %s375 = scalar_select %p374, %s22, 1
      %s376 = smul.addr %s375, 8
      %s377 = scalar_lea.vmem %s0, %s376
      %p378 = scmp.lt.s32.totalorder %s22, 1
      %s379 = scalar_select %p378, %s22, 1
      %s380 = smul.addr %s379, 8
      %s381 = scalar_lea.vmem %s11, %s380
      %v383 = vld [vmem:[%s377] sm:$0xff]
      %v384 = vld [vmem:[%s1] sm:$0x1]
      %v385 = vmul.f32 %v383, %v383
      %vm386 = vcmask 523264
      %v387 = vsel %vm386, %v385, 0.0
      %388 = vadd.xlane.f32.xlu0 %v387
      %v389 = vpop.xlane.xlu0 %388
      %v390 = vrcp.pop 64.0
      %v391 = vmul.f32 64.0, %v390
      %v392 = vsub.f32 1.0, %v391
      %v393 = vmul.f32 %v390, %v392
      %v394 = vadd.f32 %v390, %v393
      %vm395 = vweird.f32 %v390
      %v396 = vsel %vm395, %v390, %v394
      %v397 = vmul.f32 %v389, %v396
      %v399 = vperm.slane %v384, 0
      %v401 = vmul.f32 %v399, %v383
      %v402 = vadd.f32 %v397, 1e-05
      %v403 = vrsqrt.pop %v402
      %v404 = vmul.f32 %v403, %v402
      %v405 = vmul.f32 %v404, %v403
      %v406 = vmul.f32 0.5, %v405
      %v407 = vsub.f32 1.5, %v406
      %v408 = vmul.f32 %v403, %v407
      %vm409 = vweird.f32 %v402
      %vm410 = vweird.f32 %v403
      %vm411 = vmor %vm409, %vm410
      %v412 = vsel %vm411, %v403, %v408
      %v413 = vmul.f32 %v401, %v412
      %v414 = vpack.c.bf16 %v413, %v413
      %v415 = vld [vmem:[%s3] sm:$0xf]
      %v416 = vld [vmem:[%s3 + $0x4] sm:$0xf]
      %v417 = vld [vmem:[%s3 + $0x8] sm:$0xf]
      %v418 = vld [vmem:[%s3 + $0xc] sm:$0xf]
      %v419 = vld [vmem:[%s3 + $0x10] sm:$0xf]
      %v420 = vld [vmem:[%s3 + $0x14] sm:$0xf]
      %v421 = vld [vmem:[%s3 + $0x18] sm:$0xf]
      %v422 = vld [vmem:[%s3 + $0x1c] sm:$0xf]
      %v431 = vunpack.c.l.b16 %v415
      %v432 = vunpack.c.l.b16 %v416
      %v433 = vunpack.c.l.b16 %v417
      %v434 = vunpack.c.l.b16 %v418
      %v435 = vunpack.c.l.b16 %v419
      %v436 = vunpack.c.l.b16 %v420
      %v437 = vunpack.c.l.b16 %v421
      %v438 = vunpack.c.l.b16 %v422
      %v439 = vpack.c.b16 %v432, %v431
      %v440 = vpack.c.b16 %v434, %v433
      %v441 = vpack.c.b16 %v436, %v435
      %v442 = vpack.c.b16 %v438, %v437
      %v448 = vsel %vm386, %v414, 0
      %450 = vmatpush.bf16.msra.mxu0 0
      %451 = vmatpush.bf16.msra.mxu0 0
      %452 = vmatpush.bf16.msra.mxu0 0
      %453 = vmatpush.bf16.msra.mxu0 0
      %454 = vmatpush.bf16.msra.mxu0 %v442
      %455 = vmatpush.bf16.msra.mxu0 %v441
      %456 = vmatpush.bf16.msra.mxu0 %v440
      %457 = vmatpush.bf16.msra.mxu0 %v439
      %458 = vmatmul.bf16.gmra.mxu0 %v448
      %v459 = vpop.f32.mrf.mxu0
      %v460 = vadd.f32 0.0, %v459
      %v461 = vpop.f32.mrf.mxu0
      %462 = vdwg.mxu0
      %v463 = vld [vmem:[%s6] sm:$0xff]
      %v464 = vld [vmem:[%s7] sm:$0xff]
      %v465 = vld [vmem:[%s5] sm:$0xff]
      %v466 = vld [vmem:[%s5 + $0x8] sm:$0xff]
      %468 = vrot.lane.b32.xlu0 %v463, 64
      %v469 = vpop.permute.xlu0 %468
      %v471 = vmul.f32 %v460, %v469
      %473 = vrot.lane.b32.xlu0 %v460, 64
      %v474 = vpop.permute.xlu0 %473
      %vm475 = vcmask 130048
      %v476 = vsel %vm475, %v474, 0
      %478 = vmatpush.msra.mxu0 0.0
      %479 = vmatpush.msra.mxu0 0.0
      %480 = vmatpush.msra.mxu0 0.0
      %481 = vmatpush.msra.mxu0 0.0
      %482 = vmatpush.msra.mxu0 0.0
      %483 = vmatpush.msra.mxu0 0.0
      %484 = vmatpush.msra.mxu0 0.0
      %485 = vmatpush.msra.mxu0 0.0
      %486 = vmatpush.msra.mxu0 0.0
      %487 = vmatpush.msra.mxu0 0.0
      %488 = vmatpush.msra.mxu0 0.0
      %489 = vmatpush.msra.mxu0 0.0
      %490 = vmatpush.msra.mxu0 0.0
      %491 = vmatpush.msra.mxu0 0.0
      %492 = vmatpush.msra.mxu0 %v466
      %493 = vmatpush.msra.mxu0 %v465
      %494 = vmatmul.f32.gmra.mxu0 %v476
      %v495 = vpop.f32.mrf.mxu0
      %v496 = vadd.f32 0.0, %v495
      %497 = vdwg.mxu0
      %v498 = vmul.f32 %v496, %v464
      %500 = vrot.lane.b32.xlu0 %v498, 64
      %v501 = vpop.permute.xlu0 %500
      %v503 = vadd.f32 %v471, %v501
      %v504 = vpack.c.bf16 %v503, %v503
      %v505 = vpack.c.bf16 %v460, %v460
      %v506 = vmul.f32 %v460, %v463
      %v507 = vsel %vm475, %v460, 0
      %509 = vmatpush.msra.mxu0 0.0
      %510 = vmatpush.msra.mxu0 0.0
      %511 = vmatpush.msra.mxu0 0.0
      %512 = vmatpush.msra.mxu0 0.0
      %513 = vmatpush.msra.mxu0 0.0
      %514 = vmatpush.msra.mxu0 0.0
      %515 = vmatpush.msra.mxu0 0.0
      %516 = vmatpush.msra.mxu0 0.0
      %517 = vmatpush.msra.mxu0 0.0
      %518 = vmatpush.msra.mxu0 0.0
      %519 = vmatpush.msra.mxu0 0.0
      %520 = vmatpush.msra.mxu0 0.0
      %521 = vmatpush.msra.mxu0 0.0
      %522 = vmatpush.msra.mxu0 0.0
      %523 = vmatpush.msra.mxu0 %v466
      %524 = vmatpush.msra.mxu0 %v465
      %525 = vmatmul.f32.gmra.mxu0 %v507
      %v526 = vpop.f32.mrf.mxu0
      %v527 = vadd.f32 0.0, %v526
      %528 = vdwg.mxu0
      %v529 = vmul.f32 %v527, %v464
      %v530 = vadd.f32 %v506, %v529
      %v531 = vpack.c.bf16 %v530, %v530
      %533 = vrot.lane.b32.xlu0 %v504, 64
      %v534 = vpop.permute.xlu0 %533
      %v536 = vsel %vm475, %v531, 0
      %v539 = vsel %vm475, %v534, 0
      %541 = vmatpush.bf16.xpose.msra.mxu0 0
      %542 = vmatpush.bf16.xpose.msra.mxu0 0
      %543 = vmatpush.bf16.xpose.msra.mxu0 0
      %544 = vmatpush.bf16.xpose.msra.mxu0 0
      %545 = vmatpush.bf16.xpose.msra.mxu0 0
      %546 = vmatpush.bf16.xpose.msra.mxu0 0
      %547 = vmatpush.bf16.xpose.msra.mxu0 0
      %548 = vmatpush.bf16.xpose.msra.mxu0 %v539
      %549 = vmatmul.bf16.gmra.mxu0 %v536
      %v550 = vpop.f32.mrf.mxu0
      %v551 = vadd.f32 0.0, %v550
      %v552 = vpop.f32.mrf.mxu0
      %553 = vdwg.mxu0
      %v554 = vmul.f32 %v551, 0.25
      %vm555 = vcmask 64512
      %v556 = vsel %vm555, %v554, -inf
      %557 = vmax.xlane.f32.xlu0 %v556
      %v558 = vpop.xlane.xlu0 %557
      %v559 = vsub.f32 %v554, %v558
      %v560 = vmul.f32 %v559, 1.442695
      %v561 = vpow.pop %v560
      %v562 = vsel %vm555, %v561, 0.0
      %563 = vadd.xlane.f32.xlu0 %v562
      %v564 = vpop.xlane.xlu0 %563
      %v565 = vrcp.pop %v564
      %v566 = vmul.f32 %v564, %v565
      %v567 = vsub.f32 1.0, %v566
      %v568 = vmul.f32 %v565, %v567
      %v569 = vadd.f32 %v565, %v568
      %vm570 = vweird.f32 %v564
      %vm571 = vweird.f32 %v565
      %vm572 = vmor %vm570, %vm571
      %v573 = vsel %vm572, %v565, %v569
      %v574 = vand.u32 2147483647, %v564
      %vm575 = vcmp.eq.f32.partialorder %v574, 8.507059e+37
      %v576 = vand.u32 %v564, 2147483648
      %v577 = vor.u32 1.1754944e-38, %v576
      %v578 = vsel %vm575, %v577, %v573
      %v579 = vmul.f32 %v561, %v578
      %v580 = vpack.c.bf16 %v579, %v579
      %582 = vrot.lane.b32.xlu0 %v505, 32
      %v583 = vpop.permute.xlu0 %582
      %v585 = vsel %vm555, %v580, 0
      %vm587 = vcmask 1043456
      %v589 = vsel %vm587, %v583, 0
      %591 = vmatpush.bf16.msra.mxu0 0
      %592 = vmatpush.bf16.msra.mxu0 0
      %593 = vmatpush.bf16.msra.mxu0 0
      %594 = vmatpush.bf16.msra.mxu0 0
      %595 = vmatpush.bf16.msra.mxu0 0
      %596 = vmatpush.bf16.msra.mxu0 0
      %597 = vmatpush.bf16.msra.mxu0 0
      %598 = vmatpush.bf16.msra.mxu0 %v589
      %599 = vmatmul.bf16.gmra.mxu0 %v585
      %v600 = vpop.f32.mrf.mxu0
      %v601 = vadd.f32 0.0, %v600
      %v602 = vpop.f32.mrf.mxu0
      %603 = vdwg.mxu0
      %604 = vst.msk [vmem:[#allocation2] sm:$0xff] %vm475, %v601
      %605 = vrot.lane.b32.xlu0 %v463, 16
      %v606 = vpop.permute.xlu0 %605
      %v608 = vmul.f32 %v460, %v606
      %609 = vrot.lane.b32.xlu0 %v460, 112
      %v610 = vpop.permute.xlu0 %609
      %v611 = vsel %vm475, %v610, 0
      %613 = vmatpush.msra.mxu0 0.0
      %614 = vmatpush.msra.mxu0 0.0
      %615 = vmatpush.msra.mxu0 0.0
      %616 = vmatpush.msra.mxu0 0.0
      %617 = vmatpush.msra.mxu0 0.0
      %618 = vmatpush.msra.mxu0 0.0
      %619 = vmatpush.msra.mxu0 0.0
      %620 = vmatpush.msra.mxu0 0.0
      %621 = vmatpush.msra.mxu0 0.0
      %622 = vmatpush.msra.mxu0 0.0
      %623 = vmatpush.msra.mxu0 0.0
      %624 = vmatpush.msra.mxu0 0.0
      %625 = vmatpush.msra.mxu0 0.0
      %626 = vmatpush.msra.mxu0 0.0
      %627 = vmatpush.msra.mxu0 %v466
      %628 = vmatpush.msra.mxu0 %v465
      %629 = vmatmul.f32.gmra.mxu0 %v611
      %v630 = vpop.f32.mrf.mxu0
      %v631 = vadd.f32 0.0, %v630
      %632 = vdwg.mxu0
      %v633 = vmul.f32 %v631, %v464
      %635 = vrot.lane.b32.xlu0 %v633, 16
      %v636 = vpop.permute.xlu0 %635
      %v638 = vadd.f32 %v608, %v636
      %v639 = vpack.c.bf16 %v638, %v638
      %641 = vrot.lane.b32.xlu0 %v639, 112
      %v642 = vpop.permute.xlu0 %641
      %v644 = vsel %vm475, %v642, 0
      %646 = vmatpush.bf16.xpose.msra.mxu0 0
      %647 = vmatpush.bf16.xpose.msra.mxu0 0
      %648 = vmatpush.bf16.xpose.msra.mxu0 0
      %649 = vmatpush.bf16.xpose.msra.mxu0 0
      %650 = vmatpush.bf16.xpose.msra.mxu0 0
      %651 = vmatpush.bf16.xpose.msra.mxu0 0
      %652 = vmatpush.bf16.xpose.msra.mxu0 0
      %653 = vmatpush.bf16.xpose.msra.mxu0 %v539
      %654 = vmatmul.bf16.gmra.mxu0 %v644
      %v655 = vpop.f32.mrf.mxu0
      %v656 = vadd.f32 0.0, %v655
      %v657 = vpop.f32.mrf.mxu0
      %658 = vdwg.mxu0
      %v659 = vmul.f32 %v656, 0.25
      %v660 = vsel %vm555, %v659, -inf
      %661 = vmax.xlane.f32.xlu0 %v660
      %v662 = vpop.xlane.xlu0 %661
      %v663 = vsub.f32 %v659, %v662
      %v664 = vmul.f32 %v663, 1.442695
      %v665 = vpow.pop %v664
      %v666 = vsel %vm555, %v665, 0.0
      %667 = vadd.xlane.f32.xlu0 %v666
      %v668 = vpop.xlane.xlu0 %667
      %v669 = vrcp.pop %v668
      %v670 = vmul.f32 %v668, %v669
      %v671 = vsub.f32 1.0, %v670
      %v672 = vmul.f32 %v669, %v671
      %v673 = vadd.f32 %v669, %v672
      %vm674 = vweird.f32 %v668
      %vm675 = vweird.f32 %v669
      %vm676 = vmor %vm674, %vm675
      %v677 = vsel %vm676, %v669, %v673
      %v678 = vand.u32 2147483647, %v668
      %vm679 = vcmp.eq.f32.partialorder %v678, 8.507059e+37
      %v680 = vand.u32 %v668, 2147483648
      %v681 = vor.u32 1.1754944e-38, %v680
      %v682 = vsel %vm679, %v681, %v677
      %v683 = vmul.f32 %v665, %v682
      %v684 = vpack.c.bf16 %v683, %v683
      %v686 = vsel %vm555, %v684, 0
      %688 = vmatpush.bf16.msra.mxu0 0
      %689 = vmatpush.bf16.msra.mxu0 0
      %690 = vmatpush.bf16.msra.mxu0 0
      %691 = vmatpush.bf16.msra.mxu0 0
      %692 = vmatpush.bf16.msra.mxu0 0
      %693 = vmatpush.bf16.msra.mxu0 0
      %694 = vmatpush.bf16.msra.mxu0 0
      %695 = vmatpush.bf16.msra.mxu0 %v589
      %696 = vmatmul.bf16.gmra.mxu0 %v686
      %v697 = vpop.f32.mrf.mxu0
      %v698 = vadd.f32 0.0, %v697
      %v699 = vpop.f32.mrf.mxu0
      %700 = vdwg.mxu0
      %702 = vrot.lane.b32.xlu0 %v698, 16
      %v703 = vpop.permute.xlu0 %702
      %vm705 = vcmask 261248
      %706 = vst.msk [vmem:[#allocation2] sm:$0xff] %vm705, %v703
      %707 = vrot.lane.b32.xlu0 %v463, 80
      %v708 = vpop.permute.xlu0 %707
      %v710 = vmul.f32 %v460, %v708
      %711 = vrot.lane.b32.xlu0 %v460, 48
      %v712 = vpop.permute.xlu0 %711
      %v713 = vsel %vm475, %v712, 0
      %715 = vmatpush.msra.mxu0 0.0
      %716 = vmatpush.msra.mxu0 0.0
      %717 = vmatpush.msra.mxu0 0.0
      %718 = vmatpush.msra.mxu0 0.0
      %719 = vmatpush.msra.mxu0 0.0
      %720 = vmatpush.msra.mxu0 0.0
      %721 = vmatpush.msra.mxu0 0.0
      %722 = vmatpush.msra.mxu0 0.0
      %723 = vmatpush.msra.mxu0 0.0
      %724 = vmatpush.msra.mxu0 0.0
      %725 = vmatpush.msra.mxu0 0.0
      %726 = vmatpush.msra.mxu0 0.0
      %727 = vmatpush.msra.mxu0 0.0
      %728 = vmatpush.msra.mxu0 0.0
      %729 = vmatpush.msra.mxu0 %v466
      %730 = vmatpush.msra.mxu0 %v465
      %731 = vmatmul.f32.gmra.mxu0 %v713
      %v732 = vpop.f32.mrf.mxu0
      %v733 = vadd.f32 0.0, %v732
      %734 = vdwg.mxu0
      %v735 = vmul.f32 %v733, %v464
      %737 = vrot.lane.b32.xlu0 %v735, 80
      %v738 = vpop.permute.xlu0 %737
      %v740 = vadd.f32 %v710, %v738
      %v741 = vpack.c.bf16 %v740, %v740
      %742 = vrot.lane.b32.xlu0 %v463, 32
      %v743 = vpop.permute.xlu0 %742
      %v745 = vmul.f32 %v460, %v743
      %746 = vrot.lane.b32.xlu0 %v460, 96
      %v747 = vpop.permute.xlu0 %746
      %v748 = vsel %vm475, %v747, 0
      %750 = vmatpush.msra.mxu0 0.0
      %751 = vmatpush.msra.mxu0 0.0
      %752 = vmatpush.msra.mxu0 0.0
      %753 = vmatpush.msra.mxu0 0.0
      %754 = vmatpush.msra.mxu0 0.0
      %755 = vmatpush.msra.mxu0 0.0
      %756 = vmatpush.msra.mxu0 0.0
      %757 = vmatpush.msra.mxu0 0.0
      %758 = vmatpush.msra.mxu0 0.0
      %759 = vmatpush.msra.mxu0 0.0
      %760 = vmatpush.msra.mxu0 0.0
      %761 = vmatpush.msra.mxu0 0.0
      %762 = vmatpush.msra.mxu0 0.0
      %763 = vmatpush.msra.mxu0 0.0
      %764 = vmatpush.msra.mxu0 %v466
      %765 = vmatpush.msra.mxu0 %v465
      %766 = vmatmul.f32.gmra.mxu0 %v748
      %v767 = vpop.f32.mrf.mxu0
      %v768 = vadd.f32 0.0, %v767
      %769 = vdwg.mxu0
      %v770 = vmul.f32 %v768, %v464
      %772 = vrot.lane.b32.xlu0 %v770, 32
      %v773 = vpop.permute.xlu0 %772
      %v775 = vadd.f32 %v745, %v773
      %v776 = vpack.c.bf16 %v775, %v775
      %778 = vrot.lane.b32.xlu0 %v776, 96
      %v779 = vpop.permute.xlu0 %778
      %781 = vrot.lane.b32.xlu0 %v741, 48
      %v782 = vpop.permute.xlu0 %781
      %v784 = vsel %vm475, %v779, 0
      %v787 = vsel %vm475, %v782, 0
      %789 = vmatpush.bf16.xpose.msra.mxu0 0
      %790 = vmatpush.bf16.xpose.msra.mxu0 0
      %791 = vmatpush.bf16.xpose.msra.mxu0 0
      %792 = vmatpush.bf16.xpose.msra.mxu0 0
      %793 = vmatpush.bf16.xpose.msra.mxu0 0
      %794 = vmatpush.bf16.xpose.msra.mxu0 0
      %795 = vmatpush.bf16.xpose.msra.mxu0 0
      %796 = vmatpush.bf16.xpose.msra.mxu0 %v787
      %797 = vmatmul.bf16.gmra.mxu0 %v784
      %v798 = vpop.f32.mrf.mxu0
      %v799 = vadd.f32 0.0, %v798
      %v800 = vpop.f32.mrf.mxu0
      %801 = vdwg.mxu0
      %v802 = vmul.f32 %v799, 0.25
      %v803 = vsel %vm555, %v802, -inf
      %804 = vmax.xlane.f32.xlu0 %v803
      %v805 = vpop.xlane.xlu0 %804
      %v806 = vsub.f32 %v802, %v805
      %v807 = vmul.f32 %v806, 1.442695
      %v808 = vpow.pop %v807
      %v809 = vsel %vm555, %v808, 0.0
      %810 = vadd.xlane.f32.xlu0 %v809
      %v811 = vpop.xlane.xlu0 %810
      %v812 = vrcp.pop %v811
      %v813 = vmul.f32 %v811, %v812
      %v814 = vsub.f32 1.0, %v813
      %v815 = vmul.f32 %v812, %v814
      %v816 = vadd.f32 %v812, %v815
      %vm817 = vweird.f32 %v811
      %vm818 = vweird.f32 %v812
      %vm819 = vmor %vm817, %vm818
      %v820 = vsel %vm819, %v812, %v816
      %v821 = vand.u32 2147483647, %v811
      %vm822 = vcmp.eq.f32.partialorder %v821, 8.507059e+37
      %v823 = vand.u32 %v811, 2147483648
      %v824 = vor.u32 1.1754944e-38, %v823
      %v825 = vsel %vm822, %v824, %v820
      %v826 = vmul.f32 %v808, %v825
      %v827 = vpack.c.bf16 %v826, %v826
      %828 = vrot.lane.b32.xlu0 %v505, 16
      %v829 = vpop.permute.xlu0 %828
      %v831 = vsel %vm555, %v827, 0
      %v834 = vsel %vm587, %v829, 0
      %836 = vmatpush.bf16.msra.mxu0 0
      %837 = vmatpush.bf16.msra.mxu0 0
      %838 = vmatpush.bf16.msra.mxu0 0
      %839 = vmatpush.bf16.msra.mxu0 0
      %840 = vmatpush.bf16.msra.mxu0 0
      %841 = vmatpush.bf16.msra.mxu0 0
      %842 = vmatpush.bf16.msra.mxu0 0
      %843 = vmatpush.bf16.msra.mxu0 %v834
      %844 = vmatmul.bf16.gmra.mxu0 %v831
      %v845 = vpop.f32.mrf.mxu0
      %v846 = vadd.f32 0.0, %v845
      %v847 = vpop.f32.mrf.mxu0
      %848 = vdwg.mxu0
      %850 = vrot.lane.b32.xlu0 %v846, 32
      %v851 = vpop.permute.xlu0 %850
      %vm853 = vcmask 392448
      %854 = vst.msk [vmem:[#allocation2] sm:$0xff] %vm853, %v851
      %855 = vrot.lane.b32.xlu0 %v463, 48
      %v856 = vpop.permute.xlu0 %855
      %v858 = vmul.f32 %v460, %v856
      %859 = vrot.lane.b32.xlu0 %v460, 80
      %v860 = vpop.permute.xlu0 %859
      %v861 = vsel %vm475, %v860, 0
      %863 = vmatpush.msra.mxu0 0.0
      %864 = vmatpush.msra.mxu0 0.0
      %865 = vmatpush.msra.mxu0 0.0
      %866 = vmatpush.msra.mxu0 0.0
      %867 = vmatpush.msra.mxu0 0.0
      %868 = vmatpush.msra.mxu0 0.0
      %869 = vmatpush.msra.mxu0 0.0
      %870 = vmatpush.msra.mxu0 0.0
      %871 = vmatpush.msra.mxu0 0.0
      %872 = vmatpush.msra.mxu0 0.0
      %873 = vmatpush.msra.mxu0 0.0
      %874 = vmatpush.msra.mxu0 0.0
      %875 = vmatpush.msra.mxu0 0.0
      %876 = vmatpush.msra.mxu0 0.0
      %877 = vmatpush.msra.mxu0 %v466
      %878 = vmatpush.msra.mxu0 %v465
      %879 = vmatmul.f32.gmra.mxu0 %v861
      %v880 = vpop.f32.mrf.mxu0
      %v881 = vadd.f32 0.0, %v880
      %882 = vdwg.mxu0
      %v883 = vmul.f32 %v881, %v464
      %885 = vrot.lane.b32.xlu0 %v883, 48
      %v886 = vpop.permute.xlu0 %885
      %v888 = vadd.f32 %v858, %v886
      %v889 = vpack.c.bf16 %v888, %v888
      %891 = vrot.lane.b32.xlu0 %v889, 80
      %v892 = vpop.permute.xlu0 %891
      %v894 = vsel %vm475, %v892, 0
      %896 = vmatpush.bf16.xpose.msra.mxu0 0
      %897 = vmatpush.bf16.xpose.msra.mxu0 0
      %898 = vmatpush.bf16.xpose.msra.mxu0 0
      %899 = vmatpush.bf16.xpose.msra.mxu0 0
      %900 = vmatpush.bf16.xpose.msra.mxu0 0
      %901 = vmatpush.bf16.xpose.msra.mxu0 0
      %902 = vmatpush.bf16.xpose.msra.mxu0 0
      %903 = vmatpush.bf16.xpose.msra.mxu0 %v787
      %904 = vmatmul.bf16.gmra.mxu0 %v894
      %v905 = vpop.f32.mrf.mxu0
      %v906 = vadd.f32 0.0, %v905
      %v907 = vpop.f32.mrf.mxu0
      %908 = vdwg.mxu0
      %v909 = vmul.f32 %v906, 0.25
      %v910 = vsel %vm555, %v909, -inf
      %911 = vmax.xlane.f32.xlu0 %v910
      %v912 = vpop.xlane.xlu0 %911
      %v913 = vsub.f32 %v909, %v912
      %v914 = vmul.f32 %v913, 1.442695
      %v915 = vpow.pop %v914
      %v916 = vsel %vm555, %v915, 0.0
      %917 = vadd.xlane.f32.xlu0 %v916
      %v918 = vpop.xlane.xlu0 %917
      %v919 = vrcp.pop %v918
      %v920 = vmul.f32 %v918, %v919
      %v921 = vsub.f32 1.0, %v920
      %v922 = vmul.f32 %v919, %v921
      %v923 = vadd.f32 %v919, %v922
      %vm924 = vweird.f32 %v918
      %vm925 = vweird.f32 %v919
      %vm926 = vmor %vm924, %vm925
      %v927 = vsel %vm926, %v919, %v923
      %v928 = vand.u32 2147483647, %v918
      %vm929 = vcmp.eq.f32.partialorder %v928, 8.507059e+37
      %v930 = vand.u32 %v918, 2147483648
      %v931 = vor.u32 1.1754944e-38, %v930
      %v932 = vsel %vm929, %v931, %v927
      %v933 = vmul.f32 %v915, %v932
      %v934 = vpack.c.bf16 %v933, %v933
      %v936 = vsel %vm555, %v934, 0
      %938 = vmatpush.bf16.msra.mxu0 0
      %939 = vmatpush.bf16.msra.mxu0 0
      %940 = vmatpush.bf16.msra.mxu0 0
      %941 = vmatpush.bf16.msra.mxu0 0
      %942 = vmatpush.bf16.msra.mxu0 0
      %943 = vmatpush.bf16.msra.mxu0 0
      %944 = vmatpush.bf16.msra.mxu0 0
      %945 = vmatpush.bf16.msra.mxu0 %v834
      %946 = vmatmul.bf16.gmra.mxu0 %v936
      %v947 = vpop.f32.mrf.mxu0
      %v948 = vadd.f32 0.0, %v947
      %v949 = vpop.f32.mrf.mxu0
      %950 = vdwg.mxu0
      %952 = vrot.lane.b32.xlu0 %v948, 48
      %v953 = vpop.permute.xlu0 %952
      %vm955 = vcmask 523648
      %956 = vst.msk [vmem:[#allocation2] sm:$0xff] %vm955, %v953
      %v957 = vld [vmem:[#allocation2] sm:$0xff]
      %v958 = vpack.c.bf16 %v957, %v957
      %v959 = vld [vmem:[%s4] sm:$0xf]
      %v960 = vld [vmem:[%s4 + $0x4] sm:$0xf]
      %v961 = vld [vmem:[%s4 + $0x8] sm:$0xf]
      %v962 = vld [vmem:[%s4 + $0xc] sm:$0xf]
      %v963 = vld [vmem:[%s4 + $0x10] sm:$0xf]
      %v964 = vld [vmem:[%s4 + $0x14] sm:$0xf]
      %v965 = vld [vmem:[%s4 + $0x18] sm:$0xf]
      %v966 = vld [vmem:[%s4 + $0x1c] sm:$0xf]
      %v975 = vunpack.c.l.b16 %v959
      %v976 = vunpack.c.l.b16 %v960
      %v977 = vunpack.c.l.b16 %v961
      %v978 = vunpack.c.l.b16 %v962
      %v979 = vunpack.c.l.b16 %v963
      %v980 = vunpack.c.l.b16 %v964
      %v981 = vunpack.c.l.b16 %v965
      %v982 = vunpack.c.l.b16 %v966
      %v983 = vpack.c.b16 %v976, %v975
      %v984 = vpack.c.b16 %v978, %v977
      %v985 = vpack.c.b16 %v980, %v979
      %v986 = vpack.c.b16 %v982, %v981
      %v992 = vsel %vm386, %v958, 0
      %994 = vmatpush.bf16.msra.mxu0 0
      %995 = vmatpush.bf16.msra.mxu0 0
      %996 = vmatpush.bf16.msra.mxu0 0
      %997 = vmatpush.bf16.msra.mxu0 0
      %998 = vmatpush.bf16.msra.mxu0 %v986
      %999 = vmatpush.bf16.msra.mxu0 %v985
      %1000 = vmatpush.bf16.msra.mxu0 %v984
      %1001 = vmatpush.bf16.msra.mxu0 %v983
      %1002 = vmatmul.bf16.gmra.mxu0 %v992
      %v1003 = vpop.f32.mrf.mxu0
      %v1004 = vadd.f32 0.0, %v1003
      %v1005 = vpop.f32.mrf.mxu0
      %1006 = vdwg.mxu0
      %v1007 = vadd.f32 %v383, %v1004
      %v1008 = vld [vmem:[%s2] sm:$0x1]
      %v1009 = vmul.f32 %v1007, %v1007
      %v1010 = vsel %vm386, %v1009, 0.0
      %1011 = vadd.xlane.f32.xlu0 %v1010
      %v1012 = vpop.xlane.xlu0 %1011
      %v1013 = vmul.f32 %v1012, %v396
      %v1015 = vperm.slane %v1008, 0
      %v1017 = vmul.f32 %v1015, %v1007
      %v1018 = vadd.f32 %v1013, 1e-05
      %v1019 = vrsqrt.pop %v1018
      %v1020 = vmul.f32 %v1019, %v1018
      %v1021 = vmul.f32 %v1020, %v1019
      %v1022 = vmul.f32 0.5, %v1021
      %v1023 = vsub.f32 1.5, %v1022
      %v1024 = vmul.f32 %v1019, %v1023
      %vm1025 = vweird.f32 %v1018
      %vm1026 = vweird.f32 %v1019
      %vm1027 = vmor %vm1025, %vm1026
      %v1028 = vsel %vm1027, %v1019, %v1024
      %v1029 = vmul.f32 %v1017, %v1028
      %v1030 = vpack.c.bf16 %v1029, %v1029
      %v1031 = vld [vmem:[%s8] sm:$0xff]
      %v1032 = vld [vmem:[%s8 + $0x8] sm:$0xff]
      %v1033 = vld [vmem:[%s8 + $0x10] sm:$0xff]
      %v1034 = vld [vmem:[%s8 + $0x18] sm:$0xff]
      %v1035 = vld [vmem:[%s8 + $0x20] sm:$0xff]
      %v1036 = vld [vmem:[%s8 + $0x28] sm:$0xff]
      %v1037 = vld [vmem:[%s8 + $0x30] sm:$0xff]
      %v1038 = vld [vmem:[%s8 + $0x38] sm:$0xff]
      %v1047 = vunpack.c.l.b16 %v1031
      %v1048 = vunpack.c.h.b16 %v1031
      %v1049 = vunpack.c.l.b16 %v1032
      %v1050 = vunpack.c.h.b16 %v1032
      %v1051 = vunpack.c.l.b16 %v1033
      %v1052 = vunpack.c.h.b16 %v1033
      %v1053 = vunpack.c.l.b16 %v1034
      %v1054 = vunpack.c.h.b16 %v1034
      %v1055 = vunpack.c.l.b16 %v1035
      %v1056 = vunpack.c.h.b16 %v1035
      %v1057 = vunpack.c.l.b16 %v1036
      %v1058 = vunpack.c.h.b16 %v1036
      %v1059 = vunpack.c.l.b16 %v1037
      %v1060 = vunpack.c.h.b16 %v1037
      %v1061 = vunpack.c.l.b16 %v1038
      %v1062 = vunpack.c.h.b16 %v1038
      %v1063 = vpack.c.b16 %v1049, %v1047
      %v1064 = vpack.c.b16 %v1050, %v1048
      %v1065 = vpack.c.b16 %v1053, %v1051
      %v1066 = vpack.c.b16 %v1054, %v1052
      %v1067 = vpack.c.b16 %v1057, %v1055
      %v1068 = vpack.c.b16 %v1058, %v1056
      %v1069 = vpack.c.b16 %v1061, %v1059
      %v1070 = vpack.c.b16 %v1062, %v1060
      %v1080 = vsel %vm386, %v1030, 0
      %1082 = vmatpush.bf16.msra.mxu0 0
      %1083 = vmatpush.bf16.msra.mxu0 0
      %1084 = vmatpush.bf16.msra.mxu0 0
      %1085 = vmatpush.bf16.msra.mxu0 0
      %1086 = vmatpush.bf16.msra.mxu0 %v1069
      %1087 = vmatpush.bf16.msra.mxu0 %v1067
      %1088 = vmatpush.bf16.msra.mxu0 %v1065
      %1089 = vmatpush.bf16.msra.mxu0 %v1063
      %1090 = vmatmul.bf16.gmra.mxu0 %v1080
      %v1091 = vpop.f32.mrf.mxu0
      %v1092 = vadd.f32 0.0, %v1091
      %v1093 = vpop.f32.mrf.mxu0
      %1094 = vdwg.mxu0
      %1095 = vmatpush.bf16.msra.mxu0 0
      %1096 = vmatpush.bf16.msra.mxu0 0
      %1097 = vmatpush.bf16.msra.mxu0 0
      %1098 = vmatpush.bf16.msra.mxu0 0
      %1099 = vmatpush.bf16.msra.mxu0 %v1070
      %1100 = vmatpush.bf16.msra.mxu0 %v1068
      %1101 = vmatpush.bf16.msra.mxu0 %v1066
      %1102 = vmatpush.bf16.msra.mxu0 %v1064
      %1103 = vmatmul.bf16.gmra.mxu0 %v1080
      %v1104 = vpop.f32.mrf.mxu0
      %v1105 = vadd.f32 0.0, %v1104
      %v1106 = vpop.f32.mrf.mxu0
      %1107 = vdwg.mxu0
      %v1108 = vxor.u32 %v1092, 2147483648
      %v1109 = vmul.f32 %v1108, 1.442695
      %v1110 = vpow.pop %v1109
      %v1111 = vadd.f32 %v1110, 1.0
      %v1112 = vrcp.pop %v1111
      %v1113 = vmul.f32 %v1111, %v1112
      %v1114 = vsub.f32 1.0, %v1113
      %v1115 = vmul.f32 %v1112, %v1114
      %v1116 = vadd.f32 %v1112, %v1115
      %vm1117 = vweird.f32 %v1111
      %vm1118 = vweird.f32 %v1112
      %vm1119 = vmor %vm1117, %vm1118
      %v1120 = vsel %vm1119, %v1112, %v1116
      %v1121 = vand.u32 2147483647, %v1111
      %vm1122 = vcmp.eq.f32.partialorder %v1121, 8.507059e+37
      %v1123 = vand.u32 %v1111, 2147483648
      %v1124 = vor.u32 1.1754944e-38, %v1123
      %v1125 = vsel %vm1122, %v1124, %v1120
      %v1126 = vmul.f32 1.0, %v1125
      %v1127 = vmul.f32 %v1092, %v1126
      %v1128 = vmul.f32 %v1127, %v1105
      %v1129 = vpack.c.bf16 %v1128, %v1128
      %v1130 = vld [vmem:[%s9] sm:$0xf]
      %v1131 = vld [vmem:[%s9 + $0x4] sm:$0xf]
      %v1132 = vld [vmem:[%s9 + $0x8] sm:$0xf]
      %v1133 = vld [vmem:[%s9 + $0xc] sm:$0xf]
      %v1134 = vld [vmem:[%s9 + $0x10] sm:$0xf]
      %v1135 = vld [vmem:[%s9 + $0x14] sm:$0xf]
      %v1136 = vld [vmem:[%s9 + $0x18] sm:$0xf]
      %v1137 = vld [vmem:[%s9 + $0x1c] sm:$0xf]
      %v1138 = vld [vmem:[%s9 + $0x20] sm:$0xf]
      %v1139 = vld [vmem:[%s9 + $0x24] sm:$0xf]
      %v1140 = vld [vmem:[%s9 + $0x28] sm:$0xf]
      %v1141 = vld [vmem:[%s9 + $0x2c] sm:$0xf]
      %v1142 = vld [vmem:[%s9 + $0x30] sm:$0xf]
      %v1143 = vld [vmem:[%s9 + $0x34] sm:$0xf]
      %v1144 = vld [vmem:[%s9 + $0x38] sm:$0xf]
      %v1145 = vld [vmem:[%s9 + $0x3c] sm:$0xf]
      %v1162 = vunpack.c.l.b16 %v1130
      %v1163 = vunpack.c.l.b16 %v1131
      %v1164 = vunpack.c.l.b16 %v1132
      %v1165 = vunpack.c.l.b16 %v1133
      %v1166 = vunpack.c.l.b16 %v1134
      %v1167 = vunpack.c.l.b16 %v1135
      %v1168 = vunpack.c.l.b16 %v1136
      %v1169 = vunpack.c.l.b16 %v1137
      %v1170 = vunpack.c.l.b16 %v1138
      %v1171 = vunpack.c.l.b16 %v1139
      %v1172 = vunpack.c.l.b16 %v1140
      %v1173 = vunpack.c.l.b16 %v1141
      %v1174 = vunpack.c.l.b16 %v1142
      %v1175 = vunpack.c.l.b16 %v1143
      %v1176 = vunpack.c.l.b16 %v1144
      %v1177 = vunpack.c.l.b16 %v1145
      %v1178 = vpack.c.b16 %v1163, %v1162
      %v1179 = vpack.c.b16 %v1165, %v1164
      %v1180 = vpack.c.b16 %v1167, %v1166
      %v1181 = vpack.c.b16 %v1169, %v1168
      %v1182 = vpack.c.b16 %v1171, %v1170
      %v1183 = vpack.c.b16 %v1173, %v1172
      %v1184 = vpack.c.b16 %v1175, %v1174
      %v1185 = vpack.c.b16 %v1177, %v1176
      %1194 = vmatpush.bf16.msra.mxu0 %v1185
      %1195 = vmatpush.bf16.msra.mxu0 %v1184
      %1196 = vmatpush.bf16.msra.mxu0 %v1183
      %1197 = vmatpush.bf16.msra.mxu0 %v1182
      %1198 = vmatpush.bf16.msra.mxu0 %v1181
      %1199 = vmatpush.bf16.msra.mxu0 %v1180
      %1200 = vmatpush.bf16.msra.mxu0 %v1179
      %1201 = vmatpush.bf16.msra.mxu0 %v1178
      %1202 = vmatmul.bf16.gmra.mxu0 %v1129
      %v1203 = vpop.f32.mrf.mxu0
      %v1204 = vadd.f32 0.0, %v1203
      %v1205 = vpop.f32.mrf.mxu0
      %1206 = vdwg.mxu0
      %v1207 = vadd.f32 %v1007, %v1204
      %v1208 = vld [vmem:[%s10] sm:$0x1]
      %v1209 = vmul.f32 %v1207, %v1207
      %v1210 = vsel %vm386, %v1209, 0.0
      %1211 = vadd.xlane.f32.xlu0 %v1210
      %v1212 = vpop.xlane.xlu0 %1211
      %v1213 = vmul.f32 %v1212, %v396
      %v1215 = vperm.slane %v1208, 0
      %v1217 = vmul.f32 %v1215, %v1207
      %v1218 = vadd.f32 %v1213, 1e-05
      %v1219 = vrsqrt.pop %v1218
      %v1220 = vmul.f32 %v1219, %v1218
      %v1221 = vmul.f32 %v1220, %v1219
      %v1222 = vmul.f32 0.5, %v1221
      %v1223 = vsub.f32 1.5, %v1222
      %v1224 = vmul.f32 %v1219, %v1223
      %vm1225 = vweird.f32 %v1218
      %vm1226 = vweird.f32 %v1219
      %vm1227 = vmor %vm1225, %vm1226
      %v1228 = vsel %vm1227, %v1219, %v1224
      %v1229 = vmul.f32 %v1217, %v1228
      %1230 = vst.msk [vmem:[%s381] sm:$0xff] %vm386, %v1229
      %p1231 = scmp.lt.s32.totalorder %s22, 1
      %s1232 = scalar_select %p1231, %s22, 1
      %s1233 = smul.addr %s1232, 8
      %s1234 = scalar_lea.vmem %s11, %s1233
      // Predicated region
      $region65: #{mistral_moe_forward.3} parent=63 // pred_check
        %p1235 = pneg %p276
      $region66: #{mistral_moe_forward.3} parent=63 // pred_check_branch
        %1237 = sbr.rel (%p1235) target = $region68
      $region67: #{mistral_moe_forward.3} parent=63 // pred_region
        _
      $region68: #{mistral_moe_forward.3} parent=63 // pred_fallthru
        _
    $region64: #{mistral_moe_forward.3} parent=5 // pred_fallthru
      _
    %p1238 = scmp.le.s32.totalorder 2, %s17
    // Predicated region
    $region69: #{mistral_moe_forward.3} parent=5 // pred_check
      %p1239 = pneg %p1238
    $region70: #{mistral_moe_forward.3} parent=5 // pred_check_branch
      %1241 = sbr.rel (%p1239) target = $region72
    $region71: #{mistral_moe_forward.3} parent=5 // pred_region
      %s1242 = ssub.s32 %s17, 2
      // Predicated region
      $region73: #{mistral_moe_forward.3} parent=71 // pred_check
        %p1243 = pneg %p282
      $region74: #{mistral_moe_forward.3} parent=71 // pred_check_branch
        %1245 = sbr.rel (%p1243) target = $region76
      $region75: #{mistral_moe_forward.3} parent=71 // pred_region
        %p1246 = scmp.lt.s32.totalorder %s23, 1
        %s1247 = scalar_select %p1246, %s23, 1
        %s1248 = smul.addr %s1247, 8
        %s1249 = scalar_lea.vmem %s11, %s1248
      $region76: #{mistral_moe_forward.3} parent=71 // pred_fallthru
        _
    $region72: #{mistral_moe_forward.3} parent=5 // pred_fallthru
      _
  $region6: #{mistral_moe_forward.3} parent=0 // loop_footer
    %s21 = sadd.s32 1, %s17
  $region7: #{mistral_moe_forward.3} parent=0 // loop_footer_branch
    %16 = sbr.rel target = $region3
  $region8: #{mistral_moe_forward.3} parent=0 // loop_exit
    _

// kernel: mistral_moe_forward.2
$region0: #{mistral_moe_forward.2}
  #allocation0 [shape = 'u32[]', space=smem, size = 0x4, offset = 0x4, fixed_abs, tag = 'smem constant byte address 0x4 - core index']
  #allocation1 [shape = 'u32[72,128]{1,0:T(1,128)}', space=vmem, size = 0x9000, scoped, tag = 'internal scratch']
  #allocation2 [shape = 'f32[8,64]{1,0:T(8,128)}', space=vmem, size = 0x1000, scoped, tag = 'scratch operand']
  %s0 = inlined_call_operand.vmem [shape: f32[16,64], index: 0, kind: input, shape index: {}, may-alias: {0,11}]
  %s1 = inlined_call_operand.vmem [shape: f32[1,64], index: 1, kind: input, shape index: {}]
  %s2 = inlined_call_operand.vmem [shape: f32[1,64], index: 2, kind: input, shape index: {}]
  %s3 = inlined_call_operand.vmem [shape: bf16[64,128], index: 3, kind: input, shape index: {}]
  %s4 = inlined_call_operand.vmem [shape: bf16[64,64], index: 4, kind: input, shape index: {}]
  %s5 = inlined_call_operand.vmem [shape: f32[16,16], index: 5, kind: input, shape index: {}]
  %s6 = inlined_call_operand.vmem [shape: f32[8,16], index: 6, kind: input, shape index: {}]
  %s7 = inlined_call_operand.vmem [shape: f32[8,16], index: 7, kind: input, shape index: {}]
  %s8 = inlined_call_operand.vmem [shape: bf16[64,4], index: 8, kind: input, shape index: {}]
  %s9 = inlined_call_operand.vmem [shape: bf16[4,64,256], index: 9, kind: input, shape index: {}]
  %s10 = inlined_call_operand.vmem [shape: bf16[4,128,64], index: 10, kind: input, shape index: {}]
  %s11 = inlined_call_operand.vmem [shape: f32[16,64], index: 11, kind: output, shape index: {}, may-alias: {0,11}]
  %s12 = sld [smem:[#allocation0]]
  $region77: #{mistral_moe_forward.2} parent=0
    _
  %s14 = ssub.s32 1, %s12
  %s15 = scalar_select 0, %s14, %s12
  loop: start=0, step=1, limit=4
  $region2: #{mistral_moe_forward.2} parent=0 // loop_pre_header
    _
  $region3: #{mistral_moe_forward.2} parent=0 // loop_header
    %s17 = sphi 0, %s21
    %p18 = scmp.ge.s32.totalorder %s17, 4
    %s27 = sphi 0, %s29
    %s30 = sphi 0, %s27
    %s31 = sphi 0, %s30
    %s47 = sphi 0, %s31
    %s51 = sphi 0, %s51
    %s53 = sphi 0, %s51
    %s54 = sphi 0, %s53
    %s68 = sphi 0, %s54
    %s72 = sphi 0, %s72
    %s74 = sphi 0, %s72
    %s75 = sphi 0, %s74
    %s89 = sphi 0, %s75
    %s93 = sphi 0, %s93
    %s95 = sphi 0, %s93
    %s96 = sphi 0, %s95
    %s110 = sphi 0, %s96
    %s114 = sphi 0, %s114
    %s116 = sphi 0, %s114
    %s117 = sphi 0, %s116
    %s131 = sphi 0, %s117
    %s135 = sphi 0, %s135
    %s137 = sphi 0, %s135
    %s138 = sphi 0, %s137
    %s152 = sphi 0, %s138
    %s156 = sphi 0, %s156
    %s158 = sphi 0, %s156
    %s159 = sphi 0, %s158
    %s173 = sphi 0, %s159
    %s177 = sphi 0, %s177
    %s179 = sphi 0, %s177
    %s180 = sphi 0, %s179
    %s194 = sphi 0, %s180
    %s198 = sphi 0, %s198
    %s200 = sphi 0, %s198
    %s201 = sphi 0, %s200
    %s215 = sphi 0, %s201
    %s219 = sphi 0, %s219
    %s221 = sphi 0, %s219
    %s222 = sphi 0, %s221
    %s236 = sphi 0, %s222
    %s240 = sphi 0, %s240
    %s242 = sphi 0, %s240
    %s243 = sphi 0, %s242
    %s257 = sphi 0, %s243
    %s263 = sphi 0, %s265
    %s266 = sphi 0, %s263
    %s267 = sphi 0, %s266
    %s283 = sphi 0, %s267
  $region4: #{mistral_moe_forward.2} parent=0 // loop_header_branch
    %20 = sbr.rel (%p18) target = $region8
  $region5: #{mistral_moe_forward.2} parent=0 // loop_body
    %s22 = ssub.s32 %s17, 1
    %s23 = ssub.s32 %s17, 2
    %s24 = sadd.s32 %s17, 1
    %s25 = ssub.s32 %s17, %s24
    %p26 = scmp.eq.s32.totalorder %s25, 0
    %s28 = sadd.s32 %s27, 1
    %s29 = scalar_select %p26, %s27, %s28
    %p32 = pneg %p26
    %p33 = scmp.eq.s32.totalorder %s17, 1
    %p34 = por %p32, %p33
    %p35 = scmp.ne.s32.totalorder %s27, %s30
    %p36 = scmp.eq.s32.totalorder %s17, 0
    %p37 = por %p35, %p36
    %p38 = scmp.ne.s32.totalorder %s27, %s30
    %p39 = scmp.eq.s32.totalorder %s22, 1
    %p40 = por %p38, %p39
    %p41 = scmp.ne.s32.totalorder %s30, %s31
    %p42 = scmp.eq.s32.totalorder %s22, 0
    %p43 = por %p41, %p42
    %p44 = scmp.ne.s32.totalorder %s30, %s31
    %p45 = scmp.eq.s32.totalorder %s23, 1
    %p46 = por %p44, %p45
    %p48 = scmp.ne.s32.totalorder %s31, %s47
    %p49 = scmp.eq.s32.totalorder %s23, 0
    %p50 = por %p48, %p49
    %s52 = sadd.s32 %s51, 1
    %p55 = scmp.eq.s32.totalorder %s17, 1
    %p56 = scmp.ne.s32.totalorder %s51, %s53
    %p57 = scmp.eq.s32.totalorder %s17, 0
    %p58 = por %p56, %p57
    %p59 = scmp.ne.s32.totalorder %s51, %s53
    %p60 = scmp.eq.s32.totalorder %s22, 1
    %p61 = por %p59, %p60
    %p62 = scmp.ne.s32.totalorder %s53, %s54
    %p63 = scmp.eq.s32.totalorder %s22, 0
    %p64 = por %p62, %p63
    %p65 = scmp.ne.s32.totalorder %s53, %s54
    %p66 = scmp.eq.s32.totalorder %s23, 1
    %p67 = por %p65, %p66
    %p69 = scmp.ne.s32.totalorder %s54, %s68
    %p70 = scmp.eq.s32.totalorder %s23, 0
    %p71 = por %p69, %p70
    %s73 = sadd.s32 %s72, 1
    %p76 = scmp.eq.s32.totalorder %s17, 1
    %p77 = scmp.ne.s32.totalorder %s72, %s74
    %p78 = scmp.eq.s32.totalorder %s17, 0
    %p79 = por %p77, %p78
    %p80 = scmp.ne.s32.totalorder %s72, %s74
    %p81 = scmp.eq.s32.totalorder %s22, 1
    %p82 = por %p80, %p81
    %p83 = scmp.ne.s32.totalorder %s74, %s75
    %p84 = scmp.eq.s32.totalorder %s22, 0
    %p85 = por %p83, %p84
    %p86 = scmp.ne.s32.totalorder %s74, %s75
    %p87 = scmp.eq.s32.totalorder %s23, 1
    %p88 = por %p86, %p87
    %p90 = scmp.ne.s32.totalorder %s75, %s89
    %p91 = scmp.eq.s32.totalorder %s23, 0
    %p92 = por %p90, %p91
    %s94 = sadd.s32 %s93, 1
    %p97 = scmp.eq.s32.totalorder %s17, 1
    %p98 = scmp.ne.s32.totalorder %s93, %s95
    %p99 = scmp.eq.s32.totalorder %s17, 0
    %p100 = por %p98, %p99
    %p101 = scmp.ne.s32.totalorder %s93, %s95
    %p102 = scmp.eq.s32.totalorder %s22, 1
    %p103 = por %p101, %p102
    %p104 = scmp.ne.s32.totalorder %s95, %s96
    %p105 = scmp.eq.s32.totalorder %s22, 0
    %p106 = por %p104, %p105
    %p107 = scmp.ne.s32.totalorder %s95, %s96
    %p108 = scmp.eq.s32.totalorder %s23, 1
    %p109 = por %p107, %p108
    %p111 = scmp.ne.s32.totalorder %s96, %s110
    %p112 = scmp.eq.s32.totalorder %s23, 0
    %p113 = por %p111, %p112
    %s115 = sadd.s32 %s114, 1
    %p118 = scmp.eq.s32.totalorder %s17, 1
    %p119 = scmp.ne.s32.totalorder %s114, %s116
    %p120 = scmp.eq.s32.totalorder %s17, 0
    %p121 = por %p119, %p120
    %p122 = scmp.ne.s32.totalorder %s114, %s116
    %p123 = scmp.eq.s32.totalorder %s22, 1
    %p124 = por %p122, %p123
    %p125 = scmp.ne.s32.totalorder %s116, %s117
    %p126 = scmp.eq.s32.totalorder %s22, 0
    %p127 = por %p125, %p126
    %p128 = scmp.ne.s32.totalorder %s116, %s117
    %p129 = scmp.eq.s32.totalorder %s23, 1
    %p130 = por %p128, %p129
    %p132 = scmp.ne.s32.totalorder %s117, %s131
    %p133 = scmp.eq.s32.totalorder %s23, 0
    %p134 = por %p132, %p133
    %s136 = sadd.s32 %s135, 1
    %p139 = scmp.eq.s32.totalorder %s17, 1
    %p140 = scmp.ne.s32.totalorder %s135, %s137
    %p141 = scmp.eq.s32.totalorder %s17, 0
    %p142 = por %p140, %p141
    %p143 = scmp.ne.s32.totalorder %s135, %s137
    %p144 = scmp.eq.s32.totalorder %s22, 1
    %p145 = por %p143, %p144
    %p146 = scmp.ne.s32.totalorder %s137, %s138
    %p147 = scmp.eq.s32.totalorder %s22, 0
    %p148 = por %p146, %p147
    %p149 = scmp.ne.s32.totalorder %s137, %s138
    %p150 = scmp.eq.s32.totalorder %s23, 1
    %p151 = por %p149, %p150
    %p153 = scmp.ne.s32.totalorder %s138, %s152
    %p154 = scmp.eq.s32.totalorder %s23, 0
    %p155 = por %p153, %p154
    %s157 = sadd.s32 %s156, 1
    %p160 = scmp.eq.s32.totalorder %s17, 1
    %p161 = scmp.ne.s32.totalorder %s156, %s158
    %p162 = scmp.eq.s32.totalorder %s17, 0
    %p163 = por %p161, %p162
    %p164 = scmp.ne.s32.totalorder %s156, %s158
    %p165 = scmp.eq.s32.totalorder %s22, 1
    %p166 = por %p164, %p165
    %p167 = scmp.ne.s32.totalorder %s158, %s159
    %p168 = scmp.eq.s32.totalorder %s22, 0
    %p169 = por %p167, %p168
    %p170 = scmp.ne.s32.totalorder %s158, %s159
    %p171 = scmp.eq.s32.totalorder %s23, 1
    %p172 = por %p170, %p171
    %p174 = scmp.ne.s32.totalorder %s159, %s173
    %p175 = scmp.eq.s32.totalorder %s23, 0
    %p176 = por %p174, %p175
    %s178 = sadd.s32 %s177, 1
    %p181 = scmp.eq.s32.totalorder %s17, 1
    %p182 = scmp.ne.s32.totalorder %s177, %s179
    %p183 = scmp.eq.s32.totalorder %s17, 0
    %p184 = por %p182, %p183
    %p185 = scmp.ne.s32.totalorder %s177, %s179
    %p186 = scmp.eq.s32.totalorder %s22, 1
    %p187 = por %p185, %p186
    %p188 = scmp.ne.s32.totalorder %s179, %s180
    %p189 = scmp.eq.s32.totalorder %s22, 0
    %p190 = por %p188, %p189
    %p191 = scmp.ne.s32.totalorder %s179, %s180
    %p192 = scmp.eq.s32.totalorder %s23, 1
    %p193 = por %p191, %p192
    %p195 = scmp.ne.s32.totalorder %s180, %s194
    %p196 = scmp.eq.s32.totalorder %s23, 0
    %p197 = por %p195, %p196
    %s199 = sadd.s32 %s198, 1
    %p202 = scmp.eq.s32.totalorder %s17, 1
    %p203 = scmp.ne.s32.totalorder %s198, %s200
    %p204 = scmp.eq.s32.totalorder %s17, 0
    %p205 = por %p203, %p204
    %p206 = scmp.ne.s32.totalorder %s198, %s200
    %p207 = scmp.eq.s32.totalorder %s22, 1
    %p208 = por %p206, %p207
    %p209 = scmp.ne.s32.totalorder %s200, %s201
    %p210 = scmp.eq.s32.totalorder %s22, 0
    %p211 = por %p209, %p210
    %p212 = scmp.ne.s32.totalorder %s200, %s201
    %p213 = scmp.eq.s32.totalorder %s23, 1
    %p214 = por %p212, %p213
    %p216 = scmp.ne.s32.totalorder %s201, %s215
    %p217 = scmp.eq.s32.totalorder %s23, 0
    %p218 = por %p216, %p217
    %s220 = sadd.s32 %s219, 1
    %p223 = scmp.eq.s32.totalorder %s17, 1
    %p224 = scmp.ne.s32.totalorder %s219, %s221
    %p225 = scmp.eq.s32.totalorder %s17, 0
    %p226 = por %p224, %p225
    %p227 = scmp.ne.s32.totalorder %s219, %s221
    %p228 = scmp.eq.s32.totalorder %s22, 1
    %p229 = por %p227, %p228
    %p230 = scmp.ne.s32.totalorder %s221, %s222
    %p231 = scmp.eq.s32.totalorder %s22, 0
    %p232 = por %p230, %p231
    %p233 = scmp.ne.s32.totalorder %s221, %s222
    %p234 = scmp.eq.s32.totalorder %s23, 1
    %p235 = por %p233, %p234
    %p237 = scmp.ne.s32.totalorder %s222, %s236
    %p238 = scmp.eq.s32.totalorder %s23, 0
    %p239 = por %p237, %p238
    %s241 = sadd.s32 %s240, 1
    %p244 = scmp.eq.s32.totalorder %s17, 1
    %p245 = scmp.ne.s32.totalorder %s240, %s242
    %p246 = scmp.eq.s32.totalorder %s17, 0
    %p247 = por %p245, %p246
    %p248 = scmp.ne.s32.totalorder %s240, %s242
    %p249 = scmp.eq.s32.totalorder %s22, 1
    %p250 = por %p248, %p249
    %p251 = scmp.ne.s32.totalorder %s242, %s243
    %p252 = scmp.eq.s32.totalorder %s22, 0
    %p253 = por %p251, %p252
    %p254 = scmp.ne.s32.totalorder %s242, %s243
    %p255 = scmp.eq.s32.totalorder %s23, 1
    %p256 = por %p254, %p255
    %p258 = scmp.ne.s32.totalorder %s243, %s257
    %p259 = scmp.eq.s32.totalorder %s23, 0
    %p260 = por %p258, %p259
    %s261 = ssub.s32 %s17, %s24
    %p262 = scmp.eq.s32.totalorder %s261, 0
    %s264 = sadd.s32 %s263, 1
    %s265 = scalar_select %p262, %s263, %s264
    %p268 = pneg %p262
    %p269 = scmp.eq.s32.totalorder %s17, 1
    %p270 = por %p268, %p269
    %p271 = scmp.ne.s32.totalorder %s263, %s266
    %p272 = scmp.eq.s32.totalorder %s17, 0
    %p273 = por %p271, %p272
    %p274 = scmp.ne.s32.totalorder %s263, %s266
    %p275 = scmp.eq.s32.totalorder %s22, 1
    %p276 = por %p274, %p275
    %p277 = scmp.ne.s32.totalorder %s266, %s267
    %p278 = scmp.eq.s32.totalorder %s22, 0
    %p279 = por %p277, %p278
    %p280 = scmp.ne.s32.totalorder %s266, %s267
    %p281 = scmp.eq.s32.totalorder %s23, 1
    %p282 = por %p280, %p281
    %p284 = scmp.ne.s32.totalorder %s267, %s283
    %p285 = scmp.eq.s32.totalorder %s23, 0
    %p286 = por %p284, %p285
    %p287 = scmp.le.s32.totalorder 1, %s17
    %p288 = scmp.lt.s32.totalorder %s17, 3
    %p289 = pnand %p287, %p288
    %p290 = pneg %p289
    // Predicated region
    $region9: #{mistral_moe_forward.2} parent=5 // pred_check
      _
    $region10: #{mistral_moe_forward.2} parent=5 // pred_check_branch
      %292 = sbr.rel (%p289) target = $region12
    $region11: #{mistral_moe_forward.2} parent=5 // pred_region
      %s293 = ssub.s32 %s17, 1
      // Predicated region
      $region13: #{mistral_moe_forward.2} parent=11 // pred_check
        %p294 = pneg %p64
      $region14: #{mistral_moe_forward.2} parent=11 // pred_check_branch
        %296 = sbr.rel (%p294) target = $region16
      $region15: #{mistral_moe_forward.2} parent=11 // pred_region
        _
      $region16: #{mistral_moe_forward.2} parent=11 // pred_fallthru
        _
      // Predicated region
      $region17: #{mistral_moe_forward.2} parent=11 // pred_check
        %p297 = pneg %p85
      $region18: #{mistral_moe_forward.2} parent=11 // pred_check_branch
        %299 = sbr.rel (%p297) target = $region20
      $region19: #{mistral_moe_forward.2} parent=11 // pred_region
        _
      $region20: #{mistral_moe_forward.2} parent=11 // pred_fallthru
        _
      // Predicated region
      $region21: #{mistral_moe_forward.2} parent=11 // pred_check
        %p300 = pneg %p106
      $region22: #{mistral_moe_forward.2} parent=11 // pred_check_branch
        %302 = sbr.rel (%p300) target = $region24
      $region23: #{mistral_moe_forward.2} parent=11 // pred_region
        _
      $region24: #{mistral_moe_forward.2} parent=11 // pred_fallthru
        _
      // Predicated region
      $region25: #{mistral_moe_forward.2} parent=11 // pred_check
        %p303 = pneg %p127
      $region26: #{mistral_moe_forward.2} parent=11 // pred_check_branch
        %305 = sbr.rel (%p303) target = $region28
      $region27: #{mistral_moe_forward.2} parent=11 // pred_region
        _
      $region28: #{mistral_moe_forward.2} parent=11 // pred_fallthru
        _
      // Predicated region
      $region29: #{mistral_moe_forward.2} parent=11 // pred_check
        %p306 = pneg %p148
      $region30: #{mistral_moe_forward.2} parent=11 // pred_check_branch
        %308 = sbr.rel (%p306) target = $region32
      $region31: #{mistral_moe_forward.2} parent=11 // pred_region
        _
      $region32: #{mistral_moe_forward.2} parent=11 // pred_fallthru
        _
      // Predicated region
      $region33: #{mistral_moe_forward.2} parent=11 // pred_check
        %p309 = pneg %p169
      $region34: #{mistral_moe_forward.2} parent=11 // pred_check_branch
        %311 = sbr.rel (%p309) target = $region36
      $region35: #{mistral_moe_forward.2} parent=11 // pred_region
        _
      $region36: #{mistral_moe_forward.2} parent=11 // pred_fallthru
        _
      // Predicated region
      $region37: #{mistral_moe_forward.2} parent=11 // pred_check
        %p312 = pneg %p190
      $region38: #{mistral_moe_forward.2} parent=11 // pred_check_branch
        %314 = sbr.rel (%p312) target = $region40
      $region39: #{mistral_moe_forward.2} parent=11 // pred_region
        _
      $region40: #{mistral_moe_forward.2} parent=11 // pred_fallthru
        _
      // Predicated region
      $region41: #{mistral_moe_forward.2} parent=11 // pred_check
        %p315 = pneg %p211
      $region42: #{mistral_moe_forward.2} parent=11 // pred_check_branch
        %317 = sbr.rel (%p315) target = $region44
      $region43: #{mistral_moe_forward.2} parent=11 // pred_region
        _
      $region44: #{mistral_moe_forward.2} parent=11 // pred_fallthru
        _
      // Predicated region
      $region45: #{mistral_moe_forward.2} parent=11 // pred_check
        %p318 = pneg %p232
      $region46: #{mistral_moe_forward.2} parent=11 // pred_check_branch
        %320 = sbr.rel (%p318) target = $region48
      $region47: #{mistral_moe_forward.2} parent=11 // pred_region
        _
      $region48: #{mistral_moe_forward.2} parent=11 // pred_fallthru
        _
      // Predicated region
      $region49: #{mistral_moe_forward.2} parent=11 // pred_check
        %p321 = pneg %p253
      $region50: #{mistral_moe_forward.2} parent=11 // pred_check_branch
        %323 = sbr.rel (%p321) target = $region52
      $region51: #{mistral_moe_forward.2} parent=11 // pred_region
        _
      $region52: #{mistral_moe_forward.2} parent=11 // pred_fallthru
        _
    $region12: #{mistral_moe_forward.2} parent=5 // pred_fallthru
      _
    %p324 = scmp.lt.s32.totalorder %s17, 2
    // Predicated region
    $region53: #{mistral_moe_forward.2} parent=5 // pred_check
      %p325 = pneg %p324
    $region54: #{mistral_moe_forward.2} parent=5 // pred_check_branch
      %327 = sbr.rel (%p325) target = $region56
    $region55: #{mistral_moe_forward.2} parent=5 // pred_region
      // Predicated region
      $region57: #{mistral_moe_forward.2} parent=55 // pred_check
        %p328 = pneg %p37
      $region58: #{mistral_moe_forward.2} parent=55 // pred_check_branch
        %330 = sbr.rel (%p328) target = $region60
      $region59: #{mistral_moe_forward.2} parent=55 // pred_region
        %p331 = scmp.lt.s32.totalorder %s17, 1
        %s332 = scalar_select %p331, %s17, 1
        %s333 = smul.addr %s332, 8
        %s334 = scalar_lea.vmem %s0, %s333
      $region60: #{mistral_moe_forward.2} parent=55 // pred_fallthru
        _
    $region56: #{mistral_moe_forward.2} parent=5 // pred_fallthru
      _
    %p335 = scmp.le.s32.totalorder 1, %s17
    %p336 = scmp.lt.s32.totalorder %s17, 3
    %p337 = pnand %p335, %p336
    %p338 = pneg %p337
    // Predicated region
    $region61: #{mistral_moe_forward.2} parent=5 // pred_check
      _
    $region62: #{mistral_moe_forward.2} parent=5 // pred_check_branch
      %340 = sbr.rel (%p337) target = $region64
    $region63: #{mistral_moe_forward.2} parent=5 // pred_region
      %s341 = ssub.s32 %s17, 1
      %p342 = scmp.lt.s32.totalorder %s22, 1
      %s343 = scalar_select %p342, %s22, 1
      %s344 = smul.addr %s343, 8
      %s345 = scalar_lea.vmem %s0, %s344
      %p346 = pneg %p43
      %p347 = pneg %p40
      %p348 = pneg %p64
      %p349 = pneg %p61
      %p350 = pneg %p85
      %p351 = pneg %p82
      %p352 = pneg %p106
      %p353 = pneg %p103
      %p354 = pneg %p127
      %p355 = pneg %p124
      %p356 = pneg %p148
      %p357 = pneg %p145
      %p358 = pneg %p169
      %p359 = pneg %p166
      %p360 = pneg %p190
      %p361 = pneg %p187
      %p362 = pneg %p211
      %p363 = pneg %p208
      %p364 = pneg %p232
      %p365 = pneg %p229
      %p366 = pneg %p253
      %p367 = pneg %p250
      %p368 = pneg %p279
      %p369 = pneg %p276
      %p370 = scmp.lt.s32.totalorder %s22, 1
      %s371 = scalar_select %p370, %s22, 1
      %s372 = smul.addr %s371, 8
      %s373 = scalar_lea.vmem %s11, %s372
      %p374 = scmp.lt.s32.totalorder %s22, 1
      %s375 = scalar_select %p374, %s22, 1
      %s376 = smul.addr %s375, 8
      %s377 = scalar_lea.vmem %s0, %s376
      %p378 = scmp.lt.s32.totalorder %s22, 1
      %s379 = scalar_select %p378, %s22, 1
      %s380 = smul.addr %s379, 8
      %s381 = scalar_lea.vmem %s11, %s380
      %v383 = vld [vmem:[%s377] sm:$0xff]
      %v384 = vld [vmem:[%s1] sm:$0x1]
      %v385 = vmul.f32 %v383, %v383
      %vm386 = vcmask 523264
      %v387 = vsel %vm386, %v385, 0.0
      %388 = vadd.xlane.f32.xlu0 %v387
      %v389 = vpop.xlane.xlu0 %388
      %v390 = vrcp.pop 64.0
      %v391 = vmul.f32 64.0, %v390
      %v392 = vsub.f32 1.0, %v391
      %v393 = vmul.f32 %v390, %v392
      %v394 = vadd.f32 %v390, %v393
      %vm395 = vweird.f32 %v390
      %v396 = vsel %vm395, %v390, %v394
      %v397 = vmul.f32 %v389, %v396
      %v399 = vperm.slane %v384, 0
      %v401 = vmul.f32 %v399, %v383
      %v402 = vadd.f32 %v397, 1e-05
      %v403 = vrsqrt.pop %v402
      %v404 = vmul.f32 %v403, %v402
      %v405 = vmul.f32 %v404, %v403
      %v406 = vmul.f32 0.5, %v405
      %v407 = vsub.f32 1.5, %v406
      %v408 = vmul.f32 %v403, %v407
      %vm409 = vweird.f32 %v402
      %vm410 = vweird.f32 %v403
      %vm411 = vmor %vm409, %vm410
      %v412 = vsel %vm411, %v403, %v408
      %v413 = vmul.f32 %v401, %v412
      %v414 = vpack.c.bf16 %v413, %v413
      %v415 = vld [vmem:[%s3] sm:$0xf]
      %v416 = vld [vmem:[%s3 + $0x4] sm:$0xf]
      %v417 = vld [vmem:[%s3 + $0x8] sm:$0xf]
      %v418 = vld [vmem:[%s3 + $0xc] sm:$0xf]
      %v419 = vld [vmem:[%s3 + $0x10] sm:$0xf]
      %v420 = vld [vmem:[%s3 + $0x14] sm:$0xf]
      %v421 = vld [vmem:[%s3 + $0x18] sm:$0xf]
      %v422 = vld [vmem:[%s3 + $0x1c] sm:$0xf]
      %v431 = vunpack.c.l.b16 %v415
      %v432 = vunpack.c.l.b16 %v416
      %v433 = vunpack.c.l.b16 %v417
      %v434 = vunpack.c.l.b16 %v418
      %v435 = vunpack.c.l.b16 %v419
      %v436 = vunpack.c.l.b16 %v420
      %v437 = vunpack.c.l.b16 %v421
      %v438 = vunpack.c.l.b16 %v422
      %v439 = vpack.c.b16 %v432, %v431
      %v440 = vpack.c.b16 %v434, %v433
      %v441 = vpack.c.b16 %v436, %v435
      %v442 = vpack.c.b16 %v438, %v437
      %v448 = vsel %vm386, %v414, 0
      %450 = vmatpush.bf16.msra.mxu0 0
      %451 = vmatpush.bf16.msra.mxu0 0
      %452 = vmatpush.bf16.msra.mxu0 0
      %453 = vmatpush.bf16.msra.mxu0 0
      %454 = vmatpush.bf16.msra.mxu0 %v442
      %455 = vmatpush.bf16.msra.mxu0 %v441
      %456 = vmatpush.bf16.msra.mxu0 %v440
      %457 = vmatpush.bf16.msra.mxu0 %v439
      %458 = vmatmul.bf16.gmra.mxu0 %v448
      %v459 = vpop.f32.mrf.mxu0
      %v460 = vadd.f32 0.0, %v459
      %v461 = vpop.f32.mrf.mxu0
      %462 = vdwg.mxu0
      %v463 = vld [vmem:[%s6] sm:$0xff]
      %v464 = vld [vmem:[%s7] sm:$0xff]
      %v465 = vld [vmem:[%s5] sm:$0xff]
      %v466 = vld [vmem:[%s5 + $0x8] sm:$0xff]
      %468 = vrot.lane.b32.xlu0 %v463, 64
      %v469 = vpop.permute.xlu0 %468
      %v471 = vmul.f32 %v460, %v469
      %473 = vrot.lane.b32.xlu0 %v460, 64
      %v474 = vpop.permute.xlu0 %473
      %vm475 = vcmask 130048
      %v476 = vsel %vm475, %v474, 0
      %478 = vmatpush.msra.mxu0 0.0
      %479 = vmatpush.msra.mxu0 0.0
      %480 = vmatpush.msra.mxu0 0.0
      %481 = vmatpush.msra.mxu0 0.0
      %482 = vmatpush.msra.mxu0 0.0
      %483 = vmatpush.msra.mxu0 0.0
      %484 = vmatpush.msra.mxu0 0.0
      %485 = vmatpush.msra.mxu0 0.0
      %486 = vmatpush.msra.mxu0 0.0
      %487 = vmatpush.msra.mxu0 0.0
      %488 = vmatpush.msra.mxu0 0.0
      %489 = vmatpush.msra.mxu0 0.0
      %490 = vmatpush.msra.mxu0 0.0
      %491 = vmatpush.msra.mxu0 0.0
      %492 = vmatpush.msra.mxu0 %v466
      %493 = vmatpush.msra.mxu0 %v465
      %494 = vmatmul.f32.gmra.mxu0 %v476
      %v495 = vpop.f32.mrf.mxu0
      %v496 = vadd.f32 0.0, %v495
      %497 = vdwg.mxu0
      %v498 = vmul.f32 %v496, %v464
      %500 = vrot.lane.b32.xlu0 %v498, 64
      %v501 = vpop.permute.xlu0 %500
      %v503 = vadd.f32 %v471, %v501
      %v504 = vpack.c.bf16 %v503, %v503
      %v505 = vpack.c.bf16 %v460, %v460
      %v506 = vmul.f32 %v460, %v463
      %v507 = vsel %vm475, %v460, 0
      %509 = vmatpush.msra.mxu0 0.0
      %510 = vmatpush.msra.mxu0 0.0
      %511 = vmatpush.msra.mxu0 0.0
      %512 = vmatpush.msra.mxu0 0.0
      %513 = vmatpush.msra.mxu0 0.0
      %514 = vmatpush.msra.mxu0 0.0
      %515 = vmatpush.msra.mxu0 0.0
      %516 = vmatpush.msra.mxu0 0.0
      %517 = vmatpush.msra.mxu0 0.0
      %518 = vmatpush.msra.mxu0 0.0
      %519 = vmatpush.msra.mxu0 0.0
      %520 = vmatpush.msra.mxu0 0.0
      %521 = vmatpush.msra.mxu0 0.0
      %522 = vmatpush.msra.mxu0 0.0
      %523 = vmatpush.msra.mxu0 %v466
      %524 = vmatpush.msra.mxu0 %v465
      %525 = vmatmul.f32.gmra.mxu0 %v507
      %v526 = vpop.f32.mrf.mxu0
      %v527 = vadd.f32 0.0, %v526
      %528 = vdwg.mxu0
      %v529 = vmul.f32 %v527, %v464
      %v530 = vadd.f32 %v506, %v529
      %v531 = vpack.c.bf16 %v530, %v530
      %533 = vrot.lane.b32.xlu0 %v504, 64
      %v534 = vpop.permute.xlu0 %533
      %v536 = vsel %vm475, %v531, 0
      %v539 = vsel %vm475, %v534, 0
      %541 = vmatpush.bf16.xpose.msra.mxu0 0
      %542 = vmatpush.bf16.xpose.msra.mxu0 0
      %543 = vmatpush.bf16.xpose.msra.mxu0 0
      %544 = vmatpush.bf16.xpose.msra.mxu0 0
      %545 = vmatpush.bf16.xpose.msra.mxu0 0
      %546 = vmatpush.bf16.xpose.msra.mxu0 0
      %547 = vmatpush.bf16.xpose.msra.mxu0 0
      %548 = vmatpush.bf16.xpose.msra.mxu0 %v539
      %549 = vmatmul.bf16.gmra.mxu0 %v536
      %v550 = vpop.f32.mrf.mxu0
      %v551 = vadd.f32 0.0, %v550
      %v552 = vpop.f32.mrf.mxu0
      %553 = vdwg.mxu0
      %v554 = vmul.f32 %v551, 0.25
      %vm555 = vcmask 64512
      %v556 = vsel %vm555, %v554, -inf
      %557 = vmax.xlane.f32.xlu0 %v556
      %v558 = vpop.xlane.xlu0 %557
      %v559 = vsub.f32 %v554, %v558
      %v560 = vmul.f32 %v559, 1.442695
      %v561 = vpow.pop %v560
      %v562 = vsel %vm555, %v561, 0.0
      %563 = vadd.xlane.f32.xlu0 %v562
      %v564 = vpop.xlane.xlu0 %563
      %v565 = vrcp.pop %v564
      %v566 = vmul.f32 %v564, %v565
      %v567 = vsub.f32 1.0, %v566
      %v568 = vmul.f32 %v565, %v567
      %v569 = vadd.f32 %v565, %v568
      %vm570 = vweird.f32 %v564
      %vm571 = vweird.f32 %v565
      %vm572 = vmor %vm570, %vm571
      %v573 = vsel %vm572, %v565, %v569
      %v574 = vand.u32 2147483647, %v564
      %vm575 = vcmp.eq.f32.partialorder %v574, 8.507059e+37
      %v576 = vand.u32 %v564, 2147483648
      %v577 = vor.u32 1.1754944e-38, %v576
      %v578 = vsel %vm575, %v577, %v573
      %v579 = vmul.f32 %v561, %v578
      %v580 = vpack.c.bf16 %v579, %v579
      %582 = vrot.lane.b32.xlu0 %v505, 32
      %v583 = vpop.permute.xlu0 %582
      %v585 = vsel %vm555, %v580, 0
      %vm587 = vcmask 1043456
      %v589 = vsel %vm587, %v583, 0
      %591 = vmatpush.bf16.msra.mxu0 0
      %592 = vmatpush.bf16.msra.mxu0 0
      %593 = vmatpush.bf16.msra.mxu0 0
      %594 = vmatpush.bf16.msra.mxu0 0
      %595 = vmatpush.bf16.msra.mxu0 0
      %596 = vmatpush.bf16.msra.mxu0 0
      %597 = vmatpush.bf16.msra.mxu0 0
      %598 = vmatpush.bf16.msra.mxu0 %v589
      %599 = vmatmul.bf16.gmra.mxu0 %v585
      %v600 = vpop.f32.mrf.mxu0
      %v601 = vadd.f32 0.0, %v600
      %v602 = vpop.f32.mrf.mxu0
      %603 = vdwg.mxu0
      %604 = vst.msk [vmem:[#allocation2] sm:$0xff] %vm475, %v601
      %605 = vrot.lane.b32.xlu0 %v463, 16
      %v606 = vpop.permute.xlu0 %605
      %v608 = vmul.f32 %v460, %v606
      %609 = vrot.lane.b32.xlu0 %v460, 112
      %v610 = vpop.permute.xlu0 %609
      %v611 = vsel %vm475, %v610, 0
      %613 = vmatpush.msra.mxu0 0.0
      %614 = vmatpush.msra.mxu0 0.0
      %615 = vmatpush.msra.mxu0 0.0
      %616 = vmatpush.msra.mxu0 0.0
      %617 = vmatpush.msra.mxu0 0.0
      %618 = vmatpush.msra.mxu0 0.0
      %619 = vmatpush.msra.mxu0 0.0
      %620 = vmatpush.msra.mxu0 0.0
      %621 = vmatpush.msra.mxu0 0.0
      %622 = vmatpush.msra.mxu0 0.0
      %623 = vmatpush.msra.mxu0 0.0
      %624 = vmatpush.msra.mxu0 0.0
      %625 = vmatpush.msra.mxu0 0.0
      %626 = vmatpush.msra.mxu0 0.0
      %627 = vmatpush.msra.mxu0 %v466
      %628 = vmatpush.msra.mxu0 %v465
      %629 = vmatmul.f32.gmra.mxu0 %v611
      %v630 = vpop.f32.mrf.mxu0
      %v631 = vadd.f32 0.0, %v630
      %632 = vdwg.mxu0
      %v633 = vmul.f32 %v631, %v464
      %635 = vrot.lane.b32.xlu0 %v633, 16
      %v636 = vpop.permute.xlu0 %635
      %v638 = vadd.f32 %v608, %v636
      %v639 = vpack.c.bf16 %v638, %v638
      %641 = vrot.lane.b32.xlu0 %v639, 112
      %v642 = vpop.permute.xlu0 %641
      %v644 = vsel %vm475, %v642, 0
      %646 = vmatpush.bf16.xpose.msra.mxu0 0
      %647 = vmatpush.bf16.xpose.msra.mxu0 0
      %648 = vmatpush.bf16.xpose.msra.mxu0 0
      %649 = vmatpush.bf16.xpose.msra.mxu0 0
      %650 = vmatpush.bf16.xpose.msra.mxu0 0
      %651 = vmatpush.bf16.xpose.msra.mxu0 0
      %652 = vmatpush.bf16.xpose.msra.mxu0 0
      %653 = vmatpush.bf16.xpose.msra.mxu0 %v539
      %654 = vmatmul.bf16.gmra.mxu0 %v644
      %v655 = vpop.f32.mrf.mxu0
      %v656 = vadd.f32 0.0, %v655
      %v657 = vpop.f32.mrf.mxu0
      %658 = vdwg.mxu0
      %v659 = vmul.f32 %v656, 0.25
      %v660 = vsel %vm555, %v659, -inf
      %661 = vmax.xlane.f32.xlu0 %v660
      %v662 = vpop.xlane.xlu0 %661
      %v663 = vsub.f32 %v659, %v662
      %v664 = vmul.f32 %v663, 1.442695
      %v665 = vpow.pop %v664
      %v666 = vsel %vm555, %v665, 0.0
      %667 = vadd.xlane.f32.xlu0 %v666
      %v668 = vpop.xlane.xlu0 %667
      %v669 = vrcp.pop %v668
      %v670 = vmul.f32 %v668, %v669
      %v671 = vsub.f32 1.0, %v670
      %v672 = vmul.f32 %v669, %v671
      %v673 = vadd.f32 %v669, %v672
      %vm674 = vweird.f32 %v668
      %vm675 = vweird.f32 %v669
      %vm676 = vmor %vm674, %vm675
      %v677 = vsel %vm676, %v669, %v673
      %v678 = vand.u32 2147483647, %v668
      %vm679 = vcmp.eq.f32.partialorder %v678, 8.507059e+37
      %v680 = vand.u32 %v668, 2147483648
      %v681 = vor.u32 1.1754944e-38, %v680
      %v682 = vsel %vm679, %v681, %v677
      %v683 = vmul.f32 %v665, %v682
      %v684 = vpack.c.bf16 %v683, %v683
      %v686 = vsel %vm555, %v684, 0
      %688 = vmatpush.bf16.msra.mxu0 0
      %689 = vmatpush.bf16.msra.mxu0 0
      %690 = vmatpush.bf16.msra.mxu0 0
      %691 = vmatpush.bf16.msra.mxu0 0
      %692 = vmatpush.bf16.msra.mxu0 0
      %693 = vmatpush.bf16.msra.mxu0 0
      %694 = vmatpush.bf16.msra.mxu0 0
      %695 = vmatpush.bf16.msra.mxu0 %v589
      %696 = vmatmul.bf16.gmra.mxu0 %v686
      %v697 = vpop.f32.mrf.mxu0
      %v698 = vadd.f32 0.0, %v697
      %v699 = vpop.f32.mrf.mxu0
      %700 = vdwg.mxu0
      %702 = vrot.lane.b32.xlu0 %v698, 16
      %v703 = vpop.permute.xlu0 %702
      %vm705 = vcmask 261248
      %706 = vst.msk [vmem:[#allocation2] sm:$0xff] %vm705, %v703
      %707 = vrot.lane.b32.xlu0 %v463, 80
      %v708 = vpop.permute.xlu0 %707
      %v710 = vmul.f32 %v460, %v708
      %711 = vrot.lane.b32.xlu0 %v460, 48
      %v712 = vpop.permute.xlu0 %711
      %v713 = vsel %vm475, %v712, 0
      %715 = vmatpush.msra.mxu0 0.0
      %716 = vmatpush.msra.mxu0 0.0
      %717 = vmatpush.msra.mxu0 0.0
      %718 = vmatpush.msra.mxu0 0.0
      %719 = vmatpush.msra.mxu0 0.0
      %720 = vmatpush.msra.mxu0 0.0
      %721 = vmatpush.msra.mxu0 0.0
      %722 = vmatpush.msra.mxu0 0.0
      %723 = vmatpush.msra.mxu0 0.0
      %724 = vmatpush.msra.mxu0 0.0
      %725 = vmatpush.msra.mxu0 0.0
      %726 = vmatpush.msra.mxu0 0.0
      %727 = vmatpush.msra.mxu0 0.0
      %728 = vmatpush.msra.mxu0 0.0
      %729 = vmatpush.msra.mxu0 %v466
      %730 = vmatpush.msra.mxu0 %v465
      %731 = vmatmul.f32.gmra.mxu0 %v713
      %v732 = vpop.f32.mrf.mxu0
      %v733 = vadd.f32 0.0, %v732
      %734 = vdwg.mxu0
      %v735 = vmul.f32 %v733, %v464
      %737 = vrot.lane.b32.xlu0 %v735, 80
      %v738 = vpop.permute.xlu0 %737
      %v740 = vadd.f32 %v710, %v738
      %v741 = vpack.c.bf16 %v740, %v740
      %742 = vrot.lane.b32.xlu0 %v463, 32
      %v743 = vpop.permute.xlu0 %742
      %v745 = vmul.f32 %v460, %v743
      %746 = vrot.lane.b32.xlu0 %v460, 96
      %v747 = vpop.permute.xlu0 %746
      %v748 = vsel %vm475, %v747, 0
      %750 = vmatpush.msra.mxu0 0.0
      %751 = vmatpush.msra.mxu0 0.0
      %752 = vmatpush.msra.mxu0 0.0
      %753 = vmatpush.msra.mxu0 0.0
      %754 = vmatpush.msra.mxu0 0.0
      %755 = vmatpush.msra.mxu0 0.0
      %756 = vmatpush.msra.mxu0 0.0
      %757 = vmatpush.msra.mxu0 0.0
      %758 = vmatpush.msra.mxu0 0.0
      %759 = vmatpush.msra.mxu0 0.0
      %760 = vmatpush.msra.mxu0 0.0
      %761 = vmatpush.msra.mxu0 0.0
      %762 = vmatpush.msra.mxu0 0.0
      %763 = vmatpush.msra.mxu0 0.0
      %764 = vmatpush.msra.mxu0 %v466
      %765 = vmatpush.msra.mxu0 %v465
      %766 = vmatmul.f32.gmra.mxu0 %v748
      %v767 = vpop.f32.mrf.mxu0
      %v768 = vadd.f32 0.0, %v767
      %769 = vdwg.mxu0
      %v770 = vmul.f32 %v768, %v464
      %772 = vrot.lane.b32.xlu0 %v770, 32
      %v773 = vpop.permute.xlu0 %772
      %v775 = vadd.f32 %v745, %v773
      %v776 = vpack.c.bf16 %v775, %v775
      %778 = vrot.lane.b32.xlu0 %v776, 96
      %v779 = vpop.permute.xlu0 %778
      %781 = vrot.lane.b32.xlu0 %v741, 48
      %v782 = vpop.permute.xlu0 %781
      %v784 = vsel %vm475, %v779, 0
      %v787 = vsel %vm475, %v782, 0
      %789 = vmatpush.bf16.xpose.msra.mxu0 0
      %790 = vmatpush.bf16.xpose.msra.mxu0 0
      %791 = vmatpush.bf16.xpose.msra.mxu0 0
      %792 = vmatpush.bf16.xpose.msra.mxu0 0
      %793 = vmatpush.bf16.xpose.msra.mxu0 0
      %794 = vmatpush.bf16.xpose.msra.mxu0 0
      %795 = vmatpush.bf16.xpose.msra.mxu0 0
      %796 = vmatpush.bf16.xpose.msra.mxu0 %v787
      %797 = vmatmul.bf16.gmra.mxu0 %v784
      %v798 = vpop.f32.mrf.mxu0
      %v799 = vadd.f32 0.0, %v798
      %v800 = vpop.f32.mrf.mxu0
      %801 = vdwg.mxu0
      %v802 = vmul.f32 %v799, 0.25
      %v803 = vsel %vm555, %v802, -inf
      %804 = vmax.xlane.f32.xlu0 %v803
      %v805 = vpop.xlane.xlu0 %804
      %v806 = vsub.f32 %v802, %v805
      %v807 = vmul.f32 %v806, 1.442695
      %v808 = vpow.pop %v807
      %v809 = vsel %vm555, %v808, 0.0
      %810 = vadd.xlane.f32.xlu0 %v809
      %v811 = vpop.xlane.xlu0 %810
      %v812 = vrcp.pop %v811
      %v813 = vmul.f32 %v811, %v812
      %v814 = vsub.f32 1.0, %v813
      %v815 = vmul.f32 %v812, %v814
      %v816 = vadd.f32 %v812, %v815
      %vm817 = vweird.f32 %v811
      %vm818 = vweird.f32 %v812
      %vm819 = vmor %vm817, %vm818
      %v820 = vsel %vm819, %v812, %v816
      %v821 = vand.u32 2147483647, %v811
      %vm822 = vcmp.eq.f32.partialorder %v821, 8.507059e+37
      %v823 = vand.u32 %v811, 2147483648
      %v824 = vor.u32 1.1754944e-38, %v823
      %v825 = vsel %vm822, %v824, %v820
      %v826 = vmul.f32 %v808, %v825
      %v827 = vpack.c.bf16 %v826, %v826
      %828 = vrot.lane.b32.xlu0 %v505, 16
      %v829 = vpop.permute.xlu0 %828
      %v831 = vsel %vm555, %v827, 0
      %v834 = vsel %vm587, %v829, 0
      %836 = vmatpush.bf16.msra.mxu0 0
      %837 = vmatpush.bf16.msra.mxu0 0
      %838 = vmatpush.bf16.msra.mxu0 0
      %839 = vmatpush.bf16.msra.mxu0 0
      %840 = vmatpush.bf16.msra.mxu0 0
      %841 = vmatpush.bf16.msra.mxu0 0
      %842 = vmatpush.bf16.msra.mxu0 0
      %843 = vmatpush.bf16.msra.mxu0 %v834
      %844 = vmatmul.bf16.gmra.mxu0 %v831
      %v845 = vpop.f32.mrf.mxu0
      %v846 = vadd.f32 0.0, %v845
      %v847 = vpop.f32.mrf.mxu0
      %848 = vdwg.mxu0
      %850 = vrot.lane.b32.xlu0 %v846, 32
      %v851 = vpop.permute.xlu0 %850
      %vm853 = vcmask 392448
      %854 = vst.msk [vmem:[#allocation2] sm:$0xff] %vm853, %v851
      %855 = vrot.lane.b32.xlu0 %v463, 48
      %v856 = vpop.permute.xlu0 %855
      %v858 = vmul.f32 %v460, %v856
      %859 = vrot.lane.b32.xlu0 %v460, 80
      %v860 = vpop.permute.xlu0 %859
      %v861 = vsel %vm475, %v860, 0
      %863 = vmatpush.msra.mxu0 0.0
      %864 = vmatpush.msra.mxu0 0.0
      %865 = vmatpush.msra.mxu0 0.0
      %866 = vmatpush.msra.mxu0 0.0
      %867 = vmatpush.msra.mxu0 0.0
      %868 = vmatpush.msra.mxu0 0.0
      %869 = vmatpush.msra.mxu0 0.0
      %870 = vmatpush.msra.mxu0 0.0
      %871 = vmatpush.msra.mxu0 0.0
      %872 = vmatpush.msra.mxu0 0.0
      %873 = vmatpush.msra.mxu0 0.0
      %874 = vmatpush.msra.mxu0 0.0
      %875 = vmatpush.msra.mxu0 0.0
      %876 = vmatpush.msra.mxu0 0.0
      %877 = vmatpush.msra.mxu0 %v466
      %878 = vmatpush.msra.mxu0 %v465
      %879 = vmatmul.f32.gmra.mxu0 %v861
      %v880 = vpop.f32.mrf.mxu0
      %v881 = vadd.f32 0.0, %v880
      %882 = vdwg.mxu0
      %v883 = vmul.f32 %v881, %v464
      %885 = vrot.lane.b32.xlu0 %v883, 48
      %v886 = vpop.permute.xlu0 %885
      %v888 = vadd.f32 %v858, %v886
      %v889 = vpack.c.bf16 %v888, %v888
      %891 = vrot.lane.b32.xlu0 %v889, 80
      %v892 = vpop.permute.xlu0 %891
      %v894 = vsel %vm475, %v892, 0
      %896 = vmatpush.bf16.xpose.msra.mxu0 0
      %897 = vmatpush.bf16.xpose.msra.mxu0 0
      %898 = vmatpush.bf16.xpose.msra.mxu0 0
      %899 = vmatpush.bf16.xpose.msra.mxu0 0
      %900 = vmatpush.bf16.xpose.msra.mxu0 0
      %901 = vmatpush.bf16.xpose.msra.mxu0 0
      %902 = vmatpush.bf16.xpose.msra.mxu0 0
      %903 = vmatpush.bf16.xpose.msra.mxu0 %v787
      %904 = vmatmul.bf16.gmra.mxu0 %v894
      %v905 = vpop.f32.mrf.mxu0
      %v906 = vadd.f32 0.0, %v905
      %v907 = vpop.f32.mrf.mxu0
      %908 = vdwg.mxu0
      %v909 = vmul.f32 %v906, 0.25
      %v910 = vsel %vm555, %v909, -inf
      %911 = vmax.xlane.f32.xlu0 %v910
      %v912 = vpop.xlane.xlu0 %911
      %v913 = vsub.f32 %v909, %v912
      %v914 = vmul.f32 %v913, 1.442695
      %v915 = vpow.pop %v914
      %v916 = vsel %vm555, %v915, 0.0
      %917 = vadd.xlane.f32.xlu0 %v916
      %v918 = vpop.xlane.xlu0 %917
      %v919 = vrcp.pop %v918
      %v920 = vmul.f32 %v918, %v919
      %v921 = vsub.f32 1.0, %v920
      %v922 = vmul.f32 %v919, %v921
      %v923 = vadd.f32 %v919, %v922
      %vm924 = vweird.f32 %v918
      %vm925 = vweird.f32 %v919
      %vm926 = vmor %vm924, %vm925
      %v927 = vsel %vm926, %v919, %v923
      %v928 = vand.u32 2147483647, %v918
      %vm929 = vcmp.eq.f32.partialorder %v928, 8.507059e+37
      %v930 = vand.u32 %v918, 2147483648
      %v931 = vor.u32 1.1754944e-38, %v930
      %v932 = vsel %vm929, %v931, %v927
      %v933 = vmul.f32 %v915, %v932
      %v934 = vpack.c.bf16 %v933, %v933
      %v936 = vsel %vm555, %v934, 0
      %938 = vmatpush.bf16.msra.mxu0 0
      %939 = vmatpush.bf16.msra.mxu0 0
      %940 = vmatpush.bf16.msra.mxu0 0
      %941 = vmatpush.bf16.msra.mxu0 0
      %942 = vmatpush.bf16.msra.mxu0 0
      %943 = vmatpush.bf16.msra.mxu0 0
      %944 = vmatpush.bf16.msra.mxu0 0
      %945 = vmatpush.bf16.msra.mxu0 %v834
      %946 = vmatmul.bf16.gmra.mxu0 %v936
      %v947 = vpop.f32.mrf.mxu0
      %v948 = vadd.f32 0.0, %v947
      %v949 = vpop.f32.mrf.mxu0
      %950 = vdwg.mxu0
      %952 = vrot.lane.b32.xlu0 %v948, 48
      %v953 = vpop.permute.xlu0 %952
      %vm955 = vcmask 523648
      %956 = vst.msk [vmem:[#allocation2] sm:$0xff] %vm955, %v953
      %v957 = vld [vmem:[#allocation2] sm:$0xff]
      %v958 = vpack.c.bf16 %v957, %v957
      %v959 = vld [vmem:[%s4] sm:$0xf]
      %v960 = vld [vmem:[%s4 + $0x4] sm:$0xf]
      %v961 = vld [vmem:[%s4 + $0x8] sm:$0xf]
      %v962 = vld [vmem:[%s4 + $0xc] sm:$0xf]
      %v963 = vld [vmem:[%s4 + $0x10] sm:$0xf]
      %v964 = vld [vmem:[%s4 + $0x14] sm:$0xf]
      %v965 = vld [vmem:[%s4 + $0x18] sm:$0xf]
      %v966 = vld [vmem:[%s4 + $0x1c] sm:$0xf]
      %v975 = vunpack.c.l.b16 %v959
      %v976 = vunpack.c.l.b16 %v960
      %v977 = vunpack.c.l.b16 %v961
      %v978 = vunpack.c.l.b16 %v962
      %v979 = vunpack.c.l.b16 %v963
      %v980 = vunpack.c.l.b16 %v964
      %v981 = vunpack.c.l.b16 %v965
      %v982 = vunpack.c.l.b16 %v966
      %v983 = vpack.c.b16 %v976, %v975
      %v984 = vpack.c.b16 %v978, %v977
      %v985 = vpack.c.b16 %v980, %v979
      %v986 = vpack.c.b16 %v982, %v981
      %v992 = vsel %vm386, %v958, 0
      %994 = vmatpush.bf16.msra.mxu0 0
      %995 = vmatpush.bf16.msra.mxu0 0
      %996 = vmatpush.bf16.msra.mxu0 0
      %997 = vmatpush.bf16.msra.mxu0 0
      %998 = vmatpush.bf16.msra.mxu0 %v986
      %999 = vmatpush.bf16.msra.mxu0 %v985
      %1000 = vmatpush.bf16.msra.mxu0 %v984
      %1001 = vmatpush.bf16.msra.mxu0 %v983
      %1002 = vmatmul.bf16.gmra.mxu0 %v992
      %v1003 = vpop.f32.mrf.mxu0
      %v1004 = vadd.f32 0.0, %v1003
      %v1005 = vpop.f32.mrf.mxu0
      %1006 = vdwg.mxu0
      %v1007 = vadd.f32 %v383, %v1004
      %v1008 = vld [vmem:[%s2] sm:$0x1]
      %v1009 = vmul.f32 %v1007, %v1007
      %v1010 = vsel %vm386, %v1009, 0.0
      %1011 = vadd.xlane.f32.xlu0 %v1010
      %v1012 = vpop.xlane.xlu0 %1011
      %v1013 = vmul.f32 %v1012, %v396
      %v1015 = vperm.slane %v1008, 0
      %v1017 = vmul.f32 %v1015, %v1007
      %v1018 = vadd.f32 %v1013, 1e-05
      %v1019 = vrsqrt.pop %v1018
      %v1020 = vmul.f32 %v1019, %v1018
      %v1021 = vmul.f32 %v1020, %v1019
      %v1022 = vmul.f32 0.5, %v1021
      %v1023 = vsub.f32 1.5, %v1022
      %v1024 = vmul.f32 %v1019, %v1023
      %vm1025 = vweird.f32 %v1018
      %vm1026 = vweird.f32 %v1019
      %vm1027 = vmor %vm1025, %vm1026
      %v1028 = vsel %vm1027, %v1019, %v1024
      %v1029 = vmul.f32 %v1017, %v1028
      %v1030 = vpack.c.bf16 %v1029, %v1029
      %v1031 = vld [vmem:[%s8] sm:$0xf]
      %v1032 = vld [vmem:[%s8 + $0x4] sm:$0xf]
      %v1033 = vld [vmem:[%s8 + $0x8] sm:$0xf]
      %v1034 = vld [vmem:[%s8 + $0xc] sm:$0xf]
      %v1035 = vld [vmem:[%s8 + $0x10] sm:$0xf]
      %v1036 = vld [vmem:[%s8 + $0x14] sm:$0xf]
      %v1037 = vld [vmem:[%s8 + $0x18] sm:$0xf]
      %v1038 = vld [vmem:[%s8 + $0x1c] sm:$0xf]
      %v1047 = vunpack.c.l.b16 %v1031
      %v1048 = vunpack.c.l.b16 %v1032
      %v1049 = vunpack.c.l.b16 %v1033
      %v1050 = vunpack.c.l.b16 %v1034
      %v1051 = vunpack.c.l.b16 %v1035
      %v1052 = vunpack.c.l.b16 %v1036
      %v1053 = vunpack.c.l.b16 %v1037
      %v1054 = vunpack.c.l.b16 %v1038
      %v1055 = vpack.c.b16 %v1048, %v1047
      %v1056 = vpack.c.b16 %v1050, %v1049
      %v1057 = vpack.c.b16 %v1052, %v1051
      %v1058 = vpack.c.b16 %v1054, %v1053
      %v1064 = vsel %vm386, %v1030, 0
      %1066 = vmatpush.bf16.msra.mxu0 0
      %1067 = vmatpush.bf16.msra.mxu0 0
      %1068 = vmatpush.bf16.msra.mxu0 0
      %1069 = vmatpush.bf16.msra.mxu0 0
      %1070 = vmatpush.bf16.msra.mxu0 %v1058
      %1071 = vmatpush.bf16.msra.mxu0 %v1057
      %1072 = vmatpush.bf16.msra.mxu0 %v1056
      %1073 = vmatpush.bf16.msra.mxu0 %v1055
      %1074 = vmatmul.bf16.gmra.mxu0 %v1064
      %v1075 = vpop.f32.mrf.mxu0
      %v1076 = vadd.f32 0.0, %v1075
      %v1077 = vpop.f32.mrf.mxu0
      %1078 = vdwg.mxu0
      %vm1079 = vcmask 31744
      %v1080 = vsel %vm1079, %v1076, -inf
      %1081 = vmax.xlane.f32.xlu0 %v1080
      %v1082 = vpop.xlane.xlu0 %1081
      %v1083 = vsub.f32 %v1076, %v1082
      %v1084 = vmul.f32 %v1083, 1.442695
      %v1085 = vpow.pop %v1084
      %1087 = vset.pattern.permute.xlu0 0
      %1088 = vperm.xlu0 %1087, %v1076
      %v1089 = vpop.permute.xlu0 %1088
      %vm1091 = vcmp.gt.f32.partialorder %v1089, %v1076
      %v1092 = vsel %vm1091, 1, 0
      %v1093 = vcvt.s32.f32 %v1092
      %v1094 = vadd.f32 %v1093, 0.0
      %1095 = vset.pattern.permute.xlu0 1
      %1096 = vperm.xlu0 %1095, %v1076
      %v1097 = vpop.permute.xlu0 %1096
      %vm1099 = vcmp.gt.f32.partialorder %v1097, %v1076
      %v1100 = vsel %vm1099, 1, 0
      %v1101 = vcvt.s32.f32 %v1100
      %v1102 = vadd.f32 %v1094, %v1101
      %1103 = vset.pattern.permute.xlu0 2
      %1104 = vperm.xlu0 %1103, %v1076
      %v1105 = vpop.permute.xlu0 %1104
      %vm1107 = vcmp.gt.f32.partialorder %v1105, %v1076
      %v1108 = vsel %vm1107, 1, 0
      %v1109 = vcvt.s32.f32 %v1108
      %v1110 = vadd.f32 %v1102, %v1109
      %1111 = vset.pattern.permute.xlu0 3
      %1112 = vperm.xlu0 %1111, %v1076
      %v1113 = vpop.permute.xlu0 %1112
      %vm1115 = vcmp.gt.f32.partialorder %v1113, %v1076
      %v1116 = vsel %vm1115, 1, 0
      %v1117 = vcvt.s32.f32 %v1116
      %v1118 = vadd.f32 %v1110, %v1117
      %vm1119 = vcmp.lt.f32.partialorder %v1118, 2.0
      %v1120 = vsel %vm1119, %v1085, 0.0
      %v1121 = vsel %vm1079, %v1120, 0.0
      %1122 = vadd.xlane.f32.xlu0 %v1121
      %v1123 = vpop.xlane.xlu0 %1122
      %v1124 = vrcp.pop %v1123
      %v1125 = vmul.f32 %v1123, %v1124
      %v1126 = vsub.f32 1.0, %v1125
      %v1127 = vmul.f32 %v1124, %v1126
      %v1128 = vadd.f32 %v1124, %v1127
      %vm1129 = vweird.f32 %v1123
      %vm1130 = vweird.f32 %v1124
      %vm1131 = vmor %vm1129, %vm1130
      %v1132 = vsel %vm1131, %v1124, %v1128
      %v1133 = vand.u32 2147483647, %v1123
      %vm1134 = vcmp.eq.f32.partialorder %v1133, 8.507059e+37
      %v1135 = vand.u32 %v1123, 2147483648
      %v1136 = vor.u32 1.1754944e-38, %v1135
      %v1137 = vsel %vm1134, %v1136, %v1132
      %v1138 = vmul.f32 %v1120, %v1137
      %v1139 = vld [vmem:[%s9] sm:$0xff]
      %v1140 = vld [vmem:[%s9 + $0x8] sm:$0xff]
      %v1141 = vld [vmem:[%s9 + $0x10] sm:$0xff]
      %v1142 = vld [vmem:[%s9 + $0x18] sm:$0xff]
      %v1143 = vld [vmem:[%s9 + $0x20] sm:$0xff]
      %v1144 = vld [vmem:[%s9 + $0x28] sm:$0xff]
      %v1145 = vld [vmem:[%s9 + $0x30] sm:$0xff]
      %v1146 = vld [vmem:[%s9 + $0x38] sm:$0xff]
      %v1155 = vunpack.c.l.b16 %v1139
      %v1156 = vunpack.c.h.b16 %v1139
      %v1157 = vunpack.c.l.b16 %v1140
      %v1158 = vunpack.c.h.b16 %v1140
      %v1159 = vunpack.c.l.b16 %v1141
      %v1160 = vunpack.c.h.b16 %v1141
      %v1161 = vunpack.c.l.b16 %v1142
      %v1162 = vunpack.c.h.b16 %v1142
      %v1163 = vunpack.c.l.b16 %v1143
      %v1164 = vunpack.c.h.b16 %v1143
      %v1165 = vunpack.c.l.b16 %v1144
      %v1166 = vunpack.c.h.b16 %v1144
      %v1167 = vunpack.c.l.b16 %v1145
      %v1168 = vunpack.c.h.b16 %v1145
      %v1169 = vunpack.c.l.b16 %v1146
      %v1170 = vunpack.c.h.b16 %v1146
      %v1171 = vpack.c.b16 %v1157, %v1155
      %v1172 = vpack.c.b16 %v1158, %v1156
      %v1173 = vpack.c.b16 %v1161, %v1159
      %v1174 = vpack.c.b16 %v1162, %v1160
      %v1175 = vpack.c.b16 %v1165, %v1163
      %v1176 = vpack.c.b16 %v1166, %v1164
      %v1177 = vpack.c.b16 %v1169, %v1167
      %v1178 = vpack.c.b16 %v1170, %v1168
      %1187 = vmatpush.bf16.msra.mxu0 0
      %1188 = vmatpush.bf16.msra.mxu0 0
      %1189 = vmatpush.bf16.msra.mxu0 0
      %1190 = vmatpush.bf16.msra.mxu0 0
      %1191 = vmatpush.bf16.msra.mxu0 %v1177
      %1192 = vmatpush.bf16.msra.mxu0 %v1175
      %1193 = vmatpush.bf16.msra.mxu0 %v1173
      %1194 = vmatpush.bf16.msra.mxu0 %v1171
      %1195 = vmatmul.bf16.gmra.mxu0 %v1064
      %v1196 = vpop.f32.mrf.mxu0
      %v1197 = vadd.f32 0.0, %v1196
      %v1198 = vpop.f32.mrf.mxu0
      %1199 = vdwg.mxu0
      %1200 = vmatpush.bf16.msra.mxu0 0
      %1201 = vmatpush.bf16.msra.mxu0 0
      %1202 = vmatpush.bf16.msra.mxu0 0
      %1203 = vmatpush.bf16.msra.mxu0 0
      %1204 = vmatpush.bf16.msra.mxu0 %v1178
      %1205 = vmatpush.bf16.msra.mxu0 %v1176
      %1206 = vmatpush.bf16.msra.mxu0 %v1174
      %1207 = vmatpush.bf16.msra.mxu0 %v1172
      %1208 = vmatmul.bf16.gmra.mxu0 %v1064
      %v1209 = vpop.f32.mrf.mxu0
      %v1210 = vadd.f32 0.0, %v1209
      %v1211 = vpop.f32.mrf.mxu0
      %1212 = vdwg.mxu0
      %v1213 = vxor.u32 %v1197, 2147483648
      %v1214 = vmul.f32 %v1213, 1.442695
      %v1215 = vpow.pop %v1214
      %v1216 = vadd.f32 %v1215, 1.0
      %v1217 = vrcp.pop %v1216
      %v1218 = vmul.f32 %v1216, %v1217
      %v1219 = vsub.f32 1.0, %v1218
      %v1220 = vmul.f32 %v1217, %v1219
      %v1221 = vadd.f32 %v1217, %v1220
      %vm1222 = vweird.f32 %v1216
      %vm1223 = vweird.f32 %v1217
      %vm1224 = vmor %vm1222, %vm1223
      %v1225 = vsel %vm1224, %v1217, %v1221
      %v1226 = vand.u32 2147483647, %v1216
      %vm1227 = vcmp.eq.f32.partialorder %v1226, 8.507059e+37
      %v1228 = vand.u32 %v1216, 2147483648
      %v1229 = vor.u32 1.1754944e-38, %v1228
      %v1230 = vsel %vm1227, %v1229, %v1225
      %v1231 = vmul.f32 1.0, %v1230
      %v1232 = vmul.f32 %v1197, %v1231
      %v1233 = vmul.f32 %v1232, %v1210
      %v1234 = vpack.c.bf16 %v1233, %v1233
      %v1235 = vld [vmem:[%s10] sm:$0xf]
      %v1236 = vld [vmem:[%s10 + $0x4] sm:$0xf]
      %v1237 = vld [vmem:[%s10 + $0x8] sm:$0xf]
      %v1238 = vld [vmem:[%s10 + $0xc] sm:$0xf]
      %v1239 = vld [vmem:[%s10 + $0x10] sm:$0xf]
      %v1240 = vld [vmem:[%s10 + $0x14] sm:$0xf]
      %v1241 = vld [vmem:[%s10 + $0x18] sm:$0xf]
      %v1242 = vld [vmem:[%s10 + $0x1c] sm:$0xf]
      %v1243 = vld [vmem:[%s10 + $0x20] sm:$0xf]
      %v1244 = vld [vmem:[%s10 + $0x24] sm:$0xf]
      %v1245 = vld [vmem:[%s10 + $0x28] sm:$0xf]
      %v1246 = vld [vmem:[%s10 + $0x2c] sm:$0xf]
      %v1247 = vld [vmem:[%s10 + $0x30] sm:$0xf]
      %v1248 = vld [vmem:[%s10 + $0x34] sm:$0xf]
      %v1249 = vld [vmem:[%s10 + $0x38] sm:$0xf]
      %v1250 = vld [vmem:[%s10 + $0x3c] sm:$0xf]
      %v1267 = vunpack.c.l.b16 %v1235
      %v1268 = vunpack.c.l.b16 %v1236
      %v1269 = vunpack.c.l.b16 %v1237
      %v1270 = vunpack.c.l.b16 %v1238
      %v1271 = vunpack.c.l.b16 %v1239
      %v1272 = vunpack.c.l.b16 %v1240
      %v1273 = vunpack.c.l.b16 %v1241
      %v1274 = vunpack.c.l.b16 %v1242
      %v1275 = vunpack.c.l.b16 %v1243
      %v1276 = vunpack.c.l.b16 %v1244
      %v1277 = vunpack.c.l.b16 %v1245
      %v1278 = vunpack.c.l.b16 %v1246
      %v1279 = vunpack.c.l.b16 %v1247
      %v1280 = vunpack.c.l.b16 %v1248
      %v1281 = vunpack.c.l.b16 %v1249
      %v1282 = vunpack.c.l.b16 %v1250
      %v1283 = vpack.c.b16 %v1268, %v1267
      %v1284 = vpack.c.b16 %v1270, %v1269
      %v1285 = vpack.c.b16 %v1272, %v1271
      %v1286 = vpack.c.b16 %v1274, %v1273
      %v1287 = vpack.c.b16 %v1276, %v1275
      %v1288 = vpack.c.b16 %v1278, %v1277
      %v1289 = vpack.c.b16 %v1280, %v1279
      %v1290 = vpack.c.b16 %v1282, %v1281
      %1299 = vmatpush.bf16.msra.mxu0 %v1290
      %1300 = vmatpush.bf16.msra.mxu0 %v1289
      %1301 = vmatpush.bf16.msra.mxu0 %v1288
      %1302 = vmatpush.bf16.msra.mxu0 %v1287
      %1303 = vmatpush.bf16.msra.mxu0 %v1286
      %1304 = vmatpush.bf16.msra.mxu0 %v1285
      %1305 = vmatpush.bf16.msra.mxu0 %v1284
      %1306 = vmatpush.bf16.msra.mxu0 %v1283
      %1307 = vmatmul.bf16.gmra.mxu0 %v1234
      %v1308 = vpop.f32.mrf.mxu0
      %v1309 = vadd.f32 0.0, %v1308
      %v1310 = vpop.f32.mrf.mxu0
      %1311 = vdwg.mxu0
      %1313 = vset.pattern.permute.xlu0 0
      %1314 = vperm.xlu0 %1313, %v1138
      %v1315 = vpop.permute.xlu0 %1314
      %v1317 = vmul.f32 %v1315, %v1309
      %v1318 = vadd.f32 %v1007, %v1317
      %s1319 = scalar_lea.vmem %s9, 64
      %v1320 = vld [vmem:[%s1319] sm:$0xff]
      %v1321 = vld [vmem:[%s1319 + $0x8] sm:$0xff]
      %v1322 = vld [vmem:[%s1319 + $0x10] sm:$0xff]
      %v1323 = vld [vmem:[%s1319 + $0x18] sm:$0xff]
      %v1324 = vld [vmem:[%s1319 + $0x20] sm:$0xff]
      %v1325 = vld [vmem:[%s1319 + $0x28] sm:$0xff]
      %v1326 = vld [vmem:[%s1319 + $0x30] sm:$0xff]
      %v1327 = vld [vmem:[%s1319 + $0x38] sm:$0xff]
      %v1336 = vunpack.c.l.b16 %v1320
      %v1337 = vunpack.c.h.b16 %v1320
      %v1338 = vunpack.c.l.b16 %v1321
      %v1339 = vunpack.c.h.b16 %v1321
      %v1340 = vunpack.c.l.b16 %v1322
      %v1341 = vunpack.c.h.b16 %v1322
      %v1342 = vunpack.c.l.b16 %v1323
      %v1343 = vunpack.c.h.b16 %v1323
      %v1344 = vunpack.c.l.b16 %v1324
      %v1345 = vunpack.c.h.b16 %v1324
      %v1346 = vunpack.c.l.b16 %v1325
      %v1347 = vunpack.c.h.b16 %v1325
      %v1348 = vunpack.c.l.b16 %v1326
      %v1349 = vunpack.c.h.b16 %v1326
      %v1350 = vunpack.c.l.b16 %v1327
      %v1351 = vunpack.c.h.b16 %v1327
      %v1352 = vpack.c.b16 %v1338, %v1336
      %v1353 = vpack.c.b16 %v1339, %v1337
      %v1354 = vpack.c.b16 %v1342, %v1340
      %v1355 = vpack.c.b16 %v1343, %v1341
      %v1356 = vpack.c.b16 %v1346, %v1344
      %v1357 = vpack.c.b16 %v1347, %v1345
      %v1358 = vpack.c.b16 %v1350, %v1348
      %v1359 = vpack.c.b16 %v1351, %v1349
      %1368 = vmatpush.bf16.msra.mxu0 0
      %1369 = vmatpush.bf16.msra.mxu0 0
      %1370 = vmatpush.bf16.msra.mxu0 0
      %1371 = vmatpush.bf16.msra.mxu0 0
      %1372 = vmatpush.bf16.msra.mxu0 %v1358
      %1373 = vmatpush.bf16.msra.mxu0 %v1356
      %1374 = vmatpush.bf16.msra.mxu0 %v1354
      %1375 = vmatpush.bf16.msra.mxu0 %v1352
      %1376 = vmatmul.bf16.gmra.mxu0 %v1064
      %v1377 = vpop.f32.mrf.mxu0
      %v1378 = vadd.f32 0.0, %v1377
      %v1379 = vpop.f32.mrf.mxu0
      %1380 = vdwg.mxu0
      %1381 = vmatpush.bf16.msra.mxu0 0
      %1382 = vmatpush.bf16.msra.mxu0 0
      %1383 = vmatpush.bf16.msra.mxu0 0
      %1384 = vmatpush.bf16.msra.mxu0 0
      %1385 = vmatpush.bf16.msra.mxu0 %v1359
      %1386 = vmatpush.bf16.msra.mxu0 %v1357
      %1387 = vmatpush.bf16.msra.mxu0 %v1355
      %1388 = vmatpush.bf16.msra.mxu0 %v1353
      %1389 = vmatmul.bf16.gmra.mxu0 %v1064
      %v1390 = vpop.f32.mrf.mxu0
      %v1391 = vadd.f32 0.0, %v1390
      %v1392 = vpop.f32.mrf.mxu0
      %1393 = vdwg.mxu0
      %v1394 = vxor.u32 %v1378, 2147483648
      %v1395 = vmul.f32 %v1394, 1.442695
      %v1396 = vpow.pop %v1395
      %v1397 = vadd.f32 %v1396, 1.0
      %v1398 = vrcp.pop %v1397
      %v1399 = vmul.f32 %v1397, %v1398
      %v1400 = vsub.f32 1.0, %v1399
      %v1401 = vmul.f32 %v1398, %v1400
      %v1402 = vadd.f32 %v1398, %v1401
      %vm1403 = vweird.f32 %v1397
      %vm1404 = vweird.f32 %v1398
      %vm1405 = vmor %vm1403, %vm1404
      %v1406 = vsel %vm1405, %v1398, %v1402
      %v1407 = vand.u32 2147483647, %v1397
      %vm1408 = vcmp.eq.f32.partialorder %v1407, 8.507059e+37
      %v1409 = vand.u32 %v1397, 2147483648
      %v1410 = vor.u32 1.1754944e-38, %v1409
      %v1411 = vsel %vm1408, %v1410, %v1406
      %v1412 = vmul.f32 1.0, %v1411
      %v1413 = vmul.f32 %v1378, %v1412
      %v1414 = vmul.f32 %v1413, %v1391
      %v1415 = vpack.c.bf16 %v1414, %v1414
      %s1416 = scalar_lea.vmem %s10, 64
      %v1417 = vld [vmem:[%s1416] sm:$0xf]
      %v1418 = vld [vmem:[%s1416 + $0x4] sm:$0xf]
      %v1419 = vld [vmem:[%s1416 + $0x8] sm:$0xf]
      %v1420 = vld [vmem:[%s1416 + $0xc] sm:$0xf]
      %v1421 = vld [vmem:[%s1416 + $0x10] sm:$0xf]
      %v1422 = vld [vmem:[%s1416 + $0x14] sm:$0xf]
      %v1423 = vld [vmem:[%s1416 + $0x18] sm:$0xf]
      %v1424 = vld [vmem:[%s1416 + $0x1c] sm:$0xf]
      %v1425 = vld [vmem:[%s1416 + $0x20] sm:$0xf]
      %v1426 = vld [vmem:[%s1416 + $0x24] sm:$0xf]
      %v1427 = vld [vmem:[%s1416 + $0x28] sm:$0xf]
      %v1428 = vld [vmem:[%s1416 + $0x2c] sm:$0xf]
      %v1429 = vld [vmem:[%s1416 + $0x30] sm:$0xf]
      %v1430 = vld [vmem:[%s1416 + $0x34] sm:$0xf]
      %v1431 = vld [vmem:[%s1416 + $0x38] sm:$0xf]
      %v1432 = vld [vmem:[%s1416 + $0x3c] sm:$0xf]
      %v1449 = vunpack.c.l.b16 %v1417
      %v1450 = vunpack.c.l.b16 %v1418
      %v1451 = vunpack.c.l.b16 %v1419
      %v1452 = vunpack.c.l.b16 %v1420
      %v1453 = vunpack.c.l.b16 %v1421
      %v1454 = vunpack.c.l.b16 %v1422
      %v1455 = vunpack.c.l.b16 %v1423
      %v1456 = vunpack.c.l.b16 %v1424
      %v1457 = vunpack.c.l.b16 %v1425
      %v1458 = vunpack.c.l.b16 %v1426
      %v1459 = vunpack.c.l.b16 %v1427
      %v1460 = vunpack.c.l.b16 %v1428
      %v1461 = vunpack.c.l.b16 %v1429
      %v1462 = vunpack.c.l.b16 %v1430
      %v1463 = vunpack.c.l.b16 %v1431
      %v1464 = vunpack.c.l.b16 %v1432
      %v1465 = vpack.c.b16 %v1450, %v1449
      %v1466 = vpack.c.b16 %v1452, %v1451
      %v1467 = vpack.c.b16 %v1454, %v1453
      %v1468 = vpack.c.b16 %v1456, %v1455
      %v1469 = vpack.c.b16 %v1458, %v1457
      %v1470 = vpack.c.b16 %v1460, %v1459
      %v1471 = vpack.c.b16 %v1462, %v1461
      %v1472 = vpack.c.b16 %v1464, %v1463
      %1481 = vmatpush.bf16.msra.mxu0 %v1472
      %1482 = vmatpush.bf16.msra.mxu0 %v1471
      %1483 = vmatpush.bf16.msra.mxu0 %v1470
      %1484 = vmatpush.bf16.msra.mxu0 %v1469
      %1485 = vmatpush.bf16.msra.mxu0 %v1468
      %1486 = vmatpush.bf16.msra.mxu0 %v1467
      %1487 = vmatpush.bf16.msra.mxu0 %v1466
      %1488 = vmatpush.bf16.msra.mxu0 %v1465
      %1489 = vmatmul.bf16.gmra.mxu0 %v1415
      %v1490 = vpop.f32.mrf.mxu0
      %v1491 = vadd.f32 0.0, %v1490
      %v1492 = vpop.f32.mrf.mxu0
      %1493 = vdwg.mxu0
      %1494 = vset.pattern.permute.xlu0 1
      %1495 = vperm.xlu0 %1494, %v1138
      %v1496 = vpop.permute.xlu0 %1495
      %v1498 = vmul.f32 %v1496, %v1491
      %v1499 = vadd.f32 %v1318, %v1498
      %s1500 = scalar_lea.vmem %s9, 128
      %v1501 = vld [vmem:[%s1500] sm:$0xff]
      %v1502 = vld [vmem:[%s1500 + $0x8] sm:$0xff]
      %v1503 = vld [vmem:[%s1500 + $0x10] sm:$0xff]
      %v1504 = vld [vmem:[%s1500 + $0x18] sm:$0xff]
      %v1505 = vld [vmem:[%s1500 + $0x20] sm:$0xff]
      %v1506 = vld [vmem:[%s1500 + $0x28] sm:$0xff]
      %v1507 = vld [vmem:[%s1500 + $0x30] sm:$0xff]
      %v1508 = vld [vmem:[%s1500 + $0x38] sm:$0xff]
      %v1517 = vunpack.c.l.b16 %v1501
      %v1518 = vunpack.c.h.b16 %v1501
      %v1519 = vunpack.c.l.b16 %v1502
      %v1520 = vunpack.c.h.b16 %v1502
      %v1521 = vunpack.c.l.b16 %v1503
      %v1522 = vunpack.c.h.b16 %v1503
      %v1523 = vunpack.c.l.b16 %v1504
      %v1524 = vunpack.c.h.b16 %v1504
      %v1525 = vunpack.c.l.b16 %v1505
      %v1526 = vunpack.c.h.b16 %v1505
      %v1527 = vunpack.c.l.b16 %v1506
      %v1528 = vunpack.c.h.b16 %v1506
      %v1529 = vunpack.c.l.b16 %v1507
      %v1530 = vunpack.c.h.b16 %v1507
      %v1531 = vunpack.c.l.b16 %v1508
      %v1532 = vunpack.c.h.b16 %v1508
      %v1533 = vpack.c.b16 %v1519, %v1517
      %v1534 = vpack.c.b16 %v1520, %v1518
      %v1535 = vpack.c.b16 %v1523, %v1521
      %v1536 = vpack.c.b16 %v1524, %v1522
      %v1537 = vpack.c.b16 %v1527, %v1525
      %v1538 = vpack.c.b16 %v1528, %v1526
      %v1539 = vpack.c.b16 %v1531, %v1529
      %v1540 = vpack.c.b16 %v1532, %v1530
      %1549 = vmatpush.bf16.msra.mxu0 0
      %1550 = vmatpush.bf16.msra.mxu0 0
      %1551 = vmatpush.bf16.msra.mxu0 0
      %1552 = vmatpush.bf16.msra.mxu0 0
      %1553 = vmatpush.bf16.msra.mxu0 %v1539
      %1554 = vmatpush.bf16.msra.mxu0 %v1537
      %1555 = vmatpush.bf16.msra.mxu0 %v1535
      %1556 = vmatpush.bf16.msra.mxu0 %v1533
      %1557 = vmatmul.bf16.gmra.mxu0 %v1064
      %v1558 = vpop.f32.mrf.mxu0
      %v1559 = vadd.f32 0.0, %v1558
      %v1560 = vpop.f32.mrf.mxu0
      %1561 = vdwg.mxu0
      %1562 = vmatpush.bf16.msra.mxu0 0
      %1563 = vmatpush.bf16.msra.mxu0 0
      %1564 = vmatpush.bf16.msra.mxu0 0
      %1565 = vmatpush.bf16.msra.mxu0 0
      %1566 = vmatpush.bf16.msra.mxu0 %v1540
      %1567 = vmatpush.bf16.msra.mxu0 %v1538
      %1568 = vmatpush.bf16.msra.mxu0 %v1536
      %1569 = vmatpush.bf16.msra.mxu0 %v1534
      %1570 = vmatmul.bf16.gmra.mxu0 %v1064
      %v1571 = vpop.f32.mrf.mxu0
      %v1572 = vadd.f32 0.0, %v1571
      %v1573 = vpop.f32.mrf.mxu0
      %1574 = vdwg.mxu0
      %v1575 = vxor.u32 %v1559, 2147483648
      %v1576 = vmul.f32 %v1575, 1.442695
      %v1577 = vpow.pop %v1576
      %v1578 = vadd.f32 %v1577, 1.0
      %v1579 = vrcp.pop %v1578
      %v1580 = vmul.f32 %v1578, %v1579
      %v1581 = vsub.f32 1.0, %v1580
      %v1582 = vmul.f32 %v1579, %v1581
      %v1583 = vadd.f32 %v1579, %v1582
      %vm1584 = vweird.f32 %v1578
      %vm1585 = vweird.f32 %v1579
      %vm1586 = vmor %vm1584, %vm1585
      %v1587 = vsel %vm1586, %v1579, %v1583
      %v1588 = vand.u32 2147483647, %v1578
      %vm1589 = vcmp.eq.f32.partialorder %v1588, 8.507059e+37
      %v1590 = vand.u32 %v1578, 2147483648
      %v1591 = vor.u32 1.1754944e-38, %v1590
      %v1592 = vsel %vm1589, %v1591, %v1587
      %v1593 = vmul.f32 1.0, %v1592
      %v1594 = vmul.f32 %v1559, %v1593
      %v1595 = vmul.f32 %v1594, %v1572
      %v1596 = vpack.c.bf16 %v1595, %v1595
      %s1597 = scalar_lea.vmem %s10, 128
      %v1598 = vld [vmem:[%s1597] sm:$0xf]
      %v1599 = vld [vmem:[%s1597 + $0x4] sm:$0xf]
      %v1600 = vld [vmem:[%s1597 + $0x8] sm:$0xf]
      %v1601 = vld [vmem:[%s1597 + $0xc] sm:$0xf]
      %v1602 = vld [vmem:[%s1597 + $0x10] sm:$0xf]
      %v1603 = vld [vmem:[%s1597 + $0x14] sm:$0xf]
      %v1604 = vld [vmem:[%s1597 + $0x18] sm:$0xf]
      %v1605 = vld [vmem:[%s1597 + $0x1c] sm:$0xf]
      %v1606 = vld [vmem:[%s1597 + $0x20] sm:$0xf]
      %v1607 = vld [vmem:[%s1597 + $0x24] sm:$0xf]
      %v1608 = vld [vmem:[%s1597 + $0x28] sm:$0xf]
      %v1609 = vld [vmem:[%s1597 + $0x2c] sm:$0xf]
      %v1610 = vld [vmem:[%s1597 + $0x30] sm:$0xf]
      %v1611 = vld [vmem:[%s1597 + $0x34] sm:$0xf]
      %v1612 = vld [vmem:[%s1597 + $0x38] sm:$0xf]
      %v1613 = vld [vmem:[%s1597 + $0x3c] sm:$0xf]
      %v1630 = vunpack.c.l.b16 %v1598
      %v1631 = vunpack.c.l.b16 %v1599
      %v1632 = vunpack.c.l.b16 %v1600
      %v1633 = vunpack.c.l.b16 %v1601
      %v1634 = vunpack.c.l.b16 %v1602
      %v1635 = vunpack.c.l.b16 %v1603
      %v1636 = vunpack.c.l.b16 %v1604
      %v1637 = vunpack.c.l.b16 %v1605
      %v1638 = vunpack.c.l.b16 %v1606
      %v1639 = vunpack.c.l.b16 %v1607
      %v1640 = vunpack.c.l.b16 %v1608
      %v1641 = vunpack.c.l.b16 %v1609
      %v1642 = vunpack.c.l.b16 %v1610
      %v1643 = vunpack.c.l.b16 %v1611
      %v1644 = vunpack.c.l.b16 %v1612
      %v1645 = vunpack.c.l.b16 %v1613
      %v1646 = vpack.c.b16 %v1631, %v1630
      %v1647 = vpack.c.b16 %v1633, %v1632
      %v1648 = vpack.c.b16 %v1635, %v1634
      %v1649 = vpack.c.b16 %v1637, %v1636
      %v1650 = vpack.c.b16 %v1639, %v1638
      %v1651 = vpack.c.b16 %v1641, %v1640
      %v1652 = vpack.c.b16 %v1643, %v1642
      %v1653 = vpack.c.b16 %v1645, %v1644
      %1662 = vmatpush.bf16.msra.mxu0 %v1653
      %1663 = vmatpush.bf16.msra.mxu0 %v1652
      %1664 = vmatpush.bf16.msra.mxu0 %v1651
      %1665 = vmatpush.bf16.msra.mxu0 %v1650
      %1666 = vmatpush.bf16.msra.mxu0 %v1649
      %1667 = vmatpush.bf16.msra.mxu0 %v1648
      %1668 = vmatpush.bf16.msra.mxu0 %v1647
      %1669 = vmatpush.bf16.msra.mxu0 %v1646
      %1670 = vmatmul.bf16.gmra.mxu0 %v1596
      %v1671 = vpop.f32.mrf.mxu0
      %v1672 = vadd.f32 0.0, %v1671
      %v1673 = vpop.f32.mrf.mxu0
      %1674 = vdwg.mxu0
      %1675 = vset.pattern.permute.xlu0 2
      %1676 = vperm.xlu0 %1675, %v1138
      %v1677 = vpop.permute.xlu0 %1676
      %v1679 = vmul.f32 %v1677, %v1672
      %v1680 = vadd.f32 %v1499, %v1679
      %s1681 = scalar_lea.vmem %s9, 192
      %v1682 = vld [vmem:[%s1681] sm:$0xff]
      %v1683 = vld [vmem:[%s1681 + $0x8] sm:$0xff]
      %v1684 = vld [vmem:[%s1681 + $0x10] sm:$0xff]
      %v1685 = vld [vmem:[%s1681 + $0x18] sm:$0xff]
      %v1686 = vld [vmem:[%s1681 + $0x20] sm:$0xff]
      %v1687 = vld [vmem:[%s1681 + $0x28] sm:$0xff]
      %v1688 = vld [vmem:[%s1681 + $0x30] sm:$0xff]
      %v1689 = vld [vmem:[%s1681 + $0x38] sm:$0xff]
      %v1698 = vunpack.c.l.b16 %v1682
      %v1699 = vunpack.c.h.b16 %v1682
      %v1700 = vunpack.c.l.b16 %v1683
      %v1701 = vunpack.c.h.b16 %v1683
      %v1702 = vunpack.c.l.b16 %v1684
      %v1703 = vunpack.c.h.b16 %v1684
      %v1704 = vunpack.c.l.b16 %v1685
      %v1705 = vunpack.c.h.b16 %v1685
      %v1706 = vunpack.c.l.b16 %v1686
      %v1707 = vunpack.c.h.b16 %v1686
      %v1708 = vunpack.c.l.b16 %v1687
      %v1709 = vunpack.c.h.b16 %v1687
      %v1710 = vunpack.c.l.b16 %v1688
      %v1711 = vunpack.c.h.b16 %v1688
      %v1712 = vunpack.c.l.b16 %v1689
      %v1713 = vunpack.c.h.b16 %v1689
      %v1714 = vpack.c.b16 %v1700, %v1698
      %v1715 = vpack.c.b16 %v1701, %v1699
      %v1716 = vpack.c.b16 %v1704, %v1702
      %v1717 = vpack.c.b16 %v1705, %v1703
      %v1718 = vpack.c.b16 %v1708, %v1706
      %v1719 = vpack.c.b16 %v1709, %v1707
      %v1720 = vpack.c.b16 %v1712, %v1710
      %v1721 = vpack.c.b16 %v1713, %v1711
      %1730 = vmatpush.bf16.msra.mxu0 0
      %1731 = vmatpush.bf16.msra.mxu0 0
      %1732 = vmatpush.bf16.msra.mxu0 0
      %1733 = vmatpush.bf16.msra.mxu0 0
      %1734 = vmatpush.bf16.msra.mxu0 %v1720
      %1735 = vmatpush.bf16.msra.mxu0 %v1718
      %1736 = vmatpush.bf16.msra.mxu0 %v1716
      %1737 = vmatpush.bf16.msra.mxu0 %v1714
      %1738 = vmatmul.bf16.gmra.mxu0 %v1064
      %v1739 = vpop.f32.mrf.mxu0
      %v1740 = vadd.f32 0.0, %v1739
      %v1741 = vpop.f32.mrf.mxu0
      %1742 = vdwg.mxu0
      %1743 = vmatpush.bf16.msra.mxu0 0
      %1744 = vmatpush.bf16.msra.mxu0 0
      %1745 = vmatpush.bf16.msra.mxu0 0
      %1746 = vmatpush.bf16.msra.mxu0 0
      %1747 = vmatpush.bf16.msra.mxu0 %v1721
      %1748 = vmatpush.bf16.msra.mxu0 %v1719
      %1749 = vmatpush.bf16.msra.mxu0 %v1717
      %1750 = vmatpush.bf16.msra.mxu0 %v1715
      %1751 = vmatmul.bf16.gmra.mxu0 %v1064
      %v1752 = vpop.f32.mrf.mxu0
      %v1753 = vadd.f32 0.0, %v1752
      %v1754 = vpop.f32.mrf.mxu0
      %1755 = vdwg.mxu0
      %v1756 = vxor.u32 %v1740, 2147483648
      %v1757 = vmul.f32 %v1756, 1.442695
      %v1758 = vpow.pop %v1757
      %v1759 = vadd.f32 %v1758, 1.0
      %v1760 = vrcp.pop %v1759
      %v1761 = vmul.f32 %v1759, %v1760
      %v1762 = vsub.f32 1.0, %v1761
      %v1763 = vmul.f32 %v1760, %v1762
      %v1764 = vadd.f32 %v1760, %v1763
      %vm1765 = vweird.f32 %v1759
      %vm1766 = vweird.f32 %v1760
      %vm1767 = vmor %vm1765, %vm1766
      %v1768 = vsel %vm1767, %v1760, %v1764
      %v1769 = vand.u32 2147483647, %v1759
      %vm1770 = vcmp.eq.f32.partialorder %v1769, 8.507059e+37
      %v1771 = vand.u32 %v1759, 2147483648
      %v1772 = vor.u32 1.1754944e-38, %v1771
      %v1773 = vsel %vm1770, %v1772, %v1768
      %v1774 = vmul.f32 1.0, %v1773
      %v1775 = vmul.f32 %v1740, %v1774
      %v1776 = vmul.f32 %v1775, %v1753
      %v1777 = vpack.c.bf16 %v1776, %v1776
      %s1778 = scalar_lea.vmem %s10, 192
      %v1779 = vld [vmem:[%s1778] sm:$0xf]
      %v1780 = vld [vmem:[%s1778 + $0x4] sm:$0xf]
      %v1781 = vld [vmem:[%s1778 + $0x8] sm:$0xf]
      %v1782 = vld [vmem:[%s1778 + $0xc] sm:$0xf]
      %v1783 = vld [vmem:[%s1778 + $0x10] sm:$0xf]
      %v1784 = vld [vmem:[%s1778 + $0x14] sm:$0xf]
      %v1785 = vld [vmem:[%s1778 + $0x18] sm:$0xf]
      %v1786 = vld [vmem:[%s1778 + $0x1c] sm:$0xf]
      %v1787 = vld [vmem:[%s1778 + $0x20] sm:$0xf]
      %v1788 = vld [vmem:[%s1778 + $0x24] sm:$0xf]
      %v1789 = vld [vmem:[%s1778 + $0x28] sm:$0xf]
      %v1790 = vld [vmem:[%s1778 + $0x2c] sm:$0xf]
      %v1791 = vld [vmem:[%s1778 + $0x30] sm:$0xf]
      %v1792 = vld [vmem:[%s1778 + $0x34] sm:$0xf]
      %v1793 = vld [vmem:[%s1778 + $0x38] sm:$0xf]
      %v1794 = vld [vmem:[%s1778 + $0x3c] sm:$0xf]
      %v1811 = vunpack.c.l.b16 %v1779
      %v1812 = vunpack.c.l.b16 %v1780
      %v1813 = vunpack.c.l.b16 %v1781
      %v1814 = vunpack.c.l.b16 %v1782
      %v1815 = vunpack.c.l.b16 %v1783
      %v1816 = vunpack.c.l.b16 %v1784
      %v1817 = vunpack.c.l.b16 %v1785
      %v1818 = vunpack.c.l.b16 %v1786
      %v1819 = vunpack.c.l.b16 %v1787
      %v1820 = vunpack.c.l.b16 %v1788
      %v1821 = vunpack.c.l.b16 %v1789
      %v1822 = vunpack.c.l.b16 %v1790
      %v1823 = vunpack.c.l.b16 %v1791
      %v1824 = vunpack.c.l.b16 %v1792
      %v1825 = vunpack.c.l.b16 %v1793
      %v1826 = vunpack.c.l.b16 %v1794
      %v1827 = vpack.c.b16 %v1812, %v1811
      %v1828 = vpack.c.b16 %v1814, %v1813
      %v1829 = vpack.c.b16 %v1816, %v1815
      %v1830 = vpack.c.b16 %v1818, %v1817
      %v1831 = vpack.c.b16 %v1820, %v1819
      %v1832 = vpack.c.b16 %v1822, %v1821
      %v1833 = vpack.c.b16 %v1824, %v1823
      %v1834 = vpack.c.b16 %v1826, %v1825
      %1843 = vmatpush.bf16.msra.mxu0 %v1834
      %1844 = vmatpush.bf16.msra.mxu0 %v1833
      %1845 = vmatpush.bf16.msra.mxu0 %v1832
      %1846 = vmatpush.bf16.msra.mxu0 %v1831
      %1847 = vmatpush.bf16.msra.mxu0 %v1830
      %1848 = vmatpush.bf16.msra.mxu0 %v1829
      %1849 = vmatpush.bf16.msra.mxu0 %v1828
      %1850 = vmatpush.bf16.msra.mxu0 %v1827
      %1851 = vmatmul.bf16.gmra.mxu0 %v1777
      %v1852 = vpop.f32.mrf.mxu0
      %v1853 = vadd.f32 0.0, %v1852
      %v1854 = vpop.f32.mrf.mxu0
      %1855 = vdwg.mxu0
      %1856 = vset.pattern.permute.xlu0 3
      %1857 = vperm.xlu0 %1856, %v1138
      %v1858 = vpop.permute.xlu0 %1857
      %v1860 = vmul.f32 %v1858, %v1853
      %v1861 = vadd.f32 %v1680, %v1860
      %1862 = vst.msk [vmem:[%s381] sm:$0xff] %vm386, %v1861
      %p1863 = scmp.lt.s32.totalorder %s22, 1
      %s1864 = scalar_select %p1863, %s22, 1
      %s1865 = smul.addr %s1864, 8
      %s1866 = scalar_lea.vmem %s11, %s1865
      // Predicated region
      $region65: #{mistral_moe_forward.2} parent=63 // pred_check
        %p1867 = pneg %p276
      $region66: #{mistral_moe_forward.2} parent=63 // pred_check_branch
        %1869 = sbr.rel (%p1867) target = $region68
      $region67: #{mistral_moe_forward.2} parent=63 // pred_region
        _
      $region68: #{mistral_moe_forward.2} parent=63 // pred_fallthru
        _
    $region64: #{mistral_moe_forward.2} parent=5 // pred_fallthru
      _
    %p1870 = scmp.le.s32.totalorder 2, %s17
    // Predicated region
    $region69: #{mistral_moe_forward.2} parent=5 // pred_check
      %p1871 = pneg %p1870
    $region70: #{mistral_moe_forward.2} parent=5 // pred_check_branch
      %1873 = sbr.rel (%p1871) target = $region72
    $region71: #{mistral_moe_forward.2} parent=5 // pred_region
      %s1874 = ssub.s32 %s17, 2
      // Predicated region
      $region73: #{mistral_moe_forward.2} parent=71 // pred_check
        %p1875 = pneg %p282
      $region74: #{mistral_moe_forward.2} parent=71 // pred_check_branch
        %1877 = sbr.rel (%p1875) target = $region76
      $region75: #{mistral_moe_forward.2} parent=71 // pred_region
        %p1878 = scmp.lt.s32.totalorder %s23, 1
        %s1879 = scalar_select %p1878, %s23, 1
        %s1880 = smul.addr %s1879, 8
        %s1881 = scalar_lea.vmem %s11, %s1880
      $region76: #{mistral_moe_forward.2} parent=71 // pred_fallthru
        _
    $region72: #{mistral_moe_forward.2} parent=5 // pred_fallthru
      _
  $region6: #{mistral_moe_forward.2} parent=0 // loop_footer
    %s21 = sadd.s32 1, %s17
  $region7: #{mistral_moe_forward.2} parent=0 // loop_footer_branch
    %16 = sbr.rel target = $region3
  $region8: #{mistral_moe_forward.2} parent=0 // loop_exit
    _

</llo_original>
